<compile_context>
chip_gen: v5e
topology: v5e:2x2
jax: 0.10.0
libtpu: 0.0.40
codegen_flags: <defaults>
</compile_context>

<pallas_src>
import functools

import jax
import jax.numpy as jnp
from jax.experimental import pallas as pl
from jax.experimental.pallas import tpu as pltpu

# Set to jnp.bfloat16 on v6e/v7x to halve fc-weight HBM traffic (accumulation stays f32 via
# preferred_element_type; BN scale/shift and activations stay f32).  Default f32 to match
# PyTorch eval-mode numerics exactly.
MATMUL_DTYPE = jnp.float32


def _mm(a, w):
    # MXU matmul with f32 accumulation; casts the activation to the weight dtype (no-op for f32).
    return jnp.dot(a.astype(w.dtype), w, preferred_element_type=jnp.float32)


# ----------------------------------------------------------------------------
# Kernel 1: fused CNN front end (conv1+BN+ReLU+pool + conv2+BN+ReLU+pool)
# ----------------------------------------------------------------------------
def conv_frontend_kernel(xcol_ref, w1_ref, s1_ref, sh1_ref, w2_ref, s2_ref, sh2_ref, o_ref,
                         *, nq, th2):
    w1 = w1_ref[...]           # (65, 32)   conv1 im2col weight (k-major, cin-minor)
    s1 = s1_ref[...]           # (1, 32)    folded BN scale
    sh1 = sh1_ref[...]         # (1, 32)    folded conv-bias + BN shift

    # conv1 (im2col, assembled on host) + BN + ReLU for the 4 output-position parities t = 4q+r.
    act = []
    for r in range(4):
        c = _mm(xcol_ref[0, r, :, :], w1)                 # (nq, 32)
        act.append(jnp.maximum(c * s1 + sh1, 0.0))

    # MaxPool1d(2): y1 split by parity of the pooled position.  Rows 0 and nq-1 are halo rows
    # (out-of-range positions) that double as conv2's zero padding -> mask them to 0.
    row = jax.lax.broadcasted_iota(jnp.int32, (nq, 1), 0)
    valid = (row >= 1) & (row <= nq - 2)
    pe = jnp.where(valid, jnp.maximum(act[0], act[1]), 0.0)   # y1 at even positions (+halo)
    po = jnp.where(valid, jnp.maximum(act[2], act[3]), 0.0)   # y1 at odd positions  (+halo)

    # conv2 im2col (k-major, cin-minor), separately for even / odd conv2 output positions.
    cols_e = jnp.concatenate(
        [pe[0:th2], po[0:th2], pe[1:th2 + 1], po[1:th2 + 1], pe[2:th2 + 2]], axis=1)   # (th2,160)
    cols_o = jnp.concatenate(
        [po[0:th2], pe[1:th2 + 1], po[1:th2 + 1], pe[2:th2 + 2], po[2:th2 + 2]], axis=1)

    w2 = w2_ref[...]           # (160, 64)
    s2 = s2_ref[...]           # (1, 64)
    sh2 = sh2_ref[...]         # (1, 64)
    ye = jnp.maximum(_mm(cols_e, w2) * s2 + sh2, 0.0)
    yo = jnp.maximum(_mm(cols_o, w2) * s2 + sh2, 0.0)
    o_ref[0] = jnp.maximum(ye, yo)                        # MaxPool1d(2) -> (th2, 64)


def conv_frontend(xcol, w1col, s1, sh1, w2col, s2, sh2, th2):
    B, npar, nq, kc1 = xcol.shape
    cout2 = w2col.shape[1]
    kern = functools.partial(conv_frontend_kernel, nq=nq, th2=th2)
    return pl.pallas_call(
        kern,
        out_shape=jax.ShapeDtypeStruct((B, th2, cout2), jnp.float32),
        grid=(B,),
        in_specs=[
            pl.BlockSpec((1, npar, nq, kc1), lambda b: (b, 0, 0, 0)),
            pl.BlockSpec(w1col.shape, lambda b: (0, 0)),
            pl.BlockSpec(s1.shape, lambda b: (0, 0)),
            pl.BlockSpec(sh1.shape, lambda b: (0, 0)),
            pl.BlockSpec(w2col.shape, lambda b: (0, 0)),
            pl.BlockSpec(s2.shape, lambda b: (0, 0)),
            pl.BlockSpec(sh2.shape, lambda b: (0, 0)),
        ],
        out_specs=pl.BlockSpec((1, th2, cout2), lambda b: (b, 0, 0)),
        compiler_params=pltpu.CompilerParams(dimension_semantics=("parallel",)),
    )(xcol, w1col, s1, sh1, w2col, s2, sh2)


# ----------------------------------------------------------------------------
# Kernel 2: fused tail (initial_fc + 2x ResidualBlock + ChannelAttention + classifier)
# ----------------------------------------------------------------------------
def tail_kernel(x_ref, fw_ref, fb_ref,
                r1w1_ref, r1s1_ref, r1b1_ref, r1w2_ref, r1s2_ref, r1b2_ref,
                r2w1_ref, r2s1_ref, r2b1_ref, r2w2_ref, r2s2_ref, r2b2_ref,
                aw1_ref, ab1_ref, aw2_ref, ab2_ref,
                cw1_ref, cs1_ref, cb1_ref, cw2_ref, cb2_ref,
                o_ref):
    x = x_ref[...]                                                    # (B, 3200)
    h = jnp.maximum(_mm(x, fw_ref[...]) + fb_ref[...], 0.0)          # initial_fc + ReLU

    # residual block 1 (Linear+BN+ReLU+[Dropout=id]+Linear+BN, +x, ReLU)
    t = jnp.maximum(_mm(h, r1w1_ref[...]) * r1s1_ref[...] + r1b1_ref[...], 0.0)
    h = jnp.maximum(_mm(t, r1w2_ref[...]) * r1s2_ref[...] + r1b2_ref[...] + h, 0.0)
    # residual block 2
    t = jnp.maximum(_mm(h, r2w1_ref[...]) * r2s1_ref[...] + r2b1_ref[...], 0.0)
    h = jnp.maximum(_mm(t, r2w2_ref[...]) * r2s2_ref[...] + r2b2_ref[...] + h, 0.0)

    # channel attention (AdaptiveAvgPool1d(1) over a size-1 dim is identity)
    a = jnp.maximum(_mm(h, aw1_ref[...]) + ab1_ref[...], 0.0)
    h = h * jax.nn.sigmoid(_mm(a, aw2_ref[...]) + ab2_ref[...])

    # classifier: Linear(128,64)+BN+ReLU, then 64->1 as VPU multiply + lane reduction
    c = jnp.maximum(_mm(h, cw1_ref[...]) * cs1_ref[...] + cb1_ref[...], 0.0)
    logit = jnp.sum(c * cw2_ref[...], axis=-1, keepdims=True) + cb2_ref[...]
    o_ref[...] = jax.nn.sigmoid(logit)


def tail(feat, p):
    B = feat.shape[0]
    args = (feat, p["fc0_wt"], p["fc0_b"],
            p["rb1"]["w1t"], p["rb1"]["s1"], p["rb1"]["sh1"],
            p["rb1"]["w2t"], p["rb1"]["s2"], p["rb1"]["sh2"],
            p["rb2"]["w1t"], p["rb2"]["s1"], p["rb2"]["sh1"],
            p["rb2"]["w2t"], p["rb2"]["s2"], p["rb2"]["sh2"],
            p["attn"]["w1t"], p["attn"]["b1"], p["attn"]["w2t"], p["attn"]["b2"],
            p["cls"]["w1t"], p["cls"]["s1"], p["cls"]["sh1"], p["cls"]["w2v"], p["cls"]["b2"])
    return pl.pallas_call(
        tail_kernel,
        out_shape=jax.ShapeDtypeStruct((B, 1), jnp.float32),
    )(*args)


# ----------------------------------------------------------------------------
# Full forward pass.  Host-side glue is only the one-time conv1 im2col gather (a few KB) and a
# free contiguous reshape; everything else runs inside the two Pallas kernels.
# ----------------------------------------------------------------------------
def improved_dnn_forward(x, params):
    B, FM = x.shape
    T = FM // 13
    th1 = T // 2
    th2 = th1 // 2
    nq = th2 + 2                           # pooled conv1 rows per parity, incl. 1 halo row/side

    xc = jnp.transpose(x.reshape(B, 13, T), (0, 2, 1))          # [B, T, 13] channels-last
    # extended zero pad so the conv1 im2col (incl. halo rows) never indexes out of range
    pad_right = 4 * nq + 4 - (T + 6)
    xpad = jnp.pad(xc, ((0, 0), (6, pad_right), (0, 0)))
    q = jnp.arange(nq)
    r = jnp.arange(4)
    k = jnp.arange(5)
    idx = 4 * q[None, :, None] + r[:, None, None] + k[None, None, :]        # [4, nq, 5]
    xcol = xpad[:, idx, :].reshape(B, 4, nq, 5 * 13)            # conv1 im2col [B,4,nq,65]

    h = conv_frontend(xcol,
                      params["conv1_w"], params["conv1_scale"], params["conv1_shift"],
                      params["conv2_w"], params["conv2_scale"], params["conv2_shift"],
                      th2)                                      # [B, th2, 64]
    feat = h.reshape(B, th2 * 64)       # free reshape; fc0 rows were pre-permuted to this order
    return tail(feat, params)[:, 0]     # .squeeze(1)


# ----------------------------------------------------------------------------
# Deterministic synthetic parameter initialization (matches nn.Module shapes).
# ----------------------------------------------------------------------------
def init_params(key):
    keys = iter(jax.random.split(key, 64))
    nk = lambda: next(keys)

    def rnd(shape, scale=0.05):
        return (scale * jax.random.normal(nk(), shape)).astype(jnp.float32)

    def bn_params(dim):
        gamma = (1.0 + 0.1 * jax.random.normal(nk(), (dim,))).astype(jnp.float32)
        beta = (0.1 * jax.random.normal(nk(), (dim,))).astype(jnp.float32)
        rmean = (0.05 * jax.random.normal(nk(), (dim,))).astype(jnp.float32)
        rvar = (1.0 + 0.2 * jax.random.uniform(nk(), (dim,))).astype(jnp.float32)
        return gamma, beta, rmean, rvar

    eps = 1e-5

    def bn_fold(bias, bnp):
        gamma, beta, rmean, rvar = bnp
        scale = gamma * jax.lax.rsqrt(rvar + eps)
        shift = (bias - rmean) * scale + beta
        return scale.reshape(1, -1), shift.reshape(1, -1)

    mmd = MATMUL_DTYPE
    p = {}

    # Conv1d(13,32,5,padding=2) + BatchNorm1d(32): weight -> im2col layout [K*Cin, Cout], k-major
    w = rnd((32, 13, 5)); b = rnd((32,))
    s, sh = bn_fold(b, bn_params(32))
    p["conv1_w"] = jnp.transpose(w, (2, 1, 0)).reshape(5 * 13, 32).astype(mmd)
    p["conv1_scale"], p["conv1_shift"] = s, sh

    # Conv1d(32,64,5,padding=2) + BatchNorm1d(64)
    w = rnd((64, 32, 5)); b = rnd((64,))
    s, sh = bn_fold(b, bn_params(64))
    p["conv2_w"] = jnp.transpose(w, (2, 1, 0)).reshape(5 * 32, 64).astype(mmd)
    p["conv2_scale"], p["conv2_shift"] = s, sh

    # initial_fc: Linear(3200, 128).  Transpose, then permute rows from PyTorch's channel-major
    # flatten order (c*50 + t) to the kernel's time-major order (t*64 + c).
    w = rnd((128, 3200)); b = rnd((128,))
    wt = w.T.reshape(64, 50, 128).transpose(1, 0, 2).reshape(3200, 128)
    p["fc0_wt"] = wt.astype(mmd)
    p["fc0_b"] = b.reshape(1, -1)

    # ResidualBlock(128) x2
    def res_params():
        w1 = rnd((128, 128)); b1 = rnd((128,)); s1, sh1 = bn_fold(b1, bn_params(128))
        w2 = rnd((128, 128)); b2 = rnd((128,)); s2, sh2 = bn_fold(b2, bn_params(128))
        return {"w1t": w1.T.astype(mmd), "s1": s1, "sh1": sh1,
                "w2t": w2.T.astype(mmd), "s2": s2, "sh2": sh2}

    p["rb1"] = res_params()
    p["rb2"] = res_params()

    # ChannelAttention(128, reduction=8)
    w1 = rnd((16, 128)); b1 = rnd((16,))
    w2 = rnd((128, 16)); b2 = rnd((128,))
    p["attn"] = {"w1t": w1.T.astype(mmd), "b1": b1.reshape(1, -1),
                 "w2t": w2.T.astype(mmd), "b2": b2.reshape(1, -1)}

    # classifier: Linear(128,64)+BN(64)+ReLU+Dropout+Linear(64,1)+Sigmoid
    w1 = rnd((64, 128)); b1 = rnd((64,)); s1, sh1 = bn_fold(b1, bn_params(64))
    w2 = rnd((1, 64)); b2 = rnd((1,))
    p["cls"] = {"w1t": w1.T.astype(mmd), "s1": s1, "sh1": sh1,
                "w2v": w2.reshape(1, 64), "b2": b2.reshape(1, 1)}
    return p


if __name__ == "__main__":
    key = jax.random.PRNGKey(0)
    kx, kp = jax.random.split(key)
    params = init_params(kp)

    # input_dim implied by the module: 13 channels * 200 frames = 2600 features
    B = 2
    x = jax.random.normal(kx, (B, 13 * 200), dtype=jnp.float32)

    fwd = jax.jit(improved_dnn_forward)
    out = fwd(x, params)
    jax.block_until_ready(out)
    assert out.shape == (B,)
    assert bool(jnp.all(jnp.isfinite(out)))
    assert bool(jnp.all((out >= 0.0) & (out <= 1.0)))   # sigmoid output
    print("KERNEL_OK")
</pallas_src>

<mosaic_0001>
module attributes {stable_mosaic.version = 11 : i64} {
  func.func @conv_frontend_kernel(%arg0: i32, %arg1: memref<1x4x52x65xf32, #tpu.memory_space<vmem>>, %arg2: memref<65x32xf32, #tpu.memory_space<vmem>>, %arg3: memref<1x32xf32, #tpu.memory_space<vmem>>, %arg4: memref<1x32xf32, #tpu.memory_space<vmem>>, %arg5: memref<160x64xf32, #tpu.memory_space<vmem>>, %arg6: memref<1x64xf32, #tpu.memory_space<vmem>>, %arg7: memref<1x64xf32, #tpu.memory_space<vmem>>, %arg8: memref<1x50x64xf32, #tpu.memory_space<vmem>>) attributes {dimension_semantics = [#tpu.dimension_semantics<parallel>], iteration_bounds = array<i64: 2>, scalar_prefetch = 0 : i64, scratch_operands = 0 : i64, tpu.core_type = #tpu.core_type<tc>, window_params = [{transform_indices = @transform_0, window_bounds = array<i64: 1, 4, 52, 65>}, {pipeline_mode = #tpu.pipeline_mode<synchronous>, transform_indices = @transform_1, window_bounds = array<i64: 65, 32>}, {pipeline_mode = #tpu.pipeline_mode<synchronous>, transform_indices = @transform_2, window_bounds = array<i64: 1, 32>}, {pipeline_mode = #tpu.pipeline_mode<synchronous>, transform_indices = @transform_3, window_bounds = array<i64: 1, 32>}, {pipeline_mode = #tpu.pipeline_mode<synchronous>, transform_indices = @transform_4, window_bounds = array<i64: 160, 64>}, {pipeline_mode = #tpu.pipeline_mode<synchronous>, transform_indices = @transform_5, window_bounds = array<i64: 1, 64>}, {pipeline_mode = #tpu.pipeline_mode<synchronous>, transform_indices = @transform_6, window_bounds = array<i64: 1, 64>}, {transform_indices = @transform_7, window_bounds = array<i64: 1, 50, 64>}]} {
    %c0 = arith.constant 0 : index
    %c0_0 = arith.constant 0 : index
    %0 = vector.load %arg2[%c0, %c0_0] : memref<65x32xf32, #tpu.memory_space<vmem>>, vector<65x32xf32>
    %c0_1 = arith.constant 0 : index
    %c0_2 = arith.constant 0 : index
    %1 = vector.load %arg3[%c0_1, %c0_2] : memref<1x32xf32, #tpu.memory_space<vmem>>, vector<1x32xf32>
    %c0_3 = arith.constant 0 : index
    %c0_4 = arith.constant 0 : index
    %2 = vector.load %arg4[%c0_3, %c0_4] : memref<1x32xf32, #tpu.memory_space<vmem>>, vector<1x32xf32>
    %c0_5 = arith.constant 0 : index
    %c0_6 = arith.constant 0 : index
    %c0_7 = arith.constant 0 : index
    %c0_8 = arith.constant 0 : index
    %3 = vector.load %arg1[%c0_5, %c0_6, %c0_7, %c0_8] : memref<1x4x52x65xf32, #tpu.memory_space<vmem>>, vector<1x1x52x65xf32>
    %4 = vector.shape_cast %3 : vector<1x1x52x65xf32> to vector<52x65xf32>
    %cst = arith.constant dense<0.000000e+00> : vector<52x32xf32>
    %5 = tpu.matmul %4, %0, %cst {dimension_numbers = #tpu.dot_dimension_numbers<[1], [0], [0], [1], [0, 0, 1, 1], [], []>} : vector<52x65xf32>, vector<65x32xf32>, vector<52x32xf32> -> vector<52x32xf32>
    %6 = vector.broadcast %1 : vector<1x32xf32> to vector<52x32xf32>
    %7 = arith.mulf %5, %6 : vector<52x32xf32>
    %8 = vector.broadcast %2 : vector<1x32xf32> to vector<52x32xf32>
    %9 = arith.addf %7, %8 : vector<52x32xf32>
    %cst_9 = arith.constant 0.000000e+00 : f32
    %10 = vector.broadcast %cst_9 : f32 to vector<52x32xf32>
    %11 = arith.maximumf %9, %10 : vector<52x32xf32>
    %c0_10 = arith.constant 0 : index
    %c1 = arith.constant 1 : index
    %c0_11 = arith.constant 0 : index
    %c0_12 = arith.constant 0 : index
    %12 = vector.load %arg1[%c0_10, %c1, %c0_11, %c0_12] : memref<1x4x52x65xf32, #tpu.memory_space<vmem>>, vector<1x1x52x65xf32>
    %13 = vector.shape_cast %12 : vector<1x1x52x65xf32> to vector<52x65xf32>
    %cst_13 = arith.constant dense<0.000000e+00> : vector<52x32xf32>
    %14 = tpu.matmul %13, %0, %cst_13 {dimension_numbers = #tpu.dot_dimension_numbers<[1], [0], [0], [1], [0, 0, 1, 1], [], []>} : vector<52x65xf32>, vector<65x32xf32>, vector<52x32xf32> -> vector<52x32xf32>
    %15 = vector.broadcast %1 : vector<1x32xf32> to vector<52x32xf32>
    %16 = arith.mulf %14, %15 : vector<52x32xf32>
    %17 = vector.broadcast %2 : vector<1x32xf32> to vector<52x32xf32>
    %18 = arith.addf %16, %17 : vector<52x32xf32>
    %cst_14 = arith.constant 0.000000e+00 : f32
    %19 = vector.broadcast %cst_14 : f32 to vector<52x32xf32>
    %20 = arith.maximumf %18, %19 : vector<52x32xf32>
    %c0_15 = arith.constant 0 : index
    %c2 = arith.constant 2 : index
    %c0_16 = arith.constant 0 : index
    %c0_17 = arith.constant 0 : index
    %21 = vector.load %arg1[%c0_15, %c2, %c0_16, %c0_17] : memref<1x4x52x65xf32, #tpu.memory_space<vmem>>, vector<1x1x52x65xf32>
    %22 = vector.shape_cast %21 : vector<1x1x52x65xf32> to vector<52x65xf32>
    %cst_18 = arith.constant dense<0.000000e+00> : vector<52x32xf32>
    %23 = tpu.matmul %22, %0, %cst_18 {dimension_numbers = #tpu.dot_dimension_numbers<[1], [0], [0], [1], [0, 0, 1, 1], [], []>} : vector<52x65xf32>, vector<65x32xf32>, vector<52x32xf32> -> vector<52x32xf32>
    %24 = vector.broadcast %1 : vector<1x32xf32> to vector<52x32xf32>
    %25 = arith.mulf %23, %24 : vector<52x32xf32>
    %26 = vector.broadcast %2 : vector<1x32xf32> to vector<52x32xf32>
    %27 = arith.addf %25, %26 : vector<52x32xf32>
    %cst_19 = arith.constant 0.000000e+00 : f32
    %28 = vector.broadcast %cst_19 : f32 to vector<52x32xf32>
    %29 = arith.maximumf %27, %28 : vector<52x32xf32>
    %c0_20 = arith.constant 0 : index
    %c3 = arith.constant 3 : index
    %c0_21 = arith.constant 0 : index
    %c0_22 = arith.constant 0 : index
    %30 = vector.load %arg1[%c0_20, %c3, %c0_21, %c0_22] : memref<1x4x52x65xf32, #tpu.memory_space<vmem>>, vector<1x1x52x65xf32>
    %31 = vector.shape_cast %30 : vector<1x1x52x65xf32> to vector<52x65xf32>
    %cst_23 = arith.constant dense<0.000000e+00> : vector<52x32xf32>
    %32 = tpu.matmul %31, %0, %cst_23 {dimension_numbers = #tpu.dot_dimension_numbers<[1], [0], [0], [1], [0, 0, 1, 1], [], []>} : vector<52x65xf32>, vector<65x32xf32>, vector<52x32xf32> -> vector<52x32xf32>
    %33 = vector.broadcast %1 : vector<1x32xf32> to vector<52x32xf32>
    %34 = arith.mulf %32, %33 : vector<52x32xf32>
    %35 = vector.broadcast %2 : vector<1x32xf32> to vector<52x32xf32>
    %36 = arith.addf %34, %35 : vector<52x32xf32>
    %cst_24 = arith.constant 0.000000e+00 : f32
    %37 = vector.broadcast %cst_24 : f32 to vector<52x32xf32>
    %38 = arith.maximumf %36, %37 : vector<52x32xf32>
    %39 = tpu.iota {dimensions = array<i32: 0>} : vector<52x1xi32>
    %c1_i32 = arith.constant 1 : i32
    %40 = vector.broadcast %c1_i32 : i32 to vector<52x1xi32>
    %41 = arith.cmpi sge, %39, %40 : vector<52x1xi32>
    %c50_i32 = arith.constant 50 : i32
    %42 = vector.broadcast %c50_i32 : i32 to vector<52x1xi32>
    %43 = arith.cmpi sle, %39, %42 : vector<52x1xi32>
    %44 = arith.andi %41, %43 : vector<52x1xi1>
    %45 = arith.maximumf %11, %20 : vector<52x32xf32>
    %cst_25 = arith.constant 0.000000e+00 : f32
    %46 = vector.shape_cast %44 : vector<52x1xi1> to vector<52x1xi1>
    %47 = vector.broadcast %46 : vector<52x1xi1> to vector<52x32xi1>
    %48 = vector.broadcast %cst_25 : f32 to vector<52x32xf32>
    %49 = arith.select %47, %45, %48 : vector<52x32xi1>, vector<52x32xf32>
    %50 = arith.maximumf %29, %38 : vector<52x32xf32>
    %cst_26 = arith.constant 0.000000e+00 : f32
    %51 = vector.shape_cast %44 : vector<52x1xi1> to vector<52x1xi1>
    %52 = vector.broadcast %51 : vector<52x1xi1> to vector<52x32xi1>
    %53 = vector.broadcast %cst_26 : f32 to vector<52x32xf32>
    %54 = arith.select %52, %50, %53 : vector<52x32xi1>, vector<52x32xf32>
    %55 = vector.extract_strided_slice %49 {offsets = [0, 0], sizes = [50, 32], strides = [1, 1]} : vector<52x32xf32> to vector<50x32xf32>
    %56 = vector.extract_strided_slice %54 {offsets = [0, 0], sizes = [50, 32], strides = [1, 1]} : vector<52x32xf32> to vector<50x32xf32>
    %57 = vector.extract_strided_slice %49 {offsets = [1, 0], sizes = [50, 32], strides = [1, 1]} : vector<52x32xf32> to vector<50x32xf32>
    %58 = vector.extract_strided_slice %54 {offsets = [1, 0], sizes = [50, 32], strides = [1, 1]} : vector<52x32xf32> to vector<50x32xf32>
    %59 = vector.extract_strided_slice %49 {offsets = [2, 0], sizes = [50, 32], strides = [1, 1]} : vector<52x32xf32> to vector<50x32xf32>
    %60 = tpu.concatenate %55, %56, %57, %58, %59 in 1 : vector<50x32xf32>, vector<50x32xf32>, vector<50x32xf32>, vector<50x32xf32>, vector<50x32xf32> -> vector<50x160xf32>
    %61 = vector.extract_strided_slice %54 {offsets = [0, 0], sizes = [50, 32], strides = [1, 1]} : vector<52x32xf32> to vector<50x32xf32>
    %62 = vector.extract_strided_slice %49 {offsets = [1, 0], sizes = [50, 32], strides = [1, 1]} : vector<52x32xf32> to vector<50x32xf32>
    %63 = vector.extract_strided_slice %54 {offsets = [1, 0], sizes = [50, 32], strides = [1, 1]} : vector<52x32xf32> to vector<50x32xf32>
    %64 = vector.extract_strided_slice %49 {offsets = [2, 0], sizes = [50, 32], strides = [1, 1]} : vector<52x32xf32> to vector<50x32xf32>
    %65 = vector.extract_strided_slice %54 {offsets = [2, 0], sizes = [50, 32], strides = [1, 1]} : vector<52x32xf32> to vector<50x32xf32>
    %66 = tpu.concatenate %61, %62, %63, %64, %65 in 1 : vector<50x32xf32>, vector<50x32xf32>, vector<50x32xf32>, vector<50x32xf32>, vector<50x32xf32> -> vector<50x160xf32>
    %c0_27 = arith.constant 0 : index
    %c0_28 = arith.constant 0 : index
    %67 = vector.load %arg5[%c0_27, %c0_28] : memref<160x64xf32, #tpu.memory_space<vmem>>, vector<160x64xf32>
    %c0_29 = arith.constant 0 : index
    %c0_30 = arith.constant 0 : index
    %68 = vector.load %arg6[%c0_29, %c0_30] : memref<1x64xf32, #tpu.memory_space<vmem>>, vector<1x64xf32>
    %c0_31 = arith.constant 0 : index
    %c0_32 = arith.constant 0 : index
    %69 = vector.load %arg7[%c0_31, %c0_32] : memref<1x64xf32, #tpu.memory_space<vmem>>, vector<1x64xf32>
    %cst_33 = arith.constant dense<0.000000e+00> : vector<50x64xf32>
    %70 = tpu.matmul %60, %67, %cst_33 {dimension_numbers = #tpu.dot_dimension_numbers<[1], [0], [0], [1], [0, 0, 1, 1], [], []>} : vector<50x160xf32>, vector<160x64xf32>, vector<50x64xf32> -> vector<50x64xf32>
    %71 = vector.broadcast %68 : vector<1x64xf32> to vector<50x64xf32>
    %72 = arith.mulf %70, %71 : vector<50x64xf32>
    %73 = vector.broadcast %69 : vector<1x64xf32> to vector<50x64xf32>
    %74 = arith.addf %72, %73 : vector<50x64xf32>
    %cst_34 = arith.constant 0.000000e+00 : f32
    %75 = vector.broadcast %cst_34 : f32 to vector<50x64xf32>
    %76 = arith.maximumf %74, %75 : vector<50x64xf32>
    %cst_35 = arith.constant dense<0.000000e+00> : vector<50x64xf32>
    %77 = tpu.matmul %66, %67, %cst_35 {dimension_numbers = #tpu.dot_dimension_numbers<[1], [0], [0], [1], [0, 0, 1, 1], [], []>} : vector<50x160xf32>, vector<160x64xf32>, vector<50x64xf32> -> vector<50x64xf32>
    %78 = vector.broadcast %68 : vector<1x64xf32> to vector<50x64xf32>
    %79 = arith.mulf %77, %78 : vector<50x64xf32>
    %80 = vector.broadcast %69 : vector<1x64xf32> to vector<50x64xf32>
    %81 = arith.addf %79, %80 : vector<50x64xf32>
    %cst_36 = arith.constant 0.000000e+00 : f32
    %82 = vector.broadcast %cst_36 : f32 to vector<50x64xf32>
    %83 = arith.maximumf %81, %82 : vector<50x64xf32>
    %84 = arith.maximumf %76, %83 : vector<50x64xf32>
    %c0_37 = arith.constant 0 : index
    %c0_38 = arith.constant 0 : index
    %c0_39 = arith.constant 0 : index
    %85 = vector.load %arg8[%c0_37, %c0_38, %c0_39] : memref<1x50x64xf32, #tpu.memory_space<vmem>>, vector<1x50x64xf32>
    %86 = vector.shape_cast %85 : vector<1x50x64xf32> to vector<50x64xf32>
    %87 = vector.shape_cast %84 : vector<50x64xf32> to vector<1x50x64xf32>
    tpu.vector_store %arg8[%c0_37, %c0_38, %c0_39], %87 {strides = array<i32>} : memref<1x50x64xf32, #tpu.memory_space<vmem>>, vector<1x50x64xf32>,
    return
  }
  func.func @transform_0(%arg0: i32) -> (i32, i32, i32, i32) {
    %c0_i32 = arith.constant 0 : i32
    %c0_i32_0 = arith.constant 0 : i32
    %c0_i32_1 = arith.constant 0 : i32
    %c0_i32_2 = arith.constant 0 : i32
    return %arg0, %c0_i32, %c0_i32_0, %c0_i32_1 : i32, i32, i32, i32
  }
  func.func @transform_1(%arg0: i32) -> (i32, i32) {
    %c0_i32 = arith.constant 0 : i32
    %c0_i32_0 = arith.constant 0 : i32
    %c0_i32_1 = arith.constant 0 : i32
    return %c0_i32, %c0_i32_0 : i32, i32
  }
  func.func @transform_2(%arg0: i32) -> (i32, i32) {
    %c0_i32 = arith.constant 0 : i32
    %c0_i32_0 = arith.constant 0 : i32
    %c0_i32_1 = arith.constant 0 : i32
    return %c0_i32, %c0_i32_0 : i32, i32
  }
  func.func @transform_3(%arg0: i32) -> (i32, i32) {
    %c0_i32 = arith.constant 0 : i32
    %c0_i32_0 = arith.constant 0 : i32
    %c0_i32_1 = arith.constant 0 : i32
    return %c0_i32, %c0_i32_0 : i32, i32
  }
  func.func @transform_4(%arg0: i32) -> (i32, i32) {
    %c0_i32 = arith.constant 0 : i32
    %c0_i32_0 = arith.constant 0 : i32
    %c0_i32_1 = arith.constant 0 : i32
    return %c0_i32, %c0_i32_0 : i32, i32
  }
  func.func @transform_5(%arg0: i32) -> (i32, i32) {
    %c0_i32 = arith.constant 0 : i32
    %c0_i32_0 = arith.constant 0 : i32
    %c0_i32_1 = arith.constant 0 : i32
    return %c0_i32, %c0_i32_0 : i32, i32
  }
  func.func @transform_6(%arg0: i32) -> (i32, i32) {
    %c0_i32 = arith.constant 0 : i32
    %c0_i32_0 = arith.constant 0 : i32
    %c0_i32_1 = arith.constant 0 : i32
    return %c0_i32, %c0_i32_0 : i32, i32
  }
  func.func @transform_7(%arg0: i32) -> (i32, i32, i32) {
    %c0_i32 = arith.constant 0 : i32
    %c0_i32_0 = arith.constant 0 : i32
    %c0_i32_1 = arith.constant 0 : i32
    return %arg0, %c0_i32, %c0_i32_0 : i32, i32, i32
  }
}

module attributes {stable_mosaic.version = 11 : i64} {
  func.func @tail_kernel(%arg0: memref<2x3200xf32, #tpu.memory_space<vmem>>, %arg1: memref<3200x128xf32, #tpu.memory_space<vmem>>, %arg2: memref<1x128xf32, #tpu.memory_space<vmem>>, %arg3: memref<128x128xf32, #tpu.memory_space<vmem>>, %arg4: memref<1x128xf32, #tpu.memory_space<vmem>>, %arg5: memref<1x128xf32, #tpu.memory_space<vmem>>, %arg6: memref<128x128xf32, #tpu.memory_space<vmem>>, %arg7: memref<1x128xf32, #tpu.memory_space<vmem>>, %arg8: memref<1x128xf32, #tpu.memory_space<vmem>>, %arg9: memref<128x128xf32, #tpu.memory_space<vmem>>, %arg10: memref<1x128xf32, #tpu.memory_space<vmem>>, %arg11: memref<1x128xf32, #tpu.memory_space<vmem>>, %arg12: memref<128x128xf32, #tpu.memory_space<vmem>>, %arg13: memref<1x128xf32, #tpu.memory_space<vmem>>, %arg14: memref<1x128xf32, #tpu.memory_space<vmem>>, %arg15: memref<128x16xf32, #tpu.memory_space<vmem>>, %arg16: memref<1x16xf32, #tpu.memory_space<vmem>>, %arg17: memref<16x128xf32, #tpu.memory_space<vmem>>, %arg18: memref<1x128xf32, #tpu.memory_space<vmem>>, %arg19: memref<128x64xf32, #tpu.memory_space<vmem>>, %arg20: memref<1x64xf32, #tpu.memory_space<vmem>>, %arg21: memref<1x64xf32, #tpu.memory_space<vmem>>, %arg22: memref<1x64xf32, #tpu.memory_space<vmem>>, %arg23: memref<1x1xf32, #tpu.memory_space<vmem>>, %arg24: memref<2x1xf32, #tpu.memory_space<vmem>>) attributes {dimension_semantics = [], scalar_prefetch = 0 : i64, scratch_operands = 0 : i64, tpu.core_type = #tpu.core_type<tc>} {
    %c0 = arith.constant 0 : index
    %c0_0 = arith.constant 0 : index
    %0 = vector.load %arg0[%c0, %c0_0] : memref<2x3200xf32, #tpu.memory_space<vmem>>, vector<2x3200xf32>
    %c0_1 = arith.constant 0 : index
    %c0_2 = arith.constant 0 : index
    %1 = vector.load %arg1[%c0_1, %c0_2] : memref<3200x128xf32, #tpu.memory_space<vmem>>, vector<3200x128xf32>
    %cst = arith.constant dense<0.000000e+00> : vector<2x128xf32>
    %2 = tpu.matmul %0, %1, %cst {dimension_numbers = #tpu.dot_dimension_numbers<[1], [0], [0], [1], [0, 0, 1, 1], [], []>} : vector<2x3200xf32>, vector<3200x128xf32>, vector<2x128xf32> -> vector<2x128xf32>
    %c0_3 = arith.constant 0 : index
    %c0_4 = arith.constant 0 : index
    %3 = vector.load %arg2[%c0_3, %c0_4] : memref<1x128xf32, #tpu.memory_space<vmem>>, vector<1x128xf32>
    %4 = vector.broadcast %3 : vector<1x128xf32> to vector<2x128xf32>
    %5 = arith.addf %2, %4 : vector<2x128xf32>
    %cst_5 = arith.constant 0.000000e+00 : f32
    %6 = vector.broadcast %cst_5 : f32 to vector<2x128xf32>
    %7 = arith.maximumf %5, %6 : vector<2x128xf32>
    %c0_6 = arith.constant 0 : index
    %c0_7 = arith.constant 0 : index
    %8 = vector.load %arg3[%c0_6, %c0_7] : memref<128x128xf32, #tpu.memory_space<vmem>>, vector<128x128xf32>
    %cst_8 = arith.constant dense<0.000000e+00> : vector<2x128xf32>
    %9 = tpu.matmul %7, %8, %cst_8 {dimension_numbers = #tpu.dot_dimension_numbers<[1], [0], [0], [1], [0, 0, 1, 1], [], []>} : vector<2x128xf32>, vector<128x128xf32>, vector<2x128xf32> -> vector<2x128xf32>
    %c0_9 = arith.constant 0 : index
    %c0_10 = arith.constant 0 : index
    %10 = vector.load %arg4[%c0_9, %c0_10] : memref<1x128xf32, #tpu.memory_space<vmem>>, vector<1x128xf32>
    %11 = vector.broadcast %10 : vector<1x128xf32> to vector<2x128xf32>
    %12 = arith.mulf %9, %11 : vector<2x128xf32>
    %c0_11 = arith.constant 0 : index
    %c0_12 = arith.constant 0 : index
    %13 = vector.load %arg5[%c0_11, %c0_12] : memref<1x128xf32, #tpu.memory_space<vmem>>, vector<1x128xf32>
    %14 = vector.broadcast %13 : vector<1x128xf32> to vector<2x128xf32>
    %15 = arith.addf %12, %14 : vector<2x128xf32>
    %cst_13 = arith.constant 0.000000e+00 : f32
    %16 = vector.broadcast %cst_13 : f32 to vector<2x128xf32>
    %17 = arith.maximumf %15, %16 : vector<2x128xf32>
    %c0_14 = arith.constant 0 : index
    %c0_15 = arith.constant 0 : index
    %18 = vector.load %arg6[%c0_14, %c0_15] : memref<128x128xf32, #tpu.memory_space<vmem>>, vector<128x128xf32>
    %cst_16 = arith.constant dense<0.000000e+00> : vector<2x128xf32>
    %19 = tpu.matmul %17, %18, %cst_16 {dimension_numbers = #tpu.dot_dimension_numbers<[1], [0], [0], [1], [0, 0, 1, 1], [], []>} : vector<2x128xf32>, vector<128x128xf32>, vector<2x128xf32> -> vector<2x128xf32>
    %c0_17 = arith.constant 0 : index
    %c0_18 = arith.constant 0 : index
    %20 = vector.load %arg7[%c0_17, %c0_18] : memref<1x128xf32, #tpu.memory_space<vmem>>, vector<1x128xf32>
    %21 = vector.broadcast %20 : vector<1x128xf32> to vector<2x128xf32>
    %22 = arith.mulf %19, %21 : vector<2x128xf32>
    %c0_19 = arith.constant 0 : index
    %c0_20 = arith.constant 0 : index
    %23 = vector.load %arg8[%c0_19, %c0_20] : memref<1x128xf32, #tpu.memory_space<vmem>>, vector<1x128xf32>
    %24 = vector.broadcast %23 : vector<1x128xf32> to vector<2x128xf32>
    %25 = arith.addf %22, %24 : vector<2x128xf32>
    %26 = arith.addf %25, %7 : vector<2x128xf32>
    %cst_21 = arith.constant 0.000000e+00 : f32
    %27 = vector.broadcast %cst_21 : f32 to vector<2x128xf32>
    %28 = arith.maximumf %26, %27 : vector<2x128xf32>
    %c0_22 = arith.constant 0 : index
    %c0_23 = arith.constant 0 : index
    %29 = vector.load %arg9[%c0_22, %c0_23] : memref<128x128xf32, #tpu.memory_space<vmem>>, vector<128x128xf32>
    %cst_24 = arith.constant dense<0.000000e+00> : vector<2x128xf32>
    %30 = tpu.matmul %28, %29, %cst_24 {dimension_numbers = #tpu.dot_dimension_numbers<[1], [0], [0], [1], [0, 0, 1, 1], [], []>} : vector<2x128xf32>, vector<128x128xf32>, vector<2x128xf32> -> vector<2x128xf32>
    %c0_25 = arith.constant 0 : index
    %c0_26 = arith.constant 0 : index
    %31 = vector.load %arg10[%c0_25, %c0_26] : memref<1x128xf32, #tpu.memory_space<vmem>>, vector<1x128xf32>
    %32 = vector.broadcast %31 : vector<1x128xf32> to vector<2x128xf32>
    %33 = arith.mulf %30, %32 : vector<2x128xf32>
    %c0_27 = arith.constant 0 : index
    %c0_28 = arith.constant 0 : index
    %34 = vector.load %arg11[%c0_27, %c0_28] : memref<1x128xf32, #tpu.memory_space<vmem>>, vector<1x128xf32>
    %35 = vector.broadcast %34 : vector<1x128xf32> to vector<2x128xf32>
    %36 = arith.addf %33, %35 : vector<2x128xf32>
    %cst_29 = arith.constant 0.000000e+00 : f32
    %37 = vector.broadcast %cst_29 : f32 to vector<2x128xf32>
    %38 = arith.maximumf %36, %37 : vector<2x128xf32>
    %c0_30 = arith.constant 0 : index
    %c0_31 = arith.constant 0 : index
    %39 = vector.load %arg12[%c0_30, %c0_31] : memref<128x128xf32, #tpu.memory_space<vmem>>, vector<128x128xf32>
    %cst_32 = arith.constant dense<0.000000e+00> : vector<2x128xf32>
    %40 = tpu.matmul %38, %39, %cst_32 {dimension_numbers = #tpu.dot_dimension_numbers<[1], [0], [0], [1], [0, 0, 1, 1], [], []>} : vector<2x128xf32>, vector<128x128xf32>, vector<2x128xf32> -> vector<2x128xf32>
    %c0_33 = arith.constant 0 : index
    %c0_34 = arith.constant 0 : index
    %41 = vector.load %arg13[%c0_33, %c0_34] : memref<1x128xf32, #tpu.memory_space<vmem>>, vector<1x128xf32>
    %42 = vector.broadcast %41 : vector<1x128xf32> to vector<2x128xf32>
    %43 = arith.mulf %40, %42 : vector<2x128xf32>
    %c0_35 = arith.constant 0 : index
    %c0_36 = arith.constant 0 : index
    %44 = vector.load %arg14[%c0_35, %c0_36] : memref<1x128xf32, #tpu.memory_space<vmem>>, vector<1x128xf32>
    %45 = vector.broadcast %44 : vector<1x128xf32> to vector<2x128xf32>
    %46 = arith.addf %43, %45 : vector<2x128xf32>
    %47 = arith.addf %46, %28 : vector<2x128xf32>
    %cst_37 = arith.constant 0.000000e+00 : f32
    %48 = vector.broadcast %cst_37 : f32 to vector<2x128xf32>
    %49 = arith.maximumf %47, %48 : vector<2x128xf32>
    %c0_38 = arith.constant 0 : index
    %c0_39 = arith.constant 0 : index
    %50 = vector.load %arg15[%c0_38, %c0_39] : memref<128x16xf32, #tpu.memory_space<vmem>>, vector<128x16xf32>
    %cst_40 = arith.constant dense<0.000000e+00> : vector<2x16xf32>
    %51 = tpu.matmul %49, %50, %cst_40 {dimension_numbers = #tpu.dot_dimension_numbers<[1], [0], [0], [1], [0, 0, 1, 1], [], []>} : vector<2x128xf32>, vector<128x16xf32>, vector<2x16xf32> -> vector<2x16xf32>
    %c0_41 = arith.constant 0 : index
    %c0_42 = arith.constant 0 : index
    %52 = vector.load %arg16[%c0_41, %c0_42] : memref<1x16xf32, #tpu.memory_space<vmem>>, vector<1x16xf32>
    %53 = vector.broadcast %52 : vector<1x16xf32> to vector<2x16xf32>
    %54 = arith.addf %51, %53 : vector<2x16xf32>
    %cst_43 = arith.constant 0.000000e+00 : f32
    %55 = vector.broadcast %cst_43 : f32 to vector<2x16xf32>
    %56 = arith.maximumf %54, %55 : vector<2x16xf32>
    %c0_44 = arith.constant 0 : index
    %c0_45 = arith.constant 0 : index
    %57 = vector.load %arg17[%c0_44, %c0_45] : memref<16x128xf32, #tpu.memory_space<vmem>>, vector<16x128xf32>
    %cst_46 = arith.constant dense<0.000000e+00> : vector<2x128xf32>
    %58 = tpu.matmul %56, %57, %cst_46 {dimension_numbers = #tpu.dot_dimension_numbers<[1], [0], [0], [1], [0, 0, 1, 1], [], []>} : vector<2x16xf32>, vector<16x128xf32>, vector<2x128xf32> -> vector<2x128xf32>
    %c0_47 = arith.constant 0 : index
    %c0_48 = arith.constant 0 : index
    %59 = vector.load %arg18[%c0_47, %c0_48] : memref<1x128xf32, #tpu.memory_space<vmem>>, vector<1x128xf32>
    %60 = vector.broadcast %59 : vector<1x128xf32> to vector<2x128xf32>
    %61 = arith.addf %58, %60 : vector<2x128xf32>
    %62 = arith.negf %61 : vector<2x128xf32>
    %63 = math.exp %62 : vector<2x128xf32>
    %cst_49 = arith.constant 1.000000e+00 : f32
    %64 = vector.broadcast %cst_49 : f32 to vector<2x128xf32>
    %65 = arith.addf %64, %63 : vector<2x128xf32>
    %66 = arith.divf %64, %65 : vector<2x128xf32>
    %67 = arith.mulf %49, %66 : vector<2x128xf32>
    %c0_50 = arith.constant 0 : index
    %c0_51 = arith.constant 0 : index
    %68 = vector.load %arg19[%c0_50, %c0_51] : memref<128x64xf32, #tpu.memory_space<vmem>>, vector<128x64xf32>
    %cst_52 = arith.constant dense<0.000000e+00> : vector<2x64xf32>
    %69 = tpu.matmul %67, %68, %cst_52 {dimension_numbers = #tpu.dot_dimension_numbers<[1], [0], [0], [1], [0, 0, 1, 1], [], []>} : vector<2x128xf32>, vector<128x64xf32>, vector<2x64xf32> -> vector<2x64xf32>
    %c0_53 = arith.constant 0 : index
    %c0_54 = arith.constant 0 : index
    %70 = vector.load %arg20[%c0_53, %c0_54] : memref<1x64xf32, #tpu.memory_space<vmem>>, vector<1x64xf32>
    %71 = vector.broadcast %70 : vector<1x64xf32> to vector<2x64xf32>
    %72 = arith.mulf %69, %71 : vector<2x64xf32>
    %c0_55 = arith.constant 0 : index
    %c0_56 = arith.constant 0 : index
    %73 = vector.load %arg21[%c0_55, %c0_56] : memref<1x64xf32, #tpu.memory_space<vmem>>, vector<1x64xf32>
    %74 = vector.broadcast %73 : vector<1x64xf32> to vector<2x64xf32>
    %75 = arith.addf %72, %74 : vector<2x64xf32>
    %cst_57 = arith.constant 0.000000e+00 : f32
    %76 = vector.broadcast %cst_57 : f32 to vector<2x64xf32>
    %77 = arith.maximumf %75, %76 : vector<2x64xf32>
    %c0_58 = arith.constant 0 : index
    %c0_59 = arith.constant 0 : index
    %78 = vector.load %arg22[%c0_58, %c0_59] : memref<1x64xf32, #tpu.memory_space<vmem>>, vector<1x64xf32>
    %79 = vector.broadcast %78 : vector<1x64xf32> to vector<2x64xf32>
    %80 = arith.mulf %77, %79 : vector<2x64xf32>
    %cst_60 = arith.constant dense<0.000000e+00> : vector<2xf32>
    %81 = vector.multi_reduction <add>, %80, %cst_60 [1] : vector<2x64xf32> to vector<2xf32>
    %82 = vector.shape_cast %81 : vector<2xf32> to vector<2x1xf32>
    %c0_61 = arith.constant 0 : index
    %c0_62 = arith.constant 0 : index
    %83 = vector.load %arg23[%c0_61, %c0_62] : memref<1x1xf32, #tpu.memory_space<vmem>>, vector<1x1xf32>
    %84 = vector.broadcast %83 : vector<1x1xf32> to vector<2x1xf32>
    %85 = arith.addf %82, %84 : vector<2x1xf32>
    %86 = arith.negf %85 : vector<2x1xf32>
    %87 = math.exp %86 : vector<2x1xf32>
    %cst_63 = arith.constant 1.000000e+00 : f32
    %88 = vector.broadcast %cst_63 : f32 to vector<2x1xf32>
    %89 = arith.addf %88, %87 : vector<2x1xf32>
    %90 = arith.divf %88, %89 : vector<2x1xf32>
    %c0_64 = arith.constant 0 : index
    %c0_65 = arith.constant 0 : index
    %91 = vector.load %arg24[%c0_64, %c0_65] : memref<2x1xf32, #tpu.memory_space<vmem>>, vector<2x1xf32>
    tpu.vector_store %arg24[%c0_64, %c0_65], %90 {strides = array<i32>} : memref<2x1xf32, #tpu.memory_space<vmem>>, vector<2x1xf32>,
    return
  }
}

</mosaic_0001>

<llo_original>
// kernel: improved_dnn_forward.2
$region0: #{improved_dnn_forward.2}
  #allocation0 [shape = 'u32[]', space=smem, size = 0x4, offset = 0x4, fixed_abs, tag = 'smem constant byte address 0x4 - core index']
  #allocation1 [shape = 'u32[72,128]{1,0:T(1,128)}', space=vmem, size = 0x9000, scoped, tag = 'internal scratch']
  %s0 = inlined_call_operand.vmem [shape: f32[2,4,52,65], index: 0, kind: input, shape index: {}]
  %s1 = inlined_call_operand.vmem [shape: f32[65,32], index: 1, kind: input, shape index: {}]
  %s2 = inlined_call_operand.vmem [shape: f32[1,32], index: 2, kind: input, shape index: {}]
  %s3 = inlined_call_operand.vmem [shape: f32[1,32], index: 3, kind: input, shape index: {}]
  %s4 = inlined_call_operand.vmem [shape: f32[160,64], index: 4, kind: input, shape index: {}]
  %s5 = inlined_call_operand.vmem [shape: f32[1,64], index: 5, kind: input, shape index: {}]
  %s6 = inlined_call_operand.vmem [shape: f32[1,64], index: 6, kind: input, shape index: {}]
  %s7 = inlined_call_operand.vmem [shape: f32[2,50,64], index: 7, kind: output, shape index: {}]
  %s8 = sld [smem:[#allocation0]]
  $region61: #{improved_dnn_forward.2} parent=0
    _
  %s10 = ssub.s32 1, %s8
  %s11 = scalar_select 0, %s10, %s8
  loop: start=0, step=1, limit=4
  $region2: #{improved_dnn_forward.2} parent=0 // loop_pre_header
    _
  $region3: #{improved_dnn_forward.2} parent=0 // loop_header
    %s13 = sphi 0, %s17
    %p14 = scmp.ge.s32.totalorder %s13, 4
    %s23 = sphi 0, %s25
    %s26 = sphi 0, %s23
    %s27 = sphi 0, %s26
    %s43 = sphi 0, %s27
    %s47 = sphi 0, %s47
    %s49 = sphi 0, %s47
    %s50 = sphi 0, %s49
    %s64 = sphi 0, %s50
    %s68 = sphi 0, %s68
    %s70 = sphi 0, %s68
    %s71 = sphi 0, %s70
    %s85 = sphi 0, %s71
    %s89 = sphi 0, %s89
    %s91 = sphi 0, %s89
    %s92 = sphi 0, %s91
    %s106 = sphi 0, %s92
    %s110 = sphi 0, %s110
    %s112 = sphi 0, %s110
    %s113 = sphi 0, %s112
    %s127 = sphi 0, %s113
    %s131 = sphi 0, %s131
    %s133 = sphi 0, %s131
    %s134 = sphi 0, %s133
    %s148 = sphi 0, %s134
    %s152 = sphi 0, %s152
    %s154 = sphi 0, %s152
    %s155 = sphi 0, %s154
    %s169 = sphi 0, %s155
    %s175 = sphi 0, %s177
    %s178 = sphi 0, %s175
    %s179 = sphi 0, %s178
    %s195 = sphi 0, %s179
  $region4: #{improved_dnn_forward.2} parent=0 // loop_header_branch
    %16 = sbr.rel (%p14) target = $region8
  $region5: #{improved_dnn_forward.2} parent=0 // loop_body
    %s18 = ssub.s32 %s13, 1
    %s19 = ssub.s32 %s13, 2
    %s20 = sadd.s32 %s13, 1
    %s21 = ssub.s32 %s13, %s20
    %p22 = scmp.eq.s32.totalorder %s21, 0
    %s24 = sadd.s32 %s23, 1
    %s25 = scalar_select %p22, %s23, %s24
    %p28 = pneg %p22
    %p29 = scmp.eq.s32.totalorder %s13, 1
    %p30 = por %p28, %p29
    %p31 = scmp.ne.s32.totalorder %s23, %s26
    %p32 = scmp.eq.s32.totalorder %s13, 0
    %p33 = por %p31, %p32
    %p34 = scmp.ne.s32.totalorder %s23, %s26
    %p35 = scmp.eq.s32.totalorder %s18, 1
    %p36 = por %p34, %p35
    %p37 = scmp.ne.s32.totalorder %s26, %s27
    %p38 = scmp.eq.s32.totalorder %s18, 0
    %p39 = por %p37, %p38
    %p40 = scmp.ne.s32.totalorder %s26, %s27
    %p41 = scmp.eq.s32.totalorder %s19, 1
    %p42 = por %p40, %p41
    %p44 = scmp.ne.s32.totalorder %s27, %s43
    %p45 = scmp.eq.s32.totalorder %s19, 0
    %p46 = por %p44, %p45
    %s48 = sadd.s32 %s47, 1
    %p51 = scmp.eq.s32.totalorder %s13, 1
    %p52 = scmp.ne.s32.totalorder %s47, %s49
    %p53 = scmp.eq.s32.totalorder %s13, 0
    %p54 = por %p52, %p53
    %p55 = scmp.ne.s32.totalorder %s47, %s49
    %p56 = scmp.eq.s32.totalorder %s18, 1
    %p57 = por %p55, %p56
    %p58 = scmp.ne.s32.totalorder %s49, %s50
    %p59 = scmp.eq.s32.totalorder %s18, 0
    %p60 = por %p58, %p59
    %p61 = scmp.ne.s32.totalorder %s49, %s50
    %p62 = scmp.eq.s32.totalorder %s19, 1
    %p63 = por %p61, %p62
    %p65 = scmp.ne.s32.totalorder %s50, %s64
    %p66 = scmp.eq.s32.totalorder %s19, 0
    %p67 = por %p65, %p66
    %s69 = sadd.s32 %s68, 1
    %p72 = scmp.eq.s32.totalorder %s13, 1
    %p73 = scmp.ne.s32.totalorder %s68, %s70
    %p74 = scmp.eq.s32.totalorder %s13, 0
    %p75 = por %p73, %p74
    %p76 = scmp.ne.s32.totalorder %s68, %s70
    %p77 = scmp.eq.s32.totalorder %s18, 1
    %p78 = por %p76, %p77
    %p79 = scmp.ne.s32.totalorder %s70, %s71
    %p80 = scmp.eq.s32.totalorder %s18, 0
    %p81 = por %p79, %p80
    %p82 = scmp.ne.s32.totalorder %s70, %s71
    %p83 = scmp.eq.s32.totalorder %s19, 1
    %p84 = por %p82, %p83
    %p86 = scmp.ne.s32.totalorder %s71, %s85
    %p87 = scmp.eq.s32.totalorder %s19, 0
    %p88 = por %p86, %p87
    %s90 = sadd.s32 %s89, 1
    %p93 = scmp.eq.s32.totalorder %s13, 1
    %p94 = scmp.ne.s32.totalorder %s89, %s91
    %p95 = scmp.eq.s32.totalorder %s13, 0
    %p96 = por %p94, %p95
    %p97 = scmp.ne.s32.totalorder %s89, %s91
    %p98 = scmp.eq.s32.totalorder %s18, 1
    %p99 = por %p97, %p98
    %p100 = scmp.ne.s32.totalorder %s91, %s92
    %p101 = scmp.eq.s32.totalorder %s18, 0
    %p102 = por %p100, %p101
    %p103 = scmp.ne.s32.totalorder %s91, %s92
    %p104 = scmp.eq.s32.totalorder %s19, 1
    %p105 = por %p103, %p104
    %p107 = scmp.ne.s32.totalorder %s92, %s106
    %p108 = scmp.eq.s32.totalorder %s19, 0
    %p109 = por %p107, %p108
    %s111 = sadd.s32 %s110, 1
    %p114 = scmp.eq.s32.totalorder %s13, 1
    %p115 = scmp.ne.s32.totalorder %s110, %s112
    %p116 = scmp.eq.s32.totalorder %s13, 0
    %p117 = por %p115, %p116
    %p118 = scmp.ne.s32.totalorder %s110, %s112
    %p119 = scmp.eq.s32.totalorder %s18, 1
    %p120 = por %p118, %p119
    %p121 = scmp.ne.s32.totalorder %s112, %s113
    %p122 = scmp.eq.s32.totalorder %s18, 0
    %p123 = por %p121, %p122
    %p124 = scmp.ne.s32.totalorder %s112, %s113
    %p125 = scmp.eq.s32.totalorder %s19, 1
    %p126 = por %p124, %p125
    %p128 = scmp.ne.s32.totalorder %s113, %s127
    %p129 = scmp.eq.s32.totalorder %s19, 0
    %p130 = por %p128, %p129
    %s132 = sadd.s32 %s131, 1
    %p135 = scmp.eq.s32.totalorder %s13, 1
    %p136 = scmp.ne.s32.totalorder %s131, %s133
    %p137 = scmp.eq.s32.totalorder %s13, 0
    %p138 = por %p136, %p137
    %p139 = scmp.ne.s32.totalorder %s131, %s133
    %p140 = scmp.eq.s32.totalorder %s18, 1
    %p141 = por %p139, %p140
    %p142 = scmp.ne.s32.totalorder %s133, %s134
    %p143 = scmp.eq.s32.totalorder %s18, 0
    %p144 = por %p142, %p143
    %p145 = scmp.ne.s32.totalorder %s133, %s134
    %p146 = scmp.eq.s32.totalorder %s19, 1
    %p147 = por %p145, %p146
    %p149 = scmp.ne.s32.totalorder %s134, %s148
    %p150 = scmp.eq.s32.totalorder %s19, 0
    %p151 = por %p149, %p150
    %s153 = sadd.s32 %s152, 1
    %p156 = scmp.eq.s32.totalorder %s13, 1
    %p157 = scmp.ne.s32.totalorder %s152, %s154
    %p158 = scmp.eq.s32.totalorder %s13, 0
    %p159 = por %p157, %p158
    %p160 = scmp.ne.s32.totalorder %s152, %s154
    %p161 = scmp.eq.s32.totalorder %s18, 1
    %p162 = por %p160, %p161
    %p163 = scmp.ne.s32.totalorder %s154, %s155
    %p164 = scmp.eq.s32.totalorder %s18, 0
    %p165 = por %p163, %p164
    %p166 = scmp.ne.s32.totalorder %s154, %s155
    %p167 = scmp.eq.s32.totalorder %s19, 1
    %p168 = por %p166, %p167
    %p170 = scmp.ne.s32.totalorder %s155, %s169
    %p171 = scmp.eq.s32.totalorder %s19, 0
    %p172 = por %p170, %p171
    %s173 = ssub.s32 %s13, %s20
    %p174 = scmp.eq.s32.totalorder %s173, 0
    %s176 = sadd.s32 %s175, 1
    %s177 = scalar_select %p174, %s175, %s176
    %p180 = pneg %p174
    %p181 = scmp.eq.s32.totalorder %s13, 1
    %p182 = por %p180, %p181
    %p183 = scmp.ne.s32.totalorder %s175, %s178
    %p184 = scmp.eq.s32.totalorder %s13, 0
    %p185 = por %p183, %p184
    %p186 = scmp.ne.s32.totalorder %s175, %s178
    %p187 = scmp.eq.s32.totalorder %s18, 1
    %p188 = por %p186, %p187
    %p189 = scmp.ne.s32.totalorder %s178, %s179
    %p190 = scmp.eq.s32.totalorder %s18, 0
    %p191 = por %p189, %p190
    %p192 = scmp.ne.s32.totalorder %s178, %s179
    %p193 = scmp.eq.s32.totalorder %s19, 1
    %p194 = por %p192, %p193
    %p196 = scmp.ne.s32.totalorder %s179, %s195
    %p197 = scmp.eq.s32.totalorder %s19, 0
    %p198 = por %p196, %p197
    %p199 = scmp.le.s32.totalorder 1, %s13
    %p200 = scmp.lt.s32.totalorder %s13, 3
    %p201 = pnand %p199, %p200
    %p202 = pneg %p201
    // Predicated region
    $region9: #{improved_dnn_forward.2} parent=5 // pred_check
      _
    $region10: #{improved_dnn_forward.2} parent=5 // pred_check_branch
      %204 = sbr.rel (%p201) target = $region12
    $region11: #{improved_dnn_forward.2} parent=5 // pred_region
      %s205 = ssub.s32 %s13, 1
      // Predicated region
      $region13: #{improved_dnn_forward.2} parent=11 // pred_check
        %p206 = pneg %p60
      $region14: #{improved_dnn_forward.2} parent=11 // pred_check_branch
        %208 = sbr.rel (%p206) target = $region16
      $region15: #{improved_dnn_forward.2} parent=11 // pred_region
        _
      $region16: #{improved_dnn_forward.2} parent=11 // pred_fallthru
        _
      // Predicated region
      $region17: #{improved_dnn_forward.2} parent=11 // pred_check
        %p209 = pneg %p81
      $region18: #{improved_dnn_forward.2} parent=11 // pred_check_branch
        %211 = sbr.rel (%p209) target = $region20
      $region19: #{improved_dnn_forward.2} parent=11 // pred_region
        _
      $region20: #{improved_dnn_forward.2} parent=11 // pred_fallthru
        _
      // Predicated region
      $region21: #{improved_dnn_forward.2} parent=11 // pred_check
        %p212 = pneg %p102
      $region22: #{improved_dnn_forward.2} parent=11 // pred_check_branch
        %214 = sbr.rel (%p212) target = $region24
      $region23: #{improved_dnn_forward.2} parent=11 // pred_region
        _
      $region24: #{improved_dnn_forward.2} parent=11 // pred_fallthru
        _
      // Predicated region
      $region25: #{improved_dnn_forward.2} parent=11 // pred_check
        %p215 = pneg %p123
      $region26: #{improved_dnn_forward.2} parent=11 // pred_check_branch
        %217 = sbr.rel (%p215) target = $region28
      $region27: #{improved_dnn_forward.2} parent=11 // pred_region
        _
      $region28: #{improved_dnn_forward.2} parent=11 // pred_fallthru
        _
      // Predicated region
      $region29: #{improved_dnn_forward.2} parent=11 // pred_check
        %p218 = pneg %p144
      $region30: #{improved_dnn_forward.2} parent=11 // pred_check_branch
        %220 = sbr.rel (%p218) target = $region32
      $region31: #{improved_dnn_forward.2} parent=11 // pred_region
        _
      $region32: #{improved_dnn_forward.2} parent=11 // pred_fallthru
        _
      // Predicated region
      $region33: #{improved_dnn_forward.2} parent=11 // pred_check
        %p221 = pneg %p165
      $region34: #{improved_dnn_forward.2} parent=11 // pred_check_branch
        %223 = sbr.rel (%p221) target = $region36
      $region35: #{improved_dnn_forward.2} parent=11 // pred_region
        _
      $region36: #{improved_dnn_forward.2} parent=11 // pred_fallthru
        _
    $region12: #{improved_dnn_forward.2} parent=5 // pred_fallthru
      _
    %p224 = scmp.lt.s32.totalorder %s13, 2
    // Predicated region
    $region37: #{improved_dnn_forward.2} parent=5 // pred_check
      %p225 = pneg %p224
    $region38: #{improved_dnn_forward.2} parent=5 // pred_check_branch
      %227 = sbr.rel (%p225) target = $region40
    $region39: #{improved_dnn_forward.2} parent=5 // pred_region
      // Predicated region
      $region41: #{improved_dnn_forward.2} parent=39 // pred_check
        %p228 = pneg %p33
      $region42: #{improved_dnn_forward.2} parent=39 // pred_check_branch
        %230 = sbr.rel (%p228) target = $region44
      $region43: #{improved_dnn_forward.2} parent=39 // pred_region
        %p231 = scmp.lt.s32.totalorder %s13, 1
        %s232 = scalar_select %p231, %s13, 1
        %s233 = smul.addr %s232, 28
        %s234 = smul.addr %s233, 8
        %s235 = scalar_lea.vmem %s0, %s234
      $region44: #{improved_dnn_forward.2} parent=39 // pred_fallthru
        _
    $region40: #{improved_dnn_forward.2} parent=5 // pred_fallthru
      _
    %p236 = scmp.le.s32.totalorder 1, %s13
    %p237 = scmp.lt.s32.totalorder %s13, 3
    %p238 = pnand %p236, %p237
    %p239 = pneg %p238
    // Predicated region
    $region45: #{improved_dnn_forward.2} parent=5 // pred_check
      _
    $region46: #{improved_dnn_forward.2} parent=5 // pred_check_branch
      %241 = sbr.rel (%p238) target = $region48
    $region47: #{improved_dnn_forward.2} parent=5 // pred_region
      %s242 = ssub.s32 %s13, 1
      %p243 = scmp.lt.s32.totalorder %s18, 1
      %s244 = scalar_select %p243, %s18, 1
      %s245 = smul.addr %s244, 28
      %s246 = smul.addr %s245, 8
      %s247 = scalar_lea.vmem %s0, %s246
      %p248 = pneg %p39
      %p249 = pneg %p36
      %p250 = pneg %p60
      %p251 = pneg %p57
      %p252 = pneg %p81
      %p253 = pneg %p78
      %p254 = pneg %p102
      %p255 = pneg %p99
      %p256 = pneg %p123
      %p257 = pneg %p120
      %p258 = pneg %p144
      %p259 = pneg %p141
      %p260 = pneg %p165
      %p261 = pneg %p162
      %p262 = pneg %p191
      %p263 = pneg %p188
      %p264 = scmp.lt.s32.totalorder %s18, 1
      %s265 = scalar_select %p264, %s18, 1
      %s266 = smul.addr %s265, 7
      %s267 = smul.addr %s266, 8
      %s268 = scalar_lea.vmem %s7, %s267
      %p269 = scmp.lt.s32.totalorder %s18, 1
      %s270 = scalar_select %p269, %s18, 1
      %s271 = smul.addr %s270, 28
      %s272 = smul.addr %s271, 8
      %s273 = scalar_lea.vmem %s0, %s272
      %p274 = scmp.lt.s32.totalorder %s18, 1
      %s275 = scalar_select %p274, %s18, 1
      %s276 = smul.addr %s275, 7
      %s277 = smul.addr %s276, 8
      %s278 = scalar_lea.vmem %s7, %s277
      %v279 = vld [vmem:[%s1] sm:$0xff]
      %v280 = vld [vmem:[%s1 + $0x8] sm:$0xff]
      %v281 = vld [vmem:[%s1 + $0x10] sm:$0xff]
      %v282 = vld [vmem:[%s1 + $0x18] sm:$0xff]
      %v283 = vld [vmem:[%s1 + $0x20] sm:$0xff]
      %v284 = vld [vmem:[%s1 + $0x28] sm:$0xff]
      %v285 = vld [vmem:[%s1 + $0x30] sm:$0xff]
      %v286 = vld [vmem:[%s1 + $0x38] sm:$0xff]
      %v287 = vld [vmem:[%s1 + $0x40] sm:$0x1]
      %v288 = vld [vmem:[%s2] sm:$0x1]
      %v289 = vld [vmem:[%s3] sm:$0x1]
      %v290 = vld [vmem:[%s273] sm:$0xff]
      %v291 = vld [vmem:[%s273 + $0x8] sm:$0xff]
      %v292 = vld [vmem:[%s273 + $0x10] sm:$0xff]
      %v293 = vld [vmem:[%s273 + $0x18] sm:$0xff]
      %v294 = vld [vmem:[%s273 + $0x20] sm:$0xff]
      %v295 = vld [vmem:[%s273 + $0x28] sm:$0xff]
      %v296 = vld [vmem:[%s273 + $0x30] sm:$0xf]
      %vm297 = vcmask 531456
      %v299 = vsel %vm297, %v290, 0
      %v302 = vsel %vm297, %v291, 0
      %v305 = vsel %vm297, %v292, 0
      %v308 = vsel %vm297, %v293, 0
      %v311 = vsel %vm297, %v294, 0
      %v314 = vsel %vm297, %v295, 0
      %v317 = vsel %vm297, %v296, 0
      %vm319 = vcmask 1040384
      %v321 = vsel %vm319, %v287, 0
      %323 = vmatpush.msra.mxu0 0.0
      %324 = vmatpush.msra.mxu0 0.0
      %325 = vmatpush.msra.mxu0 0.0
      %326 = vmatpush.msra.mxu0 0.0
      %327 = vmatpush.msra.mxu0 0.0
      %328 = vmatpush.msra.mxu0 0.0
      %329 = vmatpush.msra.mxu0 0.0
      %330 = vmatpush.msra.mxu0 %v321
      %331 = vmatpush.msra.mxu0 %v286
      %332 = vmatpush.msra.mxu0 %v285
      %333 = vmatpush.msra.mxu0 %v284
      %334 = vmatpush.msra.mxu0 %v283
      %335 = vmatpush.msra.mxu0 %v282
      %336 = vmatpush.msra.mxu0 %v281
      %337 = vmatpush.msra.mxu0 %v280
      %338 = vmatpush.msra.mxu0 %v279
      %339 = vmatmul.f32.gmra.mxu0 %v299
      %v340 = vpop.f32.mrf.mxu0
      %v341 = vadd.f32 0.0, %v340
      %342 = vmatmul.f32.gmra.mxu0 %v302
      %v343 = vpop.f32.mrf.mxu0
      %v344 = vadd.f32 0.0, %v343
      %345 = vmatmul.f32.gmra.mxu0 %v305
      %v346 = vpop.f32.mrf.mxu0
      %v347 = vadd.f32 0.0, %v346
      %348 = vmatmul.f32.gmra.mxu0 %v308
      %v349 = vpop.f32.mrf.mxu0
      %v350 = vadd.f32 0.0, %v349
      %351 = vmatmul.f32.gmra.mxu0 %v311
      %v352 = vpop.f32.mrf.mxu0
      %v353 = vadd.f32 0.0, %v352
      %354 = vmatmul.f32.gmra.mxu0 %v314
      %v355 = vpop.f32.mrf.mxu0
      %v356 = vadd.f32 0.0, %v355
      %357 = vmatmul.f32.gmra.mxu0 %v317
      %v358 = vpop.f32.mrf.mxu0
      %v359 = vadd.f32 0.0, %v358
      %360 = vdwg.mxu0
      %v362 = vperm.slane %v288, 0
      %v364 = vmul.f32 %v341, %v362
      %v365 = vmul.f32 %v344, %v362
      %v366 = vmul.f32 %v347, %v362
      %v367 = vmul.f32 %v350, %v362
      %v368 = vmul.f32 %v353, %v362
      %v369 = vmul.f32 %v356, %v362
      %v370 = vmul.f32 %v359, %v362
      %v372 = vperm.slane %v289, 0
      %v374 = vadd.f32 %v364, %v372
      %v375 = vadd.f32 %v365, %v372
      %v376 = vadd.f32 %v366, %v372
      %v377 = vadd.f32 %v367, %v372
      %v378 = vadd.f32 %v368, %v372
      %v379 = vadd.f32 %v369, %v372
      %v380 = vadd.f32 %v370, %v372
      %v381 = vmax.f32 %v374, 0.0
      %v382 = vmax.f32 %v375, 0.0
      %v383 = vmax.f32 %v376, 0.0
      %v384 = vmax.f32 %v377, 0.0
      %v385 = vmax.f32 %v378, 0.0
      %v386 = vmax.f32 %v379, 0.0
      %v387 = vmax.f32 %v380, 0.0
      %s388 = scalar_lea.vmem %s273, 56
      %v389 = vld [vmem:[%s388] sm:$0xff]
      %v390 = vld [vmem:[%s388 + $0x8] sm:$0xff]
      %v391 = vld [vmem:[%s388 + $0x10] sm:$0xff]
      %v392 = vld [vmem:[%s388 + $0x18] sm:$0xff]
      %v393 = vld [vmem:[%s388 + $0x20] sm:$0xff]
      %v394 = vld [vmem:[%s388 + $0x28] sm:$0xff]
      %v395 = vld [vmem:[%s388 + $0x30] sm:$0xf]
      %v397 = vsel %vm297, %v389, 0
      %v400 = vsel %vm297, %v390, 0
      %v403 = vsel %vm297, %v391, 0
      %v406 = vsel %vm297, %v392, 0
      %v409 = vsel %vm297, %v393, 0
      %v412 = vsel %vm297, %v394, 0
      %v415 = vsel %vm297, %v395, 0
      %417 = vmatpush.msra.mxu0 0.0
      %418 = vmatpush.msra.mxu0 0.0
      %419 = vmatpush.msra.mxu0 0.0
      %420 = vmatpush.msra.mxu0 0.0
      %421 = vmatpush.msra.mxu0 0.0
      %422 = vmatpush.msra.mxu0 0.0
      %423 = vmatpush.msra.mxu0 0.0
      %424 = vmatpush.msra.mxu0 %v321
      %425 = vmatpush.msra.mxu0 %v286
      %426 = vmatpush.msra.mxu0 %v285
      %427 = vmatpush.msra.mxu0 %v284
      %428 = vmatpush.msra.mxu0 %v283
      %429 = vmatpush.msra.mxu0 %v282
      %430 = vmatpush.msra.mxu0 %v281
      %431 = vmatpush.msra.mxu0 %v280
      %432 = vmatpush.msra.mxu0 %v279
      %433 = vmatmul.f32.gmra.mxu0 %v397
      %v434 = vpop.f32.mrf.mxu0
      %v435 = vadd.f32 0.0, %v434
      %436 = vmatmul.f32.gmra.mxu0 %v400
      %v437 = vpop.f32.mrf.mxu0
      %v438 = vadd.f32 0.0, %v437
      %439 = vmatmul.f32.gmra.mxu0 %v403
      %v440 = vpop.f32.mrf.mxu0
      %v441 = vadd.f32 0.0, %v440
      %442 = vmatmul.f32.gmra.mxu0 %v406
      %v443 = vpop.f32.mrf.mxu0
      %v444 = vadd.f32 0.0, %v443
      %445 = vmatmul.f32.gmra.mxu0 %v409
      %v446 = vpop.f32.mrf.mxu0
      %v447 = vadd.f32 0.0, %v446
      %448 = vmatmul.f32.gmra.mxu0 %v412
      %v449 = vpop.f32.mrf.mxu0
      %v450 = vadd.f32 0.0, %v449
      %451 = vmatmul.f32.gmra.mxu0 %v415
      %v452 = vpop.f32.mrf.mxu0
      %v453 = vadd.f32 0.0, %v452
      %454 = vdwg.mxu0
      %v455 = vmul.f32 %v435, %v362
      %v456 = vmul.f32 %v438, %v362
      %v457 = vmul.f32 %v441, %v362
      %v458 = vmul.f32 %v444, %v362
      %v459 = vmul.f32 %v447, %v362
      %v460 = vmul.f32 %v450, %v362
      %v461 = vmul.f32 %v453, %v362
      %v462 = vadd.f32 %v455, %v372
      %v463 = vadd.f32 %v456, %v372
      %v464 = vadd.f32 %v457, %v372
      %v465 = vadd.f32 %v458, %v372
      %v466 = vadd.f32 %v459, %v372
      %v467 = vadd.f32 %v460, %v372
      %v468 = vadd.f32 %v461, %v372
      %v469 = vmax.f32 %v462, 0.0
      %v470 = vmax.f32 %v463, 0.0
      %v471 = vmax.f32 %v464, 0.0
      %v472 = vmax.f32 %v465, 0.0
      %v473 = vmax.f32 %v466, 0.0
      %v474 = vmax.f32 %v467, 0.0
      %v475 = vmax.f32 %v468, 0.0
      %s476 = scalar_lea.vmem %s273, 112
      %v477 = vld [vmem:[%s476] sm:$0xff]
      %v478 = vld [vmem:[%s476 + $0x8] sm:$0xff]
      %v479 = vld [vmem:[%s476 + $0x10] sm:$0xff]
      %v480 = vld [vmem:[%s476 + $0x18] sm:$0xff]
      %v481 = vld [vmem:[%s476 + $0x20] sm:$0xff]
      %v482 = vld [vmem:[%s476 + $0x28] sm:$0xff]
      %v483 = vld [vmem:[%s476 + $0x30] sm:$0xf]
      %v485 = vsel %vm297, %v477, 0
      %v488 = vsel %vm297, %v478, 0
      %v491 = vsel %vm297, %v479, 0
      %v494 = vsel %vm297, %v480, 0
      %v497 = vsel %vm297, %v481, 0
      %v500 = vsel %vm297, %v482, 0
      %v503 = vsel %vm297, %v483, 0
      %505 = vmatpush.msra.mxu0 0.0
      %506 = vmatpush.msra.mxu0 0.0
      %507 = vmatpush.msra.mxu0 0.0
      %508 = vmatpush.msra.mxu0 0.0
      %509 = vmatpush.msra.mxu0 0.0
      %510 = vmatpush.msra.mxu0 0.0
      %511 = vmatpush.msra.mxu0 0.0
      %512 = vmatpush.msra.mxu0 %v321
      %513 = vmatpush.msra.mxu0 %v286
      %514 = vmatpush.msra.mxu0 %v285
      %515 = vmatpush.msra.mxu0 %v284
      %516 = vmatpush.msra.mxu0 %v283
      %517 = vmatpush.msra.mxu0 %v282
      %518 = vmatpush.msra.mxu0 %v281
      %519 = vmatpush.msra.mxu0 %v280
      %520 = vmatpush.msra.mxu0 %v279
      %521 = vmatmul.f32.gmra.mxu0 %v485
      %v522 = vpop.f32.mrf.mxu0
      %v523 = vadd.f32 0.0, %v522
      %524 = vmatmul.f32.gmra.mxu0 %v488
      %v525 = vpop.f32.mrf.mxu0
      %v526 = vadd.f32 0.0, %v525
      %527 = vmatmul.f32.gmra.mxu0 %v491
      %v528 = vpop.f32.mrf.mxu0
      %v529 = vadd.f32 0.0, %v528
      %530 = vmatmul.f32.gmra.mxu0 %v494
      %v531 = vpop.f32.mrf.mxu0
      %v532 = vadd.f32 0.0, %v531
      %533 = vmatmul.f32.gmra.mxu0 %v497
      %v534 = vpop.f32.mrf.mxu0
      %v535 = vadd.f32 0.0, %v534
      %536 = vmatmul.f32.gmra.mxu0 %v500
      %v537 = vpop.f32.mrf.mxu0
      %v538 = vadd.f32 0.0, %v537
      %539 = vmatmul.f32.gmra.mxu0 %v503
      %v540 = vpop.f32.mrf.mxu0
      %v541 = vadd.f32 0.0, %v540
      %542 = vdwg.mxu0
      %v543 = vmul.f32 %v523, %v362
      %v544 = vmul.f32 %v526, %v362
      %v545 = vmul.f32 %v529, %v362
      %v546 = vmul.f32 %v532, %v362
      %v547 = vmul.f32 %v535, %v362
      %v548 = vmul.f32 %v538, %v362
      %v549 = vmul.f32 %v541, %v362
      %v550 = vadd.f32 %v543, %v372
      %v551 = vadd.f32 %v544, %v372
      %v552 = vadd.f32 %v545, %v372
      %v553 = vadd.f32 %v546, %v372
      %v554 = vadd.f32 %v547, %v372
      %v555 = vadd.f32 %v548, %v372
      %v556 = vadd.f32 %v549, %v372
      %v557 = vmax.f32 %v550, 0.0
      %v558 = vmax.f32 %v551, 0.0
      %v559 = vmax.f32 %v552, 0.0
      %v560 = vmax.f32 %v553, 0.0
      %v561 = vmax.f32 %v554, 0.0
      %v562 = vmax.f32 %v555, 0.0
      %v563 = vmax.f32 %v556, 0.0
      %s564 = scalar_lea.vmem %s273, 168
      %v565 = vld [vmem:[%s564] sm:$0xff]
      %v566 = vld [vmem:[%s564 + $0x8] sm:$0xff]
      %v567 = vld [vmem:[%s564 + $0x10] sm:$0xff]
      %v568 = vld [vmem:[%s564 + $0x18] sm:$0xff]
      %v569 = vld [vmem:[%s564 + $0x20] sm:$0xff]
      %v570 = vld [vmem:[%s564 + $0x28] sm:$0xff]
      %v571 = vld [vmem:[%s564 + $0x30] sm:$0xf]
      %v573 = vsel %vm297, %v565, 0
      %v576 = vsel %vm297, %v566, 0
      %v579 = vsel %vm297, %v567, 0
      %v582 = vsel %vm297, %v568, 0
      %v585 = vsel %vm297, %v569, 0
      %v588 = vsel %vm297, %v570, 0
      %v591 = vsel %vm297, %v571, 0
      %593 = vmatpush.msra.mxu0 0.0
      %594 = vmatpush.msra.mxu0 0.0
      %595 = vmatpush.msra.mxu0 0.0
      %596 = vmatpush.msra.mxu0 0.0
      %597 = vmatpush.msra.mxu0 0.0
      %598 = vmatpush.msra.mxu0 0.0
      %599 = vmatpush.msra.mxu0 0.0
      %600 = vmatpush.msra.mxu0 %v321
      %601 = vmatpush.msra.mxu0 %v286
      %602 = vmatpush.msra.mxu0 %v285
      %603 = vmatpush.msra.mxu0 %v284
      %604 = vmatpush.msra.mxu0 %v283
      %605 = vmatpush.msra.mxu0 %v282
      %606 = vmatpush.msra.mxu0 %v281
      %607 = vmatpush.msra.mxu0 %v280
      %608 = vmatpush.msra.mxu0 %v279
      %609 = vmatmul.f32.gmra.mxu0 %v573
      %v610 = vpop.f32.mrf.mxu0
      %v611 = vadd.f32 0.0, %v610
      %612 = vmatmul.f32.gmra.mxu0 %v576
      %v613 = vpop.f32.mrf.mxu0
      %v614 = vadd.f32 0.0, %v613
      %615 = vmatmul.f32.gmra.mxu0 %v579
      %v616 = vpop.f32.mrf.mxu0
      %v617 = vadd.f32 0.0, %v616
      %618 = vmatmul.f32.gmra.mxu0 %v582
      %v619 = vpop.f32.mrf.mxu0
      %v620 = vadd.f32 0.0, %v619
      %621 = vmatmul.f32.gmra.mxu0 %v585
      %v622 = vpop.f32.mrf.mxu0
      %v623 = vadd.f32 0.0, %v622
      %624 = vmatmul.f32.gmra.mxu0 %v588
      %v625 = vpop.f32.mrf.mxu0
      %v626 = vadd.f32 0.0, %v625
      %627 = vmatmul.f32.gmra.mxu0 %v591
      %v628 = vpop.f32.mrf.mxu0
      %v629 = vadd.f32 0.0, %v628
      %630 = vdwg.mxu0
      %v631 = vmul.f32 %v611, %v362
      %v632 = vmul.f32 %v614, %v362
      %v633 = vmul.f32 %v617, %v362
      %v634 = vmul.f32 %v620, %v362
      %v635 = vmul.f32 %v623, %v362
      %v636 = vmul.f32 %v626, %v362
      %v637 = vmul.f32 %v629, %v362
      %v638 = vadd.f32 %v631, %v372
      %v639 = vadd.f32 %v632, %v372
      %v640 = vadd.f32 %v633, %v372
      %v641 = vadd.f32 %v634, %v372
      %v642 = vadd.f32 %v635, %v372
      %v643 = vadd.f32 %v636, %v372
      %v644 = vadd.f32 %v637, %v372
      %v645 = vmax.f32 %v638, 0.0
      %v646 = vmax.f32 %v639, 0.0
      %v647 = vmax.f32 %v640, 0.0
      %v648 = vmax.f32 %v641, 0.0
      %v649 = vmax.f32 %v642, 0.0
      %v650 = vmax.f32 %v643, 0.0
      %v651 = vmax.f32 %v644, 0.0
      %v652 = vlaneseq
      %v653 = vshrl.u32 %v652, 7
      %v654 = vadd.s32 %v653, 8
      %v655 = vadd.s32 %v653, 16
      %v656 = vadd.s32 %v653, 24
      %v657 = vadd.s32 %v653, 32
      %v658 = vadd.s32 %v653, 40
      %v659 = vadd.s32 %v653, 48
      %vm660 = vcmp.ge.s32.totalorder %v653, 1
      %vm661 = vcmp.ge.s32.totalorder %v654, 1
      %vm662 = vcmp.ge.s32.totalorder %v655, 1
      %vm663 = vcmp.ge.s32.totalorder %v656, 1
      %vm664 = vcmp.ge.s32.totalorder %v657, 1
      %vm665 = vcmp.ge.s32.totalorder %v658, 1
      %vm666 = vcmp.ge.s32.totalorder %v659, 1
      %vm667 = vcmp.le.s32.totalorder %v653, 50
      %vm668 = vcmp.le.s32.totalorder %v654, 50
      %vm669 = vcmp.le.s32.totalorder %v655, 50
      %vm670 = vcmp.le.s32.totalorder %v656, 50
      %vm671 = vcmp.le.s32.totalorder %v657, 50
      %vm672 = vcmp.le.s32.totalorder %v658, 50
      %vm673 = vcmp.le.s32.totalorder %v659, 50
      %vm674 = vmand %vm660, %vm667
      %vm675 = vmand %vm661, %vm668
      %vm676 = vmand %vm662, %vm669
      %vm677 = vmand %vm663, %vm670
      %vm678 = vmand %vm664, %vm671
      %vm679 = vmand %vm665, %vm672
      %vm680 = vmand %vm666, %vm673
      %v681 = vmax.f32 %v381, %v469
      %v682 = vmax.f32 %v382, %v470
      %v683 = vmax.f32 %v383, %v471
      %v684 = vmax.f32 %v384, %v472
      %v685 = vmax.f32 %v385, %v473
      %v686 = vmax.f32 %v386, %v474
      %v687 = vmax.f32 %v387, %v475
      %v688 = vsel %vm674, 1, 0
      %v689 = vsel %vm675, 1, 0
      %v690 = vsel %vm676, 1, 0
      %v691 = vsel %vm677, 1, 0
      %v692 = vsel %vm678, 1, 0
      %v693 = vsel %vm679, 1, 0
      %v694 = vsel %vm680, 1, 0
      %vm695 = vcmp.eq.s32.totalorder %v688, 1
      %vm696 = vcmp.eq.s32.totalorder %v689, 1
      %vm697 = vcmp.eq.s32.totalorder %v690, 1
      %vm698 = vcmp.eq.s32.totalorder %v691, 1
      %vm699 = vcmp.eq.s32.totalorder %v692, 1
      %vm700 = vcmp.eq.s32.totalorder %v693, 1
      %vm701 = vcmp.eq.s32.totalorder %v694, 1
      %v702 = vsel %vm695, %v681, 0.0
      %v703 = vsel %vm696, %v682, 0.0
      %v704 = vsel %vm697, %v683, 0.0
      %v705 = vsel %vm698, %v684, 0.0
      %v706 = vsel %vm699, %v685, 0.0
      %v707 = vsel %vm700, %v686, 0.0
      %v708 = vsel %vm701, %v687, 0.0
      %v709 = vmax.f32 %v557, %v645
      %v710 = vmax.f32 %v558, %v646
      %v711 = vmax.f32 %v559, %v647
      %v712 = vmax.f32 %v560, %v648
      %v713 = vmax.f32 %v561, %v649
      %v714 = vmax.f32 %v562, %v650
      %v715 = vmax.f32 %v563, %v651
      %v716 = vsel %vm695, %v709, 0.0
      %v717 = vsel %vm696, %v710, 0.0
      %v718 = vsel %vm697, %v711, 0.0
      %v719 = vsel %vm698, %v712, 0.0
      %v720 = vsel %vm699, %v713, 0.0
      %v721 = vsel %vm700, %v714, 0.0
      %v722 = vsel %vm701, %v715, 0.0
      %730 = vrot.lane.b32.xlu0 %v716, 32
      %v731 = vpop.permute.xlu0 %730
      %732 = vrot.lane.b32.xlu0 %v717, 32
      %v733 = vpop.permute.xlu0 %732
      %734 = vrot.lane.b32.xlu0 %v718, 32
      %v735 = vpop.permute.xlu0 %734
      %736 = vrot.lane.b32.xlu0 %v719, 32
      %v737 = vpop.permute.xlu0 %736
      %738 = vrot.lane.b32.xlu0 %v720, 32
      %v739 = vpop.permute.xlu0 %738
      %740 = vrot.lane.b32.xlu0 %v721, 32
      %v741 = vpop.permute.xlu0 %740
      %742 = vrot.lane.b32.xlu0 %v722, 32
      %v743 = vpop.permute.xlu0 %742
      %vm758 = vcmask 1046528
      %v759 = vrot.slane %v702, 1
      %v760 = vrot.slane %v703, 1
      %v761 = vsel %vm758, %v759, %v760
      %v762 = vrot.slane %v704, 1
      %v763 = vsel %vm758, %v760, %v762
      %v764 = vrot.slane %v705, 1
      %v765 = vsel %vm758, %v762, %v764
      %v766 = vrot.slane %v706, 1
      %v767 = vsel %vm758, %v764, %v766
      %v768 = vrot.slane %v707, 1
      %v769 = vsel %vm758, %v766, %v768
      %v770 = vrot.slane %v708, 1
      %v771 = vsel %vm758, %v768, %v770
      %772 = vrot.lane.b32.xlu0 %v761, 64
      %v773 = vpop.permute.xlu0 %772
      %774 = vrot.lane.b32.xlu0 %v763, 64
      %v775 = vpop.permute.xlu0 %774
      %776 = vrot.lane.b32.xlu0 %v765, 64
      %v777 = vpop.permute.xlu0 %776
      %778 = vrot.lane.b32.xlu0 %v767, 64
      %v779 = vpop.permute.xlu0 %778
      %780 = vrot.lane.b32.xlu0 %v769, 64
      %v781 = vpop.permute.xlu0 %780
      %782 = vrot.lane.b32.xlu0 %v771, 64
      %v783 = vpop.permute.xlu0 %782
      %784 = vrot.lane.b32.xlu0 %v770, 64
      %v785 = vpop.permute.xlu0 %784
      %v793 = vrot.slane %v716, 1
      %v794 = vrot.slane %v717, 1
      %v795 = vsel %vm758, %v793, %v794
      %v796 = vrot.slane %v718, 1
      %v797 = vsel %vm758, %v794, %v796
      %v798 = vrot.slane %v719, 1
      %v799 = vsel %vm758, %v796, %v798
      %v800 = vrot.slane %v720, 1
      %v801 = vsel %vm758, %v798, %v800
      %v802 = vrot.slane %v721, 1
      %v803 = vsel %vm758, %v800, %v802
      %v804 = vrot.slane %v722, 1
      %v805 = vsel %vm758, %v802, %v804
      %806 = vrot.lane.b32.xlu0 %v795, 96
      %v807 = vpop.permute.xlu0 %806
      %808 = vrot.lane.b32.xlu0 %v797, 96
      %v809 = vpop.permute.xlu0 %808
      %810 = vrot.lane.b32.xlu0 %v799, 96
      %v811 = vpop.permute.xlu0 %810
      %812 = vrot.lane.b32.xlu0 %v801, 96
      %v813 = vpop.permute.xlu0 %812
      %814 = vrot.lane.b32.xlu0 %v803, 96
      %v815 = vpop.permute.xlu0 %814
      %816 = vrot.lane.b32.xlu0 %v805, 96
      %v817 = vpop.permute.xlu0 %816
      %818 = vrot.lane.b32.xlu0 %v804, 96
      %v819 = vpop.permute.xlu0 %818
      %vm827 = vcmask 1045504
      %v828 = vrot.slane %v702, 2
      %v829 = vrot.slane %v703, 2
      %v830 = vsel %vm827, %v828, %v829
      %v831 = vrot.slane %v704, 2
      %v832 = vsel %vm827, %v829, %v831
      %v833 = vrot.slane %v705, 2
      %v834 = vsel %vm827, %v831, %v833
      %v835 = vrot.slane %v706, 2
      %v836 = vsel %vm827, %v833, %v835
      %v837 = vrot.slane %v707, 2
      %v838 = vsel %vm827, %v835, %v837
      %v839 = vrot.slane %v708, 2
      %v840 = vsel %vm827, %v837, %v839
      %vm841 = vcmask 261120
      %v842 = vsel %vm841, %v702, %v731
      %v843 = vsel %vm841, %v703, %v733
      %v844 = vsel %vm841, %v704, %v735
      %v845 = vsel %vm841, %v705, %v737
      %v846 = vsel %vm841, %v706, %v739
      %v847 = vsel %vm841, %v707, %v741
      %v848 = vsel %vm841, %v708, %v743
      %vm849 = vcmask 523264
      %v850 = vsel %vm849, %v842, %v773
      %v851 = vsel %vm849, %v843, %v775
      %v852 = vsel %vm849, %v844, %v777
      %v853 = vsel %vm849, %v845, %v779
      %v854 = vsel %vm849, %v846, %v781
      %v855 = vsel %vm849, %v847, %v783
      %v856 = vsel %vm849, %v848, %v785
      %vm857 = vcmask 785408
      %v858 = vsel %vm857, %v850, %v807
      %v859 = vsel %vm857, %v851, %v809
      %v860 = vsel %vm857, %v852, %v811
      %v861 = vsel %vm857, %v853, %v813
      %v862 = vsel %vm857, %v854, %v815
      %v863 = vsel %vm857, %v855, %v817
      %v864 = vsel %vm857, %v856, %v819
      %865 = vrot.lane.b32.xlu0 %v761, 32
      %v866 = vpop.permute.xlu0 %865
      %867 = vrot.lane.b32.xlu0 %v763, 32
      %v868 = vpop.permute.xlu0 %867
      %869 = vrot.lane.b32.xlu0 %v765, 32
      %v870 = vpop.permute.xlu0 %869
      %871 = vrot.lane.b32.xlu0 %v767, 32
      %v872 = vpop.permute.xlu0 %871
      %873 = vrot.lane.b32.xlu0 %v769, 32
      %v874 = vpop.permute.xlu0 %873
      %875 = vrot.lane.b32.xlu0 %v771, 32
      %v876 = vpop.permute.xlu0 %875
      %877 = vrot.lane.b32.xlu0 %v770, 32
      %v878 = vpop.permute.xlu0 %877
      %886 = vrot.lane.b32.xlu0 %v795, 64
      %v887 = vpop.permute.xlu0 %886
      %888 = vrot.lane.b32.xlu0 %v797, 64
      %v889 = vpop.permute.xlu0 %888
      %890 = vrot.lane.b32.xlu0 %v799, 64
      %v891 = vpop.permute.xlu0 %890
      %892 = vrot.lane.b32.xlu0 %v801, 64
      %v893 = vpop.permute.xlu0 %892
      %894 = vrot.lane.b32.xlu0 %v803, 64
      %v895 = vpop.permute.xlu0 %894
      %896 = vrot.lane.b32.xlu0 %v805, 64
      %v897 = vpop.permute.xlu0 %896
      %898 = vrot.lane.b32.xlu0 %v804, 64
      %v899 = vpop.permute.xlu0 %898
      %907 = vrot.lane.b32.xlu0 %v830, 96
      %v908 = vpop.permute.xlu0 %907
      %909 = vrot.lane.b32.xlu0 %v832, 96
      %v910 = vpop.permute.xlu0 %909
      %911 = vrot.lane.b32.xlu0 %v834, 96
      %v912 = vpop.permute.xlu0 %911
      %913 = vrot.lane.b32.xlu0 %v836, 96
      %v914 = vpop.permute.xlu0 %913
      %915 = vrot.lane.b32.xlu0 %v838, 96
      %v916 = vpop.permute.xlu0 %915
      %917 = vrot.lane.b32.xlu0 %v840, 96
      %v918 = vpop.permute.xlu0 %917
      %919 = vrot.lane.b32.xlu0 %v839, 96
      %v920 = vpop.permute.xlu0 %919
      %v928 = vrot.slane %v716, 2
      %v929 = vrot.slane %v717, 2
      %v930 = vsel %vm827, %v928, %v929
      %v931 = vrot.slane %v718, 2
      %v932 = vsel %vm827, %v929, %v931
      %v933 = vrot.slane %v719, 2
      %v934 = vsel %vm827, %v931, %v933
      %v935 = vrot.slane %v720, 2
      %v936 = vsel %vm827, %v933, %v935
      %v937 = vrot.slane %v721, 2
      %v938 = vsel %vm827, %v935, %v937
      %v939 = vrot.slane %v722, 2
      %v940 = vsel %vm827, %v937, %v939
      %v941 = vsel %vm841, %v716, %v866
      %v942 = vsel %vm841, %v717, %v868
      %v943 = vsel %vm841, %v718, %v870
      %v944 = vsel %vm841, %v719, %v872
      %v945 = vsel %vm841, %v720, %v874
      %v946 = vsel %vm841, %v721, %v876
      %v947 = vsel %vm841, %v722, %v878
      %v948 = vsel %vm849, %v941, %v887
      %v949 = vsel %vm849, %v942, %v889
      %v950 = vsel %vm849, %v943, %v891
      %v951 = vsel %vm849, %v944, %v893
      %v952 = vsel %vm849, %v945, %v895
      %v953 = vsel %vm849, %v946, %v897
      %v954 = vsel %vm849, %v947, %v899
      %v955 = vsel %vm857, %v948, %v908
      %v956 = vsel %vm857, %v949, %v910
      %v957 = vsel %vm857, %v950, %v912
      %v958 = vsel %vm857, %v951, %v914
      %v959 = vsel %vm857, %v952, %v916
      %v960 = vsel %vm857, %v953, %v918
      %v961 = vsel %vm857, %v954, %v920
      %v962 = vld [vmem:[%s4] sm:$0xff]
      %v963 = vld [vmem:[%s4 + $0x8] sm:$0xff]
      %v964 = vld [vmem:[%s4 + $0x10] sm:$0xff]
      %v965 = vld [vmem:[%s4 + $0x18] sm:$0xff]
      %v966 = vld [vmem:[%s4 + $0x20] sm:$0xff]
      %v967 = vld [vmem:[%s4 + $0x28] sm:$0xff]
      %v968 = vld [vmem:[%s4 + $0x30] sm:$0xff]
      %v969 = vld [vmem:[%s4 + $0x38] sm:$0xff]
      %v970 = vld [vmem:[%s4 + $0x40] sm:$0xff]
      %v971 = vld [vmem:[%s4 + $0x48] sm:$0xff]
      %v972 = vld [vmem:[%s4 + $0x50] sm:$0xff]
      %v973 = vld [vmem:[%s4 + $0x58] sm:$0xff]
      %v974 = vld [vmem:[%s4 + $0x60] sm:$0xff]
      %v975 = vld [vmem:[%s4 + $0x68] sm:$0xff]
      %v976 = vld [vmem:[%s4 + $0x70] sm:$0xff]
      %v977 = vld [vmem:[%s4 + $0x78] sm:$0xff]
      %v978 = vld [vmem:[%s4 + $0x80] sm:$0xff]
      %v979 = vld [vmem:[%s4 + $0x88] sm:$0xff]
      %v980 = vld [vmem:[%s4 + $0x90] sm:$0xff]
      %v981 = vld [vmem:[%s4 + $0x98] sm:$0xff]
      %v982 = vld [vmem:[%s5] sm:$0x1]
      %v983 = vld [vmem:[%s6] sm:$0x1]
      %v984 = vsel %vm841, %v830, 0
      %v986 = vsel %vm841, %v832, 0
      %v988 = vsel %vm841, %v834, 0
      %v990 = vsel %vm841, %v836, 0
      %v992 = vsel %vm841, %v838, 0
      %v994 = vsel %vm841, %v840, 0
      %v996 = vsel %vm841, %v839, 0
      %998 = vmatpush.msra.mxu0 %v977
      %999 = vmatpush.msra.mxu0 %v976
      %1000 = vmatpush.msra.mxu0 %v975
      %1001 = vmatpush.msra.mxu0 %v974
      %1002 = vmatpush.msra.mxu0 %v973
      %1003 = vmatpush.msra.mxu0 %v972
      %1004 = vmatpush.msra.mxu0 %v971
      %1005 = vmatpush.msra.mxu0 %v970
      %1006 = vmatpush.msra.mxu0 %v969
      %1007 = vmatpush.msra.mxu0 %v968
      %1008 = vmatpush.msra.mxu0 %v967
      %1009 = vmatpush.msra.mxu0 %v966
      %1010 = vmatpush.msra.mxu0 %v965
      %1011 = vmatpush.msra.mxu0 %v964
      %1012 = vmatpush.msra.mxu0 %v963
      %1013 = vmatpush.msra.mxu0 %v962
      %1014 = vmatmul.f32.gmra.mxu0 %v858
      %v1015 = vpop.f32.mrf.mxu0
      %v1016 = vadd.f32 0.0, %v1015
      %1017 = vmatmul.f32.gmra.mxu0 %v859
      %v1018 = vpop.f32.mrf.mxu0
      %v1019 = vadd.f32 0.0, %v1018
      %1020 = vmatmul.f32.gmra.mxu0 %v860
      %v1021 = vpop.f32.mrf.mxu0
      %v1022 = vadd.f32 0.0, %v1021
      %1023 = vmatmul.f32.gmra.mxu0 %v861
      %v1024 = vpop.f32.mrf.mxu0
      %v1025 = vadd.f32 0.0, %v1024
      %1026 = vmatmul.f32.gmra.mxu0 %v862
      %v1027 = vpop.f32.mrf.mxu0
      %v1028 = vadd.f32 0.0, %v1027
      %1029 = vmatmul.f32.gmra.mxu0 %v863
      %v1030 = vpop.f32.mrf.mxu0
      %v1031 = vadd.f32 0.0, %v1030
      %1032 = vmatmul.f32.gmra.mxu0 %v864
      %v1033 = vpop.f32.mrf.mxu0
      %v1034 = vadd.f32 0.0, %v1033
      %1035 = vdwg.mxu0
      %1036 = vmatpush.msra.mxu0 0.0
      %1037 = vmatpush.msra.mxu0 0.0
      %1038 = vmatpush.msra.mxu0 0.0
      %1039 = vmatpush.msra.mxu0 0.0
      %1040 = vmatpush.msra.mxu0 0.0
      %1041 = vmatpush.msra.mxu0 0.0
      %1042 = vmatpush.msra.mxu0 0.0
      %1043 = vmatpush.msra.mxu0 0.0
      %1044 = vmatpush.msra.mxu0 0.0
      %1045 = vmatpush.msra.mxu0 0.0
      %1046 = vmatpush.msra.mxu0 0.0
      %1047 = vmatpush.msra.mxu0 0.0
      %1048 = vmatpush.msra.mxu0 %v981
      %1049 = vmatpush.msra.mxu0 %v980
      %1050 = vmatpush.msra.mxu0 %v979
      %1051 = vmatpush.msra.mxu0 %v978
      %1052 = vmatmul.f32.gmra.mxu0 %v984
      %v1053 = vpop.f32.mrf.mxu0
      %v1054 = vadd.f32 %v1016, %v1053
      %1055 = vmatmul.f32.gmra.mxu0 %v986
      %v1056 = vpop.f32.mrf.mxu0
      %v1057 = vadd.f32 %v1019, %v1056
      %1058 = vmatmul.f32.gmra.mxu0 %v988
      %v1059 = vpop.f32.mrf.mxu0
      %v1060 = vadd.f32 %v1022, %v1059
      %1061 = vmatmul.f32.gmra.mxu0 %v990
      %v1062 = vpop.f32.mrf.mxu0
      %v1063 = vadd.f32 %v1025, %v1062
      %1064 = vmatmul.f32.gmra.mxu0 %v992
      %v1065 = vpop.f32.mrf.mxu0
      %v1066 = vadd.f32 %v1028, %v1065
      %1067 = vmatmul.f32.gmra.mxu0 %v994
      %v1068 = vpop.f32.mrf.mxu0
      %v1069 = vadd.f32 %v1031, %v1068
      %1070 = vmatmul.f32.gmra.mxu0 %v996
      %v1071 = vpop.f32.mrf.mxu0
      %v1072 = vadd.f32 %v1034, %v1071
      %1073 = vdwg.mxu0
      %v1075 = vperm.slane %v982, 0
      %v1077 = vmul.f32 %v1054, %v1075
      %v1078 = vmul.f32 %v1057, %v1075
      %v1079 = vmul.f32 %v1060, %v1075
      %v1080 = vmul.f32 %v1063, %v1075
      %v1081 = vmul.f32 %v1066, %v1075
      %v1082 = vmul.f32 %v1069, %v1075
      %v1083 = vmul.f32 %v1072, %v1075
      %v1085 = vperm.slane %v983, 0
      %v1087 = vadd.f32 %v1077, %v1085
      %v1088 = vadd.f32 %v1078, %v1085
      %v1089 = vadd.f32 %v1079, %v1085
      %v1090 = vadd.f32 %v1080, %v1085
      %v1091 = vadd.f32 %v1081, %v1085
      %v1092 = vadd.f32 %v1082, %v1085
      %v1093 = vadd.f32 %v1083, %v1085
      %v1094 = vmax.f32 %v1087, 0.0
      %v1095 = vmax.f32 %v1088, 0.0
      %v1096 = vmax.f32 %v1089, 0.0
      %v1097 = vmax.f32 %v1090, 0.0
      %v1098 = vmax.f32 %v1091, 0.0
      %v1099 = vmax.f32 %v1092, 0.0
      %v1100 = vmax.f32 %v1093, 0.0
      %v1101 = vsel %vm841, %v930, 0
      %v1103 = vsel %vm841, %v932, 0
      %v1105 = vsel %vm841, %v934, 0
      %v1107 = vsel %vm841, %v936, 0
      %v1109 = vsel %vm841, %v938, 0
      %v1111 = vsel %vm841, %v940, 0
      %v1113 = vsel %vm841, %v939, 0
      %1115 = vmatpush.msra.mxu0 %v977
      %1116 = vmatpush.msra.mxu0 %v976
      %1117 = vmatpush.msra.mxu0 %v975
      %1118 = vmatpush.msra.mxu0 %v974
      %1119 = vmatpush.msra.mxu0 %v973
      %1120 = vmatpush.msra.mxu0 %v972
      %1121 = vmatpush.msra.mxu0 %v971
      %1122 = vmatpush.msra.mxu0 %v970
      %1123 = vmatpush.msra.mxu0 %v969
      %1124 = vmatpush.msra.mxu0 %v968
      %1125 = vmatpush.msra.mxu0 %v967
      %1126 = vmatpush.msra.mxu0 %v966
      %1127 = vmatpush.msra.mxu0 %v965
      %1128 = vmatpush.msra.mxu0 %v964
      %1129 = vmatpush.msra.mxu0 %v963
      %1130 = vmatpush.msra.mxu0 %v962
      %1131 = vmatmul.f32.gmra.mxu0 %v955
      %v1132 = vpop.f32.mrf.mxu0
      %v1133 = vadd.f32 0.0, %v1132
      %1134 = vmatmul.f32.gmra.mxu0 %v956
      %v1135 = vpop.f32.mrf.mxu0
      %v1136 = vadd.f32 0.0, %v1135
      %1137 = vmatmul.f32.gmra.mxu0 %v957
      %v1138 = vpop.f32.mrf.mxu0
      %v1139 = vadd.f32 0.0, %v1138
      %1140 = vmatmul.f32.gmra.mxu0 %v958
      %v1141 = vpop.f32.mrf.mxu0
      %v1142 = vadd.f32 0.0, %v1141
      %1143 = vmatmul.f32.gmra.mxu0 %v959
      %v1144 = vpop.f32.mrf.mxu0
      %v1145 = vadd.f32 0.0, %v1144
      %1146 = vmatmul.f32.gmra.mxu0 %v960
      %v1147 = vpop.f32.mrf.mxu0
      %v1148 = vadd.f32 0.0, %v1147
      %1149 = vmatmul.f32.gmra.mxu0 %v961
      %v1150 = vpop.f32.mrf.mxu0
      %v1151 = vadd.f32 0.0, %v1150
      %1152 = vdwg.mxu0
      %1153 = vmatpush.msra.mxu0 0.0
      %1154 = vmatpush.msra.mxu0 0.0
      %1155 = vmatpush.msra.mxu0 0.0
      %1156 = vmatpush.msra.mxu0 0.0
      %1157 = vmatpush.msra.mxu0 0.0
      %1158 = vmatpush.msra.mxu0 0.0
      %1159 = vmatpush.msra.mxu0 0.0
      %1160 = vmatpush.msra.mxu0 0.0
      %1161 = vmatpush.msra.mxu0 0.0
      %1162 = vmatpush.msra.mxu0 0.0
      %1163 = vmatpush.msra.mxu0 0.0
      %1164 = vmatpush.msra.mxu0 0.0
      %1165 = vmatpush.msra.mxu0 %v981
      %1166 = vmatpush.msra.mxu0 %v980
      %1167 = vmatpush.msra.mxu0 %v979
      %1168 = vmatpush.msra.mxu0 %v978
      %1169 = vmatmul.f32.gmra.mxu0 %v1101
      %v1170 = vpop.f32.mrf.mxu0
      %v1171 = vadd.f32 %v1133, %v1170
      %1172 = vmatmul.f32.gmra.mxu0 %v1103
      %v1173 = vpop.f32.mrf.mxu0
      %v1174 = vadd.f32 %v1136, %v1173
      %1175 = vmatmul.f32.gmra.mxu0 %v1105
      %v1176 = vpop.f32.mrf.mxu0
      %v1177 = vadd.f32 %v1139, %v1176
      %1178 = vmatmul.f32.gmra.mxu0 %v1107
      %v1179 = vpop.f32.mrf.mxu0
      %v1180 = vadd.f32 %v1142, %v1179
      %1181 = vmatmul.f32.gmra.mxu0 %v1109
      %v1182 = vpop.f32.mrf.mxu0
      %v1183 = vadd.f32 %v1145, %v1182
      %1184 = vmatmul.f32.gmra.mxu0 %v1111
      %v1185 = vpop.f32.mrf.mxu0
      %v1186 = vadd.f32 %v1148, %v1185
      %1187 = vmatmul.f32.gmra.mxu0 %v1113
      %v1188 = vpop.f32.mrf.mxu0
      %v1189 = vadd.f32 %v1151, %v1188
      %1190 = vdwg.mxu0
      %v1191 = vmul.f32 %v1171, %v1075
      %v1192 = vmul.f32 %v1174, %v1075
      %v1193 = vmul.f32 %v1177, %v1075
      %v1194 = vmul.f32 %v1180, %v1075
      %v1195 = vmul.f32 %v1183, %v1075
      %v1196 = vmul.f32 %v1186, %v1075
      %v1197 = vmul.f32 %v1189, %v1075
      %v1198 = vadd.f32 %v1191, %v1085
      %v1199 = vadd.f32 %v1192, %v1085
      %v1200 = vadd.f32 %v1193, %v1085
      %v1201 = vadd.f32 %v1194, %v1085
      %v1202 = vadd.f32 %v1195, %v1085
      %v1203 = vadd.f32 %v1196, %v1085
      %v1204 = vadd.f32 %v1197, %v1085
      %v1205 = vmax.f32 %v1198, 0.0
      %v1206 = vmax.f32 %v1199, 0.0
      %v1207 = vmax.f32 %v1200, 0.0
      %v1208 = vmax.f32 %v1201, 0.0
      %v1209 = vmax.f32 %v1202, 0.0
      %v1210 = vmax.f32 %v1203, 0.0
      %v1211 = vmax.f32 %v1204, 0.0
      %v1212 = vmax.f32 %v1094, %v1205
      %v1213 = vmax.f32 %v1095, %v1206
      %v1214 = vmax.f32 %v1096, %v1207
      %v1215 = vmax.f32 %v1097, %v1208
      %v1216 = vmax.f32 %v1098, %v1209
      %v1217 = vmax.f32 %v1099, %v1210
      %v1218 = vmax.f32 %v1100, %v1211
      %1219 = vst.msk [vmem:[%s278] sm:$0xff] %vm849, %v1212
      %1220 = vst.msk [vmem:[%s278 + $0x8] sm:$0xff] %vm849, %v1213
      %1221 = vst.msk [vmem:[%s278 + $0x10] sm:$0xff] %vm849, %v1214
      %1222 = vst.msk [vmem:[%s278 + $0x18] sm:$0xff] %vm849, %v1215
      %1223 = vst.msk [vmem:[%s278 + $0x20] sm:$0xff] %vm849, %v1216
      %1224 = vst.msk [vmem:[%s278 + $0x28] sm:$0xff] %vm849, %v1217
      %vm1225 = vcmask 517120
      %1226 = vst.msk [vmem:[%s278 + $0x30] sm:$0x3] %vm1225, %v1218
      %p1227 = scmp.lt.s32.totalorder %s18, 1
      %s1228 = scalar_select %p1227, %s18, 1
      %s1229 = smul.addr %s1228, 7
      %s1230 = smul.addr %s1229, 8
      %s1231 = scalar_lea.vmem %s7, %s1230
      // Predicated region
      $region49: #{improved_dnn_forward.2} parent=47 // pred_check
        %p1232 = pneg %p188
      $region50: #{improved_dnn_forward.2} parent=47 // pred_check_branch
        %1234 = sbr.rel (%p1232) target = $region52
      $region51: #{improved_dnn_forward.2} parent=47 // pred_region
        _
      $region52: #{improved_dnn_forward.2} parent=47 // pred_fallthru
        _
    $region48: #{improved_dnn_forward.2} parent=5 // pred_fallthru
      _
    %p1235 = scmp.le.s32.totalorder 2, %s13
    // Predicated region
    $region53: #{improved_dnn_forward.2} parent=5 // pred_check
      %p1236 = pneg %p1235
    $region54: #{improved_dnn_forward.2} parent=5 // pred_check_branch
      %1238 = sbr.rel (%p1236) target = $region56
    $region55: #{improved_dnn_forward.2} parent=5 // pred_region
      %s1239 = ssub.s32 %s13, 2
      // Predicated region
      $region57: #{improved_dnn_forward.2} parent=55 // pred_check
        %p1240 = pneg %p194
      $region58: #{improved_dnn_forward.2} parent=55 // pred_check_branch
        %1242 = sbr.rel (%p1240) target = $region60
      $region59: #{improved_dnn_forward.2} parent=55 // pred_region
        %p1243 = scmp.lt.s32.totalorder %s19, 1
        %s1244 = scalar_select %p1243, %s19, 1
        %s1245 = smul.addr %s1244, 7
        %s1246 = smul.addr %s1245, 8
        %s1247 = scalar_lea.vmem %s7, %s1246
      $region60: #{improved_dnn_forward.2} parent=55 // pred_fallthru
        _
    $region56: #{improved_dnn_forward.2} parent=5 // pred_fallthru
      _
  $region6: #{improved_dnn_forward.2} parent=0 // loop_footer
    %s17 = sadd.s32 1, %s13
  $region7: #{improved_dnn_forward.2} parent=0 // loop_footer_branch
    %12 = sbr.rel target = $region3
  $region8: #{improved_dnn_forward.2} parent=0 // loop_exit
    _

// kernel: improved_dnn_forward.3
$region0: #{improved_dnn_forward.3}
  #allocation0 [shape = 'u32[]', space=smem, size = 0x4, offset = 0x4, fixed_abs, tag = 'smem constant byte address 0x4 - core index']
  #allocation1 [shape = 'u32[72,128]{1,0:T(1,128)}', space=vmem, size = 0x9000, scoped, tag = 'internal scratch']
  #allocation2 [shape = 'f32[1,1]{1,0:T(1,128)S(1)}', space=vmem, size = 0x200, scoped, tag = 'scoped memory for improved_dnn_forward.3']
  %s0 = inlined_call_operand.vmem [shape: f32[2,3200], index: 0, kind: input, shape index: {}]
  %s1 = inlined_call_operand.vmem [shape: f32[3200,128], index: 1, kind: input, shape index: {}]
  %s2 = inlined_call_operand.vmem [shape: f32[1,128], index: 2, kind: input, shape index: {}]
  %s3 = inlined_call_operand.vmem [shape: f32[128,128], index: 3, kind: input, shape index: {}]
  %s4 = inlined_call_operand.vmem [shape: f32[1,128], index: 4, kind: input, shape index: {}]
  %s5 = inlined_call_operand.vmem [shape: f32[1,128], index: 5, kind: input, shape index: {}]
  %s6 = inlined_call_operand.vmem [shape: f32[128,128], index: 6, kind: input, shape index: {}]
  %s7 = inlined_call_operand.vmem [shape: f32[1,128], index: 7, kind: input, shape index: {}]
  %s8 = inlined_call_operand.vmem [shape: f32[1,128], index: 8, kind: input, shape index: {}]
  %s9 = inlined_call_operand.vmem [shape: f32[128,128], index: 9, kind: input, shape index: {}]
  %s10 = inlined_call_operand.vmem [shape: f32[1,128], index: 10, kind: input, shape index: {}]
  %s11 = inlined_call_operand.vmem [shape: f32[1,128], index: 11, kind: input, shape index: {}]
  %s12 = inlined_call_operand.vmem [shape: f32[128,128], index: 12, kind: input, shape index: {}]
  %s13 = inlined_call_operand.vmem [shape: f32[1,128], index: 13, kind: input, shape index: {}]
  %s14 = inlined_call_operand.vmem [shape: f32[1,128], index: 14, kind: input, shape index: {}]
  %s15 = inlined_call_operand.vmem [shape: f32[128,16], index: 15, kind: input, shape index: {}]
  %s16 = inlined_call_operand.vmem [shape: f32[1,16], index: 16, kind: input, shape index: {}]
  %s17 = inlined_call_operand.vmem [shape: f32[16,128], index: 17, kind: input, shape index: {}]
  %s18 = inlined_call_operand.vmem [shape: f32[1,128], index: 18, kind: input, shape index: {}]
  %s19 = inlined_call_operand.vmem [shape: f32[128,64], index: 19, kind: input, shape index: {}]
  %s20 = inlined_call_operand.vmem [shape: f32[1,64], index: 20, kind: input, shape index: {}]
  %s21 = inlined_call_operand.vmem [shape: f32[1,64], index: 21, kind: input, shape index: {}]
  %s22 = inlined_call_operand.vmem [shape: f32[1,64], index: 22, kind: input, shape index: {}]
  %s23 = inlined_call_operand.<no memory space> [shape: f32[1,1], index: 23, kind: input, shape index: {}]
  %s24 = inlined_call_operand.vmem [shape: f32[2,1], index: 24, kind: output, shape index: {}]
  %s25 = sld [smem:[#allocation0]]
  $region106: #{improved_dnn_forward.3} parent=0
    _
  %s27 = ssub.s32 1, %s25
  %s28 = scalar_select 0, %s27, %s25
  %v29 = vstv %s23
  %30 = vst [vmem:[#allocation2] sm:$0x1] %v29
  // Predicated region
  $region2: #{improved_dnn_forward.3} parent=0 // pred_check
    _
  $region3: #{improved_dnn_forward.3} parent=0 // pred_check_branch
    %32 = sbr.rel (0) target = $region5
  $region4: #{improved_dnn_forward.3} parent=0 // pred_region
    _
  $region5: #{improved_dnn_forward.3} parent=0 // pred_fallthru
    _
  // Predicated region
  $region6: #{improved_dnn_forward.3} parent=0 // pred_check
    _
  $region7: #{improved_dnn_forward.3} parent=0 // pred_check_branch
    %34 = sbr.rel (0) target = $region9
  $region8: #{improved_dnn_forward.3} parent=0 // pred_region
    _
  $region9: #{improved_dnn_forward.3} parent=0 // pred_fallthru
    _
  // Predicated region
  $region10: #{improved_dnn_forward.3} parent=0 // pred_check
    _
  $region11: #{improved_dnn_forward.3} parent=0 // pred_check_branch
    %36 = sbr.rel (0) target = $region13
  $region12: #{improved_dnn_forward.3} parent=0 // pred_region
    _
  $region13: #{improved_dnn_forward.3} parent=0 // pred_fallthru
    _
  // Predicated region
  $region14: #{improved_dnn_forward.3} parent=0 // pred_check
    _
  $region15: #{improved_dnn_forward.3} parent=0 // pred_check_branch
    %38 = sbr.rel (0) target = $region17
  $region16: #{improved_dnn_forward.3} parent=0 // pred_region
    _
  $region17: #{improved_dnn_forward.3} parent=0 // pred_fallthru
    _
  // Predicated region
  $region18: #{improved_dnn_forward.3} parent=0 // pred_check
    _
  $region19: #{improved_dnn_forward.3} parent=0 // pred_check_branch
    %40 = sbr.rel (0) target = $region21
  $region20: #{improved_dnn_forward.3} parent=0 // pred_region
    _
  $region21: #{improved_dnn_forward.3} parent=0 // pred_fallthru
    _
  // Predicated region
  $region22: #{improved_dnn_forward.3} parent=0 // pred_check
    _
  $region23: #{improved_dnn_forward.3} parent=0 // pred_check_branch
    %42 = sbr.rel (0) target = $region25
  $region24: #{improved_dnn_forward.3} parent=0 // pred_region
    _
  $region25: #{improved_dnn_forward.3} parent=0 // pred_fallthru
    _
  // Predicated region
  $region26: #{improved_dnn_forward.3} parent=0 // pred_check
    _
  $region27: #{improved_dnn_forward.3} parent=0 // pred_check_branch
    %44 = sbr.rel (0) target = $region29
  $region28: #{improved_dnn_forward.3} parent=0 // pred_region
    _
  $region29: #{improved_dnn_forward.3} parent=0 // pred_fallthru
    _
  // Predicated region
  $region30: #{improved_dnn_forward.3} parent=0 // pred_check
    _
  $region31: #{improved_dnn_forward.3} parent=0 // pred_check_branch
    %46 = sbr.rel (0) target = $region33
  $region32: #{improved_dnn_forward.3} parent=0 // pred_region
    _
  $region33: #{improved_dnn_forward.3} parent=0 // pred_fallthru
    _
  // Predicated region
  $region34: #{improved_dnn_forward.3} parent=0 // pred_check
    _
  $region35: #{improved_dnn_forward.3} parent=0 // pred_check_branch
    %48 = sbr.rel (0) target = $region37
  $region36: #{improved_dnn_forward.3} parent=0 // pred_region
    _
  $region37: #{improved_dnn_forward.3} parent=0 // pred_fallthru
    _
  // Predicated region
  $region38: #{improved_dnn_forward.3} parent=0 // pred_check
    _
  $region39: #{improved_dnn_forward.3} parent=0 // pred_check_branch
    %50 = sbr.rel (0) target = $region41
  $region40: #{improved_dnn_forward.3} parent=0 // pred_region
    _
  $region41: #{improved_dnn_forward.3} parent=0 // pred_fallthru
    _
  // Predicated region
  $region42: #{improved_dnn_forward.3} parent=0 // pred_check
    _
  $region43: #{improved_dnn_forward.3} parent=0 // pred_check_branch
    %52 = sbr.rel (0) target = $region45
  $region44: #{improved_dnn_forward.3} parent=0 // pred_region
    _
  $region45: #{improved_dnn_forward.3} parent=0 // pred_fallthru
    _
  // Predicated region
  $region46: #{improved_dnn_forward.3} parent=0 // pred_check
    _
  $region47: #{improved_dnn_forward.3} parent=0 // pred_check_branch
    %54 = sbr.rel (0) target = $region49
  $region48: #{improved_dnn_forward.3} parent=0 // pred_region
    _
  $region49: #{improved_dnn_forward.3} parent=0 // pred_fallthru
    _
  // Predicated region
  $region50: #{improved_dnn_forward.3} parent=0 // pred_check
    _
  $region51: #{improved_dnn_forward.3} parent=0 // pred_check_branch
    %56 = sbr.rel (0) target = $region53
  $region52: #{improved_dnn_forward.3} parent=0 // pred_region
    _
  $region53: #{improved_dnn_forward.3} parent=0 // pred_fallthru
    _
  // Predicated region
  $region54: #{improved_dnn_forward.3} parent=0 // pred_check
    _
  $region55: #{improved_dnn_forward.3} parent=0 // pred_check_branch
    %58 = sbr.rel (0) target = $region57
  $region56: #{improved_dnn_forward.3} parent=0 // pred_region
    _
  $region57: #{improved_dnn_forward.3} parent=0 // pred_fallthru
    _
  // Predicated region
  $region58: #{improved_dnn_forward.3} parent=0 // pred_check
    _
  $region59: #{improved_dnn_forward.3} parent=0 // pred_check_branch
    %60 = sbr.rel (0) target = $region61
  $region60: #{improved_dnn_forward.3} parent=0 // pred_region
    _
  $region61: #{improved_dnn_forward.3} parent=0 // pred_fallthru
    _
  // Predicated region
  $region62: #{improved_dnn_forward.3} parent=0 // pred_check
    _
  $region63: #{improved_dnn_forward.3} parent=0 // pred_check_branch
    %62 = sbr.rel (0) target = $region65
  $region64: #{improved_dnn_forward.3} parent=0 // pred_region
    _
  $region65: #{improved_dnn_forward.3} parent=0 // pred_fallthru
    _
  // Predicated region
  $region66: #{improved_dnn_forward.3} parent=0 // pred_check
    _
  $region67: #{improved_dnn_forward.3} parent=0 // pred_check_branch
    %64 = sbr.rel (0) target = $region69
  $region68: #{improved_dnn_forward.3} parent=0 // pred_region
    _
  $region69: #{improved_dnn_forward.3} parent=0 // pred_fallthru
    _
  // Predicated region
  $region70: #{improved_dnn_forward.3} parent=0 // pred_check
    _
  $region71: #{improved_dnn_forward.3} parent=0 // pred_check_branch
    %66 = sbr.rel (0) target = $region73
  $region72: #{improved_dnn_forward.3} parent=0 // pred_region
    _
  $region73: #{improved_dnn_forward.3} parent=0 // pred_fallthru
    _
  // Predicated region
  $region74: #{improved_dnn_forward.3} parent=0 // pred_check
    _
  $region75: #{improved_dnn_forward.3} parent=0 // pred_check_branch
    %68 = sbr.rel (0) target = $region77
  $region76: #{improved_dnn_forward.3} parent=0 // pred_region
    _
  $region77: #{improved_dnn_forward.3} parent=0 // pred_fallthru
    _
  // Predicated region
  $region78: #{improved_dnn_forward.3} parent=0 // pred_check
    _
  $region79: #{improved_dnn_forward.3} parent=0 // pred_check_branch
    %70 = sbr.rel (0) target = $region81
  $region80: #{improved_dnn_forward.3} parent=0 // pred_region
    _
  $region81: #{improved_dnn_forward.3} parent=0 // pred_fallthru
    _
  // Predicated region
  $region82: #{improved_dnn_forward.3} parent=0 // pred_check
    _
  $region83: #{improved_dnn_forward.3} parent=0 // pred_check_branch
    %72 = sbr.rel (0) target = $region85
  $region84: #{improved_dnn_forward.3} parent=0 // pred_region
    _
  $region85: #{improved_dnn_forward.3} parent=0 // pred_fallthru
    _
  // Predicated region
  $region86: #{improved_dnn_forward.3} parent=0 // pred_check
    _
  $region87: #{improved_dnn_forward.3} parent=0 // pred_check_branch
    %74 = sbr.rel (0) target = $region89
  $region88: #{improved_dnn_forward.3} parent=0 // pred_region
    _
  $region89: #{improved_dnn_forward.3} parent=0 // pred_fallthru
    _
  // Predicated region
  $region90: #{improved_dnn_forward.3} parent=0 // pred_check
    _
  $region91: #{improved_dnn_forward.3} parent=0 // pred_check_branch
    %76 = sbr.rel (0) target = $region93
  $region92: #{improved_dnn_forward.3} parent=0 // pred_region
    _
  $region93: #{improved_dnn_forward.3} parent=0 // pred_fallthru
    _
  // Predicated region
  $region94: #{improved_dnn_forward.3} parent=0 // pred_check
    _
  $region95: #{improved_dnn_forward.3} parent=0 // pred_check_branch
    %78 = sbr.rel (0) target = $region97
  $region96: #{improved_dnn_forward.3} parent=0 // pred_region
    _
  $region97: #{improved_dnn_forward.3} parent=0 // pred_fallthru
    _
  %v79 = vld [vmem:[%s0] sm:$0xff]
  %v80 = vld [vmem:[%s0 + $0x8] sm:$0xff]
  %v81 = vld [vmem:[%s0 + $0x10] sm:$0xff]
  %v82 = vld [vmem:[%s0 + $0x18] sm:$0xff]
  %v83 = vld [vmem:[%s0 + $0x20] sm:$0xff]
  %v84 = vld [vmem:[%s0 + $0x28] sm:$0xff]
  %v85 = vld [vmem:[%s0 + $0x30] sm:$0x3]
  %v86 = vld [vmem:[%s1] sm:$0xff]
  %v87 = vld [vmem:[%s1 + $0x8] sm:$0xff]
  %v88 = vld [vmem:[%s1 + $0x10] sm:$0xff]
  %v89 = vld [vmem:[%s1 + $0x18] sm:$0xff]
  %v90 = vld [vmem:[%s1 + $0x20] sm:$0xff]
  %v91 = vld [vmem:[%s1 + $0x28] sm:$0xff]
  %v92 = vld [vmem:[%s1 + $0x30] sm:$0xff]
  %v93 = vld [vmem:[%s1 + $0x38] sm:$0xff]
  %v94 = vld [vmem:[%s1 + $0x40] sm:$0xff]
  %v95 = vld [vmem:[%s1 + $0x48] sm:$0xff]
  %v96 = vld [vmem:[%s1 + $0x50] sm:$0xff]
  %v97 = vld [vmem:[%s1 + $0x58] sm:$0xff]
  %v98 = vld [vmem:[%s1 + $0x60] sm:$0xff]
  %v99 = vld [vmem:[%s1 + $0x68] sm:$0xff]
  %v100 = vld [vmem:[%s1 + $0x70] sm:$0xff]
  %v101 = vld [vmem:[%s1 + $0x78] sm:$0xff]
  %v102 = vld [vmem:[%s1 + $0x80] sm:$0xff]
  %v103 = vld [vmem:[%s1 + $0x88] sm:$0xff]
  %v104 = vld [vmem:[%s1 + $0x90] sm:$0xff]
  %v105 = vld [vmem:[%s1 + $0x98] sm:$0xff]
  %v106 = vld [vmem:[%s1 + $0xa0] sm:$0xff]
  %v107 = vld [vmem:[%s1 + $0xa8] sm:$0xff]
  %v108 = vld [vmem:[%s1 + $0xb0] sm:$0xff]
  %v109 = vld [vmem:[%s1 + $0xb8] sm:$0xff]
  %v110 = vld [vmem:[%s1 + $0xc0] sm:$0xff]
  %v111 = vld [vmem:[%s1 + $0xc8] sm:$0xff]
  %v112 = vld [vmem:[%s1 + $0xd0] sm:$0xff]
  %v113 = vld [vmem:[%s1 + $0xd8] sm:$0xff]
  %v114 = vld [vmem:[%s1 + $0xe0] sm:$0xff]
  %v115 = vld [vmem:[%s1 + $0xe8] sm:$0xff]
  %v116 = vld [vmem:[%s1 + $0xf0] sm:$0xff]
  %v117 = vld [vmem:[%s1 + $0xf8] sm:$0xff]
  %v118 = vld [vmem:[%s1 + $0x100] sm:$0xff]
  %v119 = vld [vmem:[%s1 + $0x108] sm:$0xff]
  %v120 = vld [vmem:[%s1 + $0x110] sm:$0xff]
  %v121 = vld [vmem:[%s1 + $0x118] sm:$0xff]
  %v122 = vld [vmem:[%s1 + $0x120] sm:$0xff]
  %v123 = vld [vmem:[%s1 + $0x128] sm:$0xff]
  %v124 = vld [vmem:[%s1 + $0x130] sm:$0xff]
  %v125 = vld [vmem:[%s1 + $0x138] sm:$0xff]
  %v126 = vld [vmem:[%s1 + $0x140] sm:$0xff]
  %v127 = vld [vmem:[%s1 + $0x148] sm:$0xff]
  %v128 = vld [vmem:[%s1 + $0x150] sm:$0xff]
  %v129 = vld [vmem:[%s1 + $0x158] sm:$0xff]
  %v130 = vld [vmem:[%s1 + $0x160] sm:$0xff]
  %v131 = vld [vmem:[%s1 + $0x168] sm:$0xff]
  %v132 = vld [vmem:[%s1 + $0x170] sm:$0xff]
  %v133 = vld [vmem:[%s1 + $0x178] sm:$0xff]
  %v134 = vld [vmem:[%s1 + $0x180] sm:$0xff]
  %v135 = vld [vmem:[%s1 + $0x188] sm:$0xff]
  %v136 = vld [vmem:[%s1 + $0x190] sm:$0xff]
  %v137 = vld [vmem:[%s1 + $0x198] sm:$0xff]
  %v138 = vld [vmem:[%s1 + $0x1a0] sm:$0xff]
  %v139 = vld [vmem:[%s1 + $0x1a8] sm:$0xff]
  %v140 = vld [vmem:[%s1 + $0x1b0] sm:$0xff]
  %v141 = vld [vmem:[%s1 + $0x1b8] sm:$0xff]
  %v142 = vld [vmem:[%s1 + $0x1c0] sm:$0xff]
  %v143 = vld [vmem:[%s1 + $0x1c8] sm:$0xff]
  %v144 = vld [vmem:[%s1 + $0x1d0] sm:$0xff]
  %v145 = vld [vmem:[%s1 + $0x1d8] sm:$0xff]
  %v146 = vld [vmem:[%s1 + $0x1e0] sm:$0xff]
  %v147 = vld [vmem:[%s1 + $0x1e8] sm:$0xff]
  %v148 = vld [vmem:[%s1 + $0x1f0] sm:$0xff]
  %v149 = vld [vmem:[%s1 + $0x1f8] sm:$0xff]
  %v150 = vld [vmem:[%s1 + $0x200] sm:$0xff]
  %v151 = vld [vmem:[%s1 + $0x208] sm:$0xff]
  %v152 = vld [vmem:[%s1 + $0x210] sm:$0xff]
  %v153 = vld [vmem:[%s1 + $0x218] sm:$0xff]
  %v154 = vld [vmem:[%s1 + $0x220] sm:$0xff]
  %v155 = vld [vmem:[%s1 + $0x228] sm:$0xff]
  %v156 = vld [vmem:[%s1 + $0x230] sm:$0xff]
  %v157 = vld [vmem:[%s1 + $0x238] sm:$0xff]
  %v158 = vld [vmem:[%s1 + $0x240] sm:$0xff]
  %v159 = vld [vmem:[%s1 + $0x248] sm:$0xff]
  %v160 = vld [vmem:[%s1 + $0x250] sm:$0xff]
  %v161 = vld [vmem:[%s1 + $0x258] sm:$0xff]
  %v162 = vld [vmem:[%s1 + $0x260] sm:$0xff]
  %v163 = vld [vmem:[%s1 + $0x268] sm:$0xff]
  %v164 = vld [vmem:[%s1 + $0x270] sm:$0xff]
  %v165 = vld [vmem:[%s1 + $0x278] sm:$0xff]
  %v166 = vld [vmem:[%s1 + $0x280] sm:$0xff]
  %v167 = vld [vmem:[%s1 + $0x288] sm:$0xff]
  %v168 = vld [vmem:[%s1 + $0x290] sm:$0xff]
  %v169 = vld [vmem:[%s1 + $0x298] sm:$0xff]
  %v170 = vld [vmem:[%s1 + $0x2a0] sm:$0xff]
  %v171 = vld [vmem:[%s1 + $0x2a8] sm:$0xff]
  %v172 = vld [vmem:[%s1 + $0x2b0] sm:$0xff]
  %v173 = vld [vmem:[%s1 + $0x2b8] sm:$0xff]
  %v174 = vld [vmem:[%s1 + $0x2c0] sm:$0xff]
  %v175 = vld [vmem:[%s1 + $0x2c8] sm:$0xff]
  %v176 = vld [vmem:[%s1 + $0x2d0] sm:$0xff]
  %v177 = vld [vmem:[%s1 + $0x2d8] sm:$0xff]
  %v178 = vld [vmem:[%s1 + $0x2e0] sm:$0xff]
  %v179 = vld [vmem:[%s1 + $0x2e8] sm:$0xff]
  %v180 = vld [vmem:[%s1 + $0x2f0] sm:$0xff]
  %v181 = vld [vmem:[%s1 + $0x2f8] sm:$0xff]
  %v182 = vld [vmem:[%s1 + $0x300] sm:$0xff]
  %v183 = vld [vmem:[%s1 + $0x308] sm:$0xff]
  %v184 = vld [vmem:[%s1 + $0x310] sm:$0xff]
  %v185 = vld [vmem:[%s1 + $0x318] sm:$0xff]
  %v186 = vld [vmem:[%s1 + $0x320] sm:$0xff]
  %v187 = vld [vmem:[%s1 + $0x328] sm:$0xff]
  %v188 = vld [vmem:[%s1 + $0x330] sm:$0xff]
  %v189 = vld [vmem:[%s1 + $0x338] sm:$0xff]
  %v190 = vld [vmem:[%s1 + $0x340] sm:$0xff]
  %v191 = vld [vmem:[%s1 + $0x348] sm:$0xff]
  %v192 = vld [vmem:[%s1 + $0x350] sm:$0xff]
  %v193 = vld [vmem:[%s1 + $0x358] sm:$0xff]
  %v194 = vld [vmem:[%s1 + $0x360] sm:$0xff]
  %v195 = vld [vmem:[%s1 + $0x368] sm:$0xff]
  %v196 = vld [vmem:[%s1 + $0x370] sm:$0xff]
  %v197 = vld [vmem:[%s1 + $0x378] sm:$0xff]
  %v198 = vld [vmem:[%s1 + $0x380] sm:$0xff]
  %v199 = vld [vmem:[%s1 + $0x388] sm:$0xff]
  %v200 = vld [vmem:[%s1 + $0x390] sm:$0xff]
  %v201 = vld [vmem:[%s1 + $0x398] sm:$0xff]
  %v202 = vld [vmem:[%s1 + $0x3a0] sm:$0xff]
  %v203 = vld [vmem:[%s1 + $0x3a8] sm:$0xff]
  %v204 = vld [vmem:[%s1 + $0x3b0] sm:$0xff]
  %v205 = vld [vmem:[%s1 + $0x3b8] sm:$0xff]
  %v206 = vld [vmem:[%s1 + $0x3c0] sm:$0xff]
  %v207 = vld [vmem:[%s1 + $0x3c8] sm:$0xff]
  %v208 = vld [vmem:[%s1 + $0x3d0] sm:$0xff]
  %v209 = vld [vmem:[%s1 + $0x3d8] sm:$0xff]
  %v210 = vld [vmem:[%s1 + $0x3e0] sm:$0xff]
  %v211 = vld [vmem:[%s1 + $0x3e8] sm:$0xff]
  %v212 = vld [vmem:[%s1 + $0x3f0] sm:$0xff]
  %v213 = vld [vmem:[%s1 + $0x3f8] sm:$0xff]
  %v214 = vld [vmem:[%s1 + $0x400] sm:$0xff]
  %v215 = vld [vmem:[%s1 + $0x408] sm:$0xff]
  %v216 = vld [vmem:[%s1 + $0x410] sm:$0xff]
  %v217 = vld [vmem:[%s1 + $0x418] sm:$0xff]
  %v218 = vld [vmem:[%s1 + $0x420] sm:$0xff]
  %v219 = vld [vmem:[%s1 + $0x428] sm:$0xff]
  %v220 = vld [vmem:[%s1 + $0x430] sm:$0xff]
  %v221 = vld [vmem:[%s1 + $0x438] sm:$0xff]
  %v222 = vld [vmem:[%s1 + $0x440] sm:$0xff]
  %v223 = vld [vmem:[%s1 + $0x448] sm:$0xff]
  %v224 = vld [vmem:[%s1 + $0x450] sm:$0xff]
  %v225 = vld [vmem:[%s1 + $0x458] sm:$0xff]
  %v226 = vld [vmem:[%s1 + $0x460] sm:$0xff]
  %v227 = vld [vmem:[%s1 + $0x468] sm:$0xff]
  %v228 = vld [vmem:[%s1 + $0x470] sm:$0xff]
  %v229 = vld [vmem:[%s1 + $0x478] sm:$0xff]
  %v230 = vld [vmem:[%s1 + $0x480] sm:$0xff]
  %v231 = vld [vmem:[%s1 + $0x488] sm:$0xff]
  %v232 = vld [vmem:[%s1 + $0x490] sm:$0xff]
  %v233 = vld [vmem:[%s1 + $0x498] sm:$0xff]
  %v234 = vld [vmem:[%s1 + $0x4a0] sm:$0xff]
  %v235 = vld [vmem:[%s1 + $0x4a8] sm:$0xff]
  %v236 = vld [vmem:[%s1 + $0x4b0] sm:$0xff]
  %v237 = vld [vmem:[%s1 + $0x4b8] sm:$0xff]
  %v238 = vld [vmem:[%s1 + $0x4c0] sm:$0xff]
  %v239 = vld [vmem:[%s1 + $0x4c8] sm:$0xff]
  %v240 = vld [vmem:[%s1 + $0x4d0] sm:$0xff]
  %v241 = vld [vmem:[%s1 + $0x4d8] sm:$0xff]
  %v242 = vld [vmem:[%s1 + $0x4e0] sm:$0xff]
  %v243 = vld [vmem:[%s1 + $0x4e8] sm:$0xff]
  %v244 = vld [vmem:[%s1 + $0x4f0] sm:$0xff]
  %v245 = vld [vmem:[%s1 + $0x4f8] sm:$0xff]
  %v246 = vld [vmem:[%s1 + $0x500] sm:$0xff]
  %v247 = vld [vmem:[%s1 + $0x508] sm:$0xff]
  %v248 = vld [vmem:[%s1 + $0x510] sm:$0xff]
  %v249 = vld [vmem:[%s1 + $0x518] sm:$0xff]
  %v250 = vld [vmem:[%s1 + $0x520] sm:$0xff]
  %v251 = vld [vmem:[%s1 + $0x528] sm:$0xff]
  %v252 = vld [vmem:[%s1 + $0x530] sm:$0xff]
  %v253 = vld [vmem:[%s1 + $0x538] sm:$0xff]
  %v254 = vld [vmem:[%s1 + $0x540] sm:$0xff]
  %v255 = vld [vmem:[%s1 + $0x548] sm:$0xff]
  %v256 = vld [vmem:[%s1 + $0x550] sm:$0xff]
  %v257 = vld [vmem:[%s1 + $0x558] sm:$0xff]
  %v258 = vld [vmem:[%s1 + $0x560] sm:$0xff]
  %v259 = vld [vmem:[%s1 + $0x568] sm:$0xff]
  %v260 = vld [vmem:[%s1 + $0x570] sm:$0xff]
  %v261 = vld [vmem:[%s1 + $0x578] sm:$0xff]
  %v262 = vld [vmem:[%s1 + $0x580] sm:$0xff]
  %v263 = vld [vmem:[%s1 + $0x588] sm:$0xff]
  %v264 = vld [vmem:[%s1 + $0x590] sm:$0xff]
  %v265 = vld [vmem:[%s1 + $0x598] sm:$0xff]
  %v266 = vld [vmem:[%s1 + $0x5a0] sm:$0xff]
  %v267 = vld [vmem:[%s1 + $0x5a8] sm:$0xff]
  %v268 = vld [vmem:[%s1 + $0x5b0] sm:$0xff]
  %v269 = vld [vmem:[%s1 + $0x5b8] sm:$0xff]
  %v270 = vld [vmem:[%s1 + $0x5c0] sm:$0xff]
  %v271 = vld [vmem:[%s1 + $0x5c8] sm:$0xff]
  %v272 = vld [vmem:[%s1 + $0x5d0] sm:$0xff]
  %v273 = vld [vmem:[%s1 + $0x5d8] sm:$0xff]
  %v274 = vld [vmem:[%s1 + $0x5e0] sm:$0xff]
  %v275 = vld [vmem:[%s1 + $0x5e8] sm:$0xff]
  %v276 = vld [vmem:[%s1 + $0x5f0] sm:$0xff]
  %v277 = vld [vmem:[%s1 + $0x5f8] sm:$0xff]
  %v278 = vld [vmem:[%s1 + $0x600] sm:$0xff]
  %v279 = vld [vmem:[%s1 + $0x608] sm:$0xff]
  %v280 = vld [vmem:[%s1 + $0x610] sm:$0xff]
  %v281 = vld [vmem:[%s1 + $0x618] sm:$0xff]
  %v282 = vld [vmem:[%s1 + $0x620] sm:$0xff]
  %v283 = vld [vmem:[%s1 + $0x628] sm:$0xff]
  %v284 = vld [vmem:[%s1 + $0x630] sm:$0xff]
  %v285 = vld [vmem:[%s1 + $0x638] sm:$0xff]
  %v286 = vld [vmem:[%s1 + $0x640] sm:$0xff]
  %v287 = vld [vmem:[%s1 + $0x648] sm:$0xff]
  %v288 = vld [vmem:[%s1 + $0x650] sm:$0xff]
  %v289 = vld [vmem:[%s1 + $0x658] sm:$0xff]
  %v290 = vld [vmem:[%s1 + $0x660] sm:$0xff]
  %v291 = vld [vmem:[%s1 + $0x668] sm:$0xff]
  %v292 = vld [vmem:[%s1 + $0x670] sm:$0xff]
  %v293 = vld [vmem:[%s1 + $0x678] sm:$0xff]
  %v294 = vld [vmem:[%s1 + $0x680] sm:$0xff]
  %v295 = vld [vmem:[%s1 + $0x688] sm:$0xff]
  %v296 = vld [vmem:[%s1 + $0x690] sm:$0xff]
  %v297 = vld [vmem:[%s1 + $0x698] sm:$0xff]
  %v298 = vld [vmem:[%s1 + $0x6a0] sm:$0xff]
  %v299 = vld [vmem:[%s1 + $0x6a8] sm:$0xff]
  %v300 = vld [vmem:[%s1 + $0x6b0] sm:$0xff]
  %v301 = vld [vmem:[%s1 + $0x6b8] sm:$0xff]
  %v302 = vld [vmem:[%s1 + $0x6c0] sm:$0xff]
  %v303 = vld [vmem:[%s1 + $0x6c8] sm:$0xff]
  %v304 = vld [vmem:[%s1 + $0x6d0] sm:$0xff]
  %v305 = vld [vmem:[%s1 + $0x6d8] sm:$0xff]
  %v306 = vld [vmem:[%s1 + $0x6e0] sm:$0xff]
  %v307 = vld [vmem:[%s1 + $0x6e8] sm:$0xff]
  %v308 = vld [vmem:[%s1 + $0x6f0] sm:$0xff]
  %v309 = vld [vmem:[%s1 + $0x6f8] sm:$0xff]
  %v310 = vld [vmem:[%s1 + $0x700] sm:$0xff]
  %v311 = vld [vmem:[%s1 + $0x708] sm:$0xff]
  %v312 = vld [vmem:[%s1 + $0x710] sm:$0xff]
  %v313 = vld [vmem:[%s1 + $0x718] sm:$0xff]
  %v314 = vld [vmem:[%s1 + $0x720] sm:$0xff]
  %v315 = vld [vmem:[%s1 + $0x728] sm:$0xff]
  %v316 = vld [vmem:[%s1 + $0x730] sm:$0xff]
  %v317 = vld [vmem:[%s1 + $0x738] sm:$0xff]
  %v318 = vld [vmem:[%s1 + $0x740] sm:$0xff]
  %v319 = vld [vmem:[%s1 + $0x748] sm:$0xff]
  %v320 = vld [vmem:[%s1 + $0x750] sm:$0xff]
  %v321 = vld [vmem:[%s1 + $0x758] sm:$0xff]
  %v322 = vld [vmem:[%s1 + $0x760] sm:$0xff]
  %v323 = vld [vmem:[%s1 + $0x768] sm:$0xff]
  %v324 = vld [vmem:[%s1 + $0x770] sm:$0xff]
  %v325 = vld [vmem:[%s1 + $0x778] sm:$0xff]
  %v326 = vld [vmem:[%s1 + $0x780] sm:$0xff]
  %v327 = vld [vmem:[%s1 + $0x788] sm:$0xff]
  %v328 = vld [vmem:[%s1 + $0x790] sm:$0xff]
  %v329 = vld [vmem:[%s1 + $0x798] sm:$0xff]
  %v330 = vld [vmem:[%s1 + $0x7a0] sm:$0xff]
  %v331 = vld [vmem:[%s1 + $0x7a8] sm:$0xff]
  %v332 = vld [vmem:[%s1 + $0x7b0] sm:$0xff]
  %v333 = vld [vmem:[%s1 + $0x7b8] sm:$0xff]
  %v334 = vld [vmem:[%s1 + $0x7c0] sm:$0xff]
  %v335 = vld [vmem:[%s1 + $0x7c8] sm:$0xff]
  %v336 = vld [vmem:[%s1 + $0x7d0] sm:$0xff]
  %v337 = vld [vmem:[%s1 + $0x7d8] sm:$0xff]
  %v338 = vld [vmem:[%s1 + $0x7e0] sm:$0xff]
  %v339 = vld [vmem:[%s1 + $0x7e8] sm:$0xff]
  %v340 = vld [vmem:[%s1 + $0x7f0] sm:$0xff]
  %v341 = vld [vmem:[%s1 + $0x7f8] sm:$0xff]
  %v342 = vld [vmem:[%s1 + $0x800] sm:$0xff]
  %v343 = vld [vmem:[%s1 + $0x808] sm:$0xff]
  %v344 = vld [vmem:[%s1 + $0x810] sm:$0xff]
  %v345 = vld [vmem:[%s1 + $0x818] sm:$0xff]
  %v346 = vld [vmem:[%s1 + $0x820] sm:$0xff]
  %v347 = vld [vmem:[%s1 + $0x828] sm:$0xff]
  %v348 = vld [vmem:[%s1 + $0x830] sm:$0xff]
  %v349 = vld [vmem:[%s1 + $0x838] sm:$0xff]
  %v350 = vld [vmem:[%s1 + $0x840] sm:$0xff]
  %v351 = vld [vmem:[%s1 + $0x848] sm:$0xff]
  %v352 = vld [vmem:[%s1 + $0x850] sm:$0xff]
  %v353 = vld [vmem:[%s1 + $0x858] sm:$0xff]
  %v354 = vld [vmem:[%s1 + $0x860] sm:$0xff]
  %v355 = vld [vmem:[%s1 + $0x868] sm:$0xff]
  %v356 = vld [vmem:[%s1 + $0x870] sm:$0xff]
  %v357 = vld [vmem:[%s1 + $0x878] sm:$0xff]
  %v358 = vld [vmem:[%s1 + $0x880] sm:$0xff]
  %v359 = vld [vmem:[%s1 + $0x888] sm:$0xff]
  %v360 = vld [vmem:[%s1 + $0x890] sm:$0xff]
  %v361 = vld [vmem:[%s1 + $0x898] sm:$0xff]
  %v362 = vld [vmem:[%s1 + $0x8a0] sm:$0xff]
  %v363 = vld [vmem:[%s1 + $0x8a8] sm:$0xff]
  %v364 = vld [vmem:[%s1 + $0x8b0] sm:$0xff]
  %v365 = vld [vmem:[%s1 + $0x8b8] sm:$0xff]
  %v366 = vld [vmem:[%s1 + $0x8c0] sm:$0xff]
  %v367 = vld [vmem:[%s1 + $0x8c8] sm:$0xff]
  %v368 = vld [vmem:[%s1 + $0x8d0] sm:$0xff]
  %v369 = vld [vmem:[%s1 + $0x8d8] sm:$0xff]
  %v370 = vld [vmem:[%s1 + $0x8e0] sm:$0xff]
  %v371 = vld [vmem:[%s1 + $0x8e8] sm:$0xff]
  %v372 = vld [vmem:[%s1 + $0x8f0] sm:$0xff]
  %v373 = vld [vmem:[%s1 + $0x8f8] sm:$0xff]
  %v374 = vld [vmem:[%s1 + $0x900] sm:$0xff]
  %v375 = vld [vmem:[%s1 + $0x908] sm:$0xff]
  %v376 = vld [vmem:[%s1 + $0x910] sm:$0xff]
  %v377 = vld [vmem:[%s1 + $0x918] sm:$0xff]
  %v378 = vld [vmem:[%s1 + $0x920] sm:$0xff]
  %v379 = vld [vmem:[%s1 + $0x928] sm:$0xff]
  %v380 = vld [vmem:[%s1 + $0x930] sm:$0xff]
  %v381 = vld [vmem:[%s1 + $0x938] sm:$0xff]
  %v382 = vld [vmem:[%s1 + $0x940] sm:$0xff]
  %v383 = vld [vmem:[%s1 + $0x948] sm:$0xff]
  %v384 = vld [vmem:[%s1 + $0x950] sm:$0xff]
  %v385 = vld [vmem:[%s1 + $0x958] sm:$0xff]
  %v386 = vld [vmem:[%s1 + $0x960] sm:$0xff]
  %v387 = vld [vmem:[%s1 + $0x968] sm:$0xff]
  %v388 = vld [vmem:[%s1 + $0x970] sm:$0xff]
  %v389 = vld [vmem:[%s1 + $0x978] sm:$0xff]
  %v390 = vld [vmem:[%s1 + $0x980] sm:$0xff]
  %v391 = vld [vmem:[%s1 + $0x988] sm:$0xff]
  %v392 = vld [vmem:[%s1 + $0x990] sm:$0xff]
  %v393 = vld [vmem:[%s1 + $0x998] sm:$0xff]
  %v394 = vld [vmem:[%s1 + $0x9a0] sm:$0xff]
  %v395 = vld [vmem:[%s1 + $0x9a8] sm:$0xff]
  %v396 = vld [vmem:[%s1 + $0x9b0] sm:$0xff]
  %v397 = vld [vmem:[%s1 + $0x9b8] sm:$0xff]
  %v398 = vld [vmem:[%s1 + $0x9c0] sm:$0xff]
  %v399 = vld [vmem:[%s1 + $0x9c8] sm:$0xff]
  %v400 = vld [vmem:[%s1 + $0x9d0] sm:$0xff]
  %v401 = vld [vmem:[%s1 + $0x9d8] sm:$0xff]
  %v402 = vld [vmem:[%s1 + $0x9e0] sm:$0xff]
  %v403 = vld [vmem:[%s1 + $0x9e8] sm:$0xff]
  %v404 = vld [vmem:[%s1 + $0x9f0] sm:$0xff]
  %v405 = vld [vmem:[%s1 + $0x9f8] sm:$0xff]
  %v406 = vld [vmem:[%s1 + $0xa00] sm:$0xff]
  %v407 = vld [vmem:[%s1 + $0xa08] sm:$0xff]
  %v408 = vld [vmem:[%s1 + $0xa10] sm:$0xff]
  %v409 = vld [vmem:[%s1 + $0xa18] sm:$0xff]
  %v410 = vld [vmem:[%s1 + $0xa20] sm:$0xff]
  %v411 = vld [vmem:[%s1 + $0xa28] sm:$0xff]
  %v412 = vld [vmem:[%s1 + $0xa30] sm:$0xff]
  %v413 = vld [vmem:[%s1 + $0xa38] sm:$0xff]
  %v414 = vld [vmem:[%s1 + $0xa40] sm:$0xff]
  %v415 = vld [vmem:[%s1 + $0xa48] sm:$0xff]
  %v416 = vld [vmem:[%s1 + $0xa50] sm:$0xff]
  %v417 = vld [vmem:[%s1 + $0xa58] sm:$0xff]
  %v418 = vld [vmem:[%s1 + $0xa60] sm:$0xff]
  %v419 = vld [vmem:[%s1 + $0xa68] sm:$0xff]
  %v420 = vld [vmem:[%s1 + $0xa70] sm:$0xff]
  %v421 = vld [vmem:[%s1 + $0xa78] sm:$0xff]
  %v422 = vld [vmem:[%s1 + $0xa80] sm:$0xff]
  %v423 = vld [vmem:[%s1 + $0xa88] sm:$0xff]
  %v424 = vld [vmem:[%s1 + $0xa90] sm:$0xff]
  %v425 = vld [vmem:[%s1 + $0xa98] sm:$0xff]
  %v426 = vld [vmem:[%s1 + $0xaa0] sm:$0xff]
  %v427 = vld [vmem:[%s1 + $0xaa8] sm:$0xff]
  %v428 = vld [vmem:[%s1 + $0xab0] sm:$0xff]
  %v429 = vld [vmem:[%s1 + $0xab8] sm:$0xff]
  %v430 = vld [vmem:[%s1 + $0xac0] sm:$0xff]
  %v431 = vld [vmem:[%s1 + $0xac8] sm:$0xff]
  %v432 = vld [vmem:[%s1 + $0xad0] sm:$0xff]
  %v433 = vld [vmem:[%s1 + $0xad8] sm:$0xff]
  %v434 = vld [vmem:[%s1 + $0xae0] sm:$0xff]
  %v435 = vld [vmem:[%s1 + $0xae8] sm:$0xff]
  %v436 = vld [vmem:[%s1 + $0xaf0] sm:$0xff]
  %v437 = vld [vmem:[%s1 + $0xaf8] sm:$0xff]
  %v438 = vld [vmem:[%s1 + $0xb00] sm:$0xff]
  %v439 = vld [vmem:[%s1 + $0xb08] sm:$0xff]
  %v440 = vld [vmem:[%s1 + $0xb10] sm:$0xff]
  %v441 = vld [vmem:[%s1 + $0xb18] sm:$0xff]
  %v442 = vld [vmem:[%s1 + $0xb20] sm:$0xff]
  %v443 = vld [vmem:[%s1 + $0xb28] sm:$0xff]
  %v444 = vld [vmem:[%s1 + $0xb30] sm:$0xff]
  %v445 = vld [vmem:[%s1 + $0xb38] sm:$0xff]
  %v446 = vld [vmem:[%s1 + $0xb40] sm:$0xff]
  %v447 = vld [vmem:[%s1 + $0xb48] sm:$0xff]
  %v448 = vld [vmem:[%s1 + $0xb50] sm:$0xff]
  %v449 = vld [vmem:[%s1 + $0xb58] sm:$0xff]
  %v450 = vld [vmem:[%s1 + $0xb60] sm:$0xff]
  %v451 = vld [vmem:[%s1 + $0xb68] sm:$0xff]
  %v452 = vld [vmem:[%s1 + $0xb70] sm:$0xff]
  %v453 = vld [vmem:[%s1 + $0xb78] sm:$0xff]
  %v454 = vld [vmem:[%s1 + $0xb80] sm:$0xff]
  %v455 = vld [vmem:[%s1 + $0xb88] sm:$0xff]
  %v456 = vld [vmem:[%s1 + $0xb90] sm:$0xff]
  %v457 = vld [vmem:[%s1 + $0xb98] sm:$0xff]
  %v458 = vld [vmem:[%s1 + $0xba0] sm:$0xff]
  %v459 = vld [vmem:[%s1 + $0xba8] sm:$0xff]
  %v460 = vld [vmem:[%s1 + $0xbb0] sm:$0xff]
  %v461 = vld [vmem:[%s1 + $0xbb8] sm:$0xff]
  %v462 = vld [vmem:[%s1 + $0xbc0] sm:$0xff]
  %v463 = vld [vmem:[%s1 + $0xbc8] sm:$0xff]
  %v464 = vld [vmem:[%s1 + $0xbd0] sm:$0xff]
  %v465 = vld [vmem:[%s1 + $0xbd8] sm:$0xff]
  %v466 = vld [vmem:[%s1 + $0xbe0] sm:$0xff]
  %v467 = vld [vmem:[%s1 + $0xbe8] sm:$0xff]
  %v468 = vld [vmem:[%s1 + $0xbf0] sm:$0xff]
  %v469 = vld [vmem:[%s1 + $0xbf8] sm:$0xff]
  %v470 = vld [vmem:[%s1 + $0xc00] sm:$0xff]
  %v471 = vld [vmem:[%s1 + $0xc08] sm:$0xff]
  %v472 = vld [vmem:[%s1 + $0xc10] sm:$0xff]
  %v473 = vld [vmem:[%s1 + $0xc18] sm:$0xff]
  %v474 = vld [vmem:[%s1 + $0xc20] sm:$0xff]
  %v475 = vld [vmem:[%s1 + $0xc28] sm:$0xff]
  %v476 = vld [vmem:[%s1 + $0xc30] sm:$0xff]
  %v477 = vld [vmem:[%s1 + $0xc38] sm:$0xff]
  %v478 = vld [vmem:[%s1 + $0xc40] sm:$0xff]
  %v479 = vld [vmem:[%s1 + $0xc48] sm:$0xff]
  %v480 = vld [vmem:[%s1 + $0xc50] sm:$0xff]
  %v481 = vld [vmem:[%s1 + $0xc58] sm:$0xff]
  %v482 = vld [vmem:[%s1 + $0xc60] sm:$0xff]
  %v483 = vld [vmem:[%s1 + $0xc68] sm:$0xff]
  %v484 = vld [vmem:[%s1 + $0xc70] sm:$0xff]
  %v485 = vld [vmem:[%s1 + $0xc78] sm:$0xff]
  %v486 = vld [vmem:[%s2] sm:$0x1]
  %v488 = vperm.slane %v486, 0
  %497 = vst [vmem:[#allocation1] ss:$4 sm:$0xff] %v79
  %s498 = scalar_lea.vmem [#allocation1], 32
  %499 = vst [vmem:[%s498] ss:$4 sm:$0xff] %v80
  %v500 = vld.sshfl [vmem:[#allocation1] sm:$0xff pattern:$0x73625140]
  %v501 = vld.sshfl [vmem:[#allocation1 + $0x8] sm:$0xff pattern:$0x73625140]
  %v502 = vld.sshfl [vmem:[#allocation1 + $0x10] sm:$0xff pattern:$0x73625140]
  %v503 = vld.sshfl [vmem:[#allocation1 + $0x18] sm:$0xff pattern:$0x73625140]
  %v504 = vld.sshfl [vmem:[#allocation1 + $0x20] sm:$0xff pattern:$0x73625140]
  %v505 = vld.sshfl [vmem:[#allocation1 + $0x28] sm:$0xff pattern:$0x73625140]
  %v506 = vld.sshfl [vmem:[#allocation1 + $0x30] sm:$0xff pattern:$0x73625140]
  %v507 = vld.sshfl [vmem:[#allocation1 + $0x38] sm:$0xff pattern:$0x73625140]
  %508 = vst [vmem:[#allocation1] ss:$4 sm:$0xff] %v81
  %509 = vst [vmem:[%s498] ss:$4 sm:$0xff] %v82
  %v510 = vld.sshfl [vmem:[#allocation1] sm:$0xff pattern:$0x73625140]
  %v511 = vld.sshfl [vmem:[#allocation1 + $0x8] sm:$0xff pattern:$0x73625140]
  %v512 = vld.sshfl [vmem:[#allocation1 + $0x10] sm:$0xff pattern:$0x73625140]
  %v513 = vld.sshfl [vmem:[#allocation1 + $0x18] sm:$0xff pattern:$0x73625140]
  %v514 = vld.sshfl [vmem:[#allocation1 + $0x20] sm:$0xff pattern:$0x73625140]
  %v515 = vld.sshfl [vmem:[#allocation1 + $0x28] sm:$0xff pattern:$0x73625140]
  %v516 = vld.sshfl [vmem:[#allocation1 + $0x30] sm:$0xff pattern:$0x73625140]
  %v517 = vld.sshfl [vmem:[#allocation1 + $0x38] sm:$0xff pattern:$0x73625140]
  %518 = vst [vmem:[#allocation1] ss:$4 sm:$0xff] %v83
  %519 = vst [vmem:[%s498] ss:$4 sm:$0xff] %v84
  %v520 = vld.sshfl [vmem:[#allocation1] sm:$0xff pattern:$0x73625140]
  %v521 = vld.sshfl [vmem:[#allocation1 + $0x8] sm:$0xff pattern:$0x73625140]
  %v522 = vld.sshfl [vmem:[#allocation1 + $0x10] sm:$0xff pattern:$0x73625140]
  %v523 = vld.sshfl [vmem:[#allocation1 + $0x18] sm:$0xff pattern:$0x73625140]
  %v524 = vld.sshfl [vmem:[#allocation1 + $0x20] sm:$0xff pattern:$0x73625140]
  %v525 = vld.sshfl [vmem:[#allocation1 + $0x28] sm:$0xff pattern:$0x73625140]
  %v526 = vld.sshfl [vmem:[#allocation1 + $0x30] sm:$0xff pattern:$0x73625140]
  %v527 = vld.sshfl [vmem:[#allocation1 + $0x38] sm:$0xff pattern:$0x73625140]
  %528 = vst [vmem:[#allocation1] ss:$4 sm:$0xff] %v85
  %v529 = vld.sshfl [vmem:[#allocation1] sm:$0xff pattern:$0x73625140]
  %555 = vmatpush.msra.mxu0 %v101
  %556 = vmatpush.msra.mxu0 %v100
  %557 = vmatpush.msra.mxu0 %v99
  %558 = vmatpush.msra.mxu0 %v98
  %559 = vmatpush.msra.mxu0 %v97
  %560 = vmatpush.msra.mxu0 %v96
  %561 = vmatpush.msra.mxu0 %v95
  %562 = vmatpush.msra.mxu0 %v94
  %563 = vmatpush.msra.mxu0 %v93
  %564 = vmatpush.msra.mxu0 %v92
  %565 = vmatpush.msra.mxu0 %v91
  %566 = vmatpush.msra.mxu0 %v90
  %567 = vmatpush.msra.mxu0 %v89
  %568 = vmatpush.msra.mxu0 %v88
  %569 = vmatpush.msra.mxu0 %v87
  %570 = vmatpush.msra.mxu0 %v86
  %571 = vmatmul.f32.gmra.mxu0 %v500
  %v572 = vpop.f32.mrf.mxu0
  %v573 = vadd.f32 %v488, %v572
  %574 = vdwg.mxu0
  %575 = vmatpush.msra.mxu0 %v117
  %576 = vmatpush.msra.mxu0 %v116
  %577 = vmatpush.msra.mxu0 %v115
  %578 = vmatpush.msra.mxu0 %v114
  %579 = vmatpush.msra.mxu0 %v113
  %580 = vmatpush.msra.mxu0 %v112
  %581 = vmatpush.msra.mxu0 %v111
  %582 = vmatpush.msra.mxu0 %v110
  %583 = vmatpush.msra.mxu0 %v109
  %584 = vmatpush.msra.mxu0 %v108
  %585 = vmatpush.msra.mxu0 %v107
  %586 = vmatpush.msra.mxu0 %v106
  %587 = vmatpush.msra.mxu0 %v105
  %588 = vmatpush.msra.mxu0 %v104
  %589 = vmatpush.msra.mxu0 %v103
  %590 = vmatpush.msra.mxu0 %v102
  %591 = vmatmul.f32.gmra.mxu0 %v501
  %v592 = vpop.f32.mrf.mxu0
  %v593 = vadd.f32 %v573, %v592
  %594 = vdwg.mxu0
  %595 = vmatpush.msra.mxu0 %v133
  %596 = vmatpush.msra.mxu0 %v132
  %597 = vmatpush.msra.mxu0 %v131
  %598 = vmatpush.msra.mxu0 %v130
  %599 = vmatpush.msra.mxu0 %v129
  %600 = vmatpush.msra.mxu0 %v128
  %601 = vmatpush.msra.mxu0 %v127
  %602 = vmatpush.msra.mxu0 %v126
  %603 = vmatpush.msra.mxu0 %v125
  %604 = vmatpush.msra.mxu0 %v124
  %605 = vmatpush.msra.mxu0 %v123
  %606 = vmatpush.msra.mxu0 %v122
  %607 = vmatpush.msra.mxu0 %v121
  %608 = vmatpush.msra.mxu0 %v120
  %609 = vmatpush.msra.mxu0 %v119
  %610 = vmatpush.msra.mxu0 %v118
  %611 = vmatmul.f32.gmra.mxu0 %v502
  %v612 = vpop.f32.mrf.mxu0
  %v613 = vadd.f32 %v593, %v612
  %614 = vdwg.mxu0
  %615 = vmatpush.msra.mxu0 %v149
  %616 = vmatpush.msra.mxu0 %v148
  %617 = vmatpush.msra.mxu0 %v147
  %618 = vmatpush.msra.mxu0 %v146
  %619 = vmatpush.msra.mxu0 %v145
  %620 = vmatpush.msra.mxu0 %v144
  %621 = vmatpush.msra.mxu0 %v143
  %622 = vmatpush.msra.mxu0 %v142
  %623 = vmatpush.msra.mxu0 %v141
  %624 = vmatpush.msra.mxu0 %v140
  %625 = vmatpush.msra.mxu0 %v139
  %626 = vmatpush.msra.mxu0 %v138
  %627 = vmatpush.msra.mxu0 %v137
  %628 = vmatpush.msra.mxu0 %v136
  %629 = vmatpush.msra.mxu0 %v135
  %630 = vmatpush.msra.mxu0 %v134
  %631 = vmatmul.f32.gmra.mxu0 %v503
  %v632 = vpop.f32.mrf.mxu0
  %v633 = vadd.f32 %v613, %v632
  %634 = vdwg.mxu0
  %635 = vmatpush.msra.mxu0 %v165
  %636 = vmatpush.msra.mxu0 %v164
  %637 = vmatpush.msra.mxu0 %v163
  %638 = vmatpush.msra.mxu0 %v162
  %639 = vmatpush.msra.mxu0 %v161
  %640 = vmatpush.msra.mxu0 %v160
  %641 = vmatpush.msra.mxu0 %v159
  %642 = vmatpush.msra.mxu0 %v158
  %643 = vmatpush.msra.mxu0 %v157
  %644 = vmatpush.msra.mxu0 %v156
  %645 = vmatpush.msra.mxu0 %v155
  %646 = vmatpush.msra.mxu0 %v154
  %647 = vmatpush.msra.mxu0 %v153
  %648 = vmatpush.msra.mxu0 %v152
  %649 = vmatpush.msra.mxu0 %v151
  %650 = vmatpush.msra.mxu0 %v150
  %651 = vmatmul.f32.gmra.mxu0 %v504
  %v652 = vpop.f32.mrf.mxu0
  %v653 = vadd.f32 %v633, %v652
  %654 = vdwg.mxu0
  %655 = vmatpush.msra.mxu0 %v181
  %656 = vmatpush.msra.mxu0 %v180
  %657 = vmatpush.msra.mxu0 %v179
  %658 = vmatpush.msra.mxu0 %v178
  %659 = vmatpush.msra.mxu0 %v177
  %660 = vmatpush.msra.mxu0 %v176
  %661 = vmatpush.msra.mxu0 %v175
  %662 = vmatpush.msra.mxu0 %v174
  %663 = vmatpush.msra.mxu0 %v173
  %664 = vmatpush.msra.mxu0 %v172
  %665 = vmatpush.msra.mxu0 %v171
  %666 = vmatpush.msra.mxu0 %v170
  %667 = vmatpush.msra.mxu0 %v169
  %668 = vmatpush.msra.mxu0 %v168
  %669 = vmatpush.msra.mxu0 %v167
  %670 = vmatpush.msra.mxu0 %v166
  %671 = vmatmul.f32.gmra.mxu0 %v505
  %v672 = vpop.f32.mrf.mxu0
  %v673 = vadd.f32 %v653, %v672
  %674 = vdwg.mxu0
  %675 = vmatpush.msra.mxu0 %v197
  %676 = vmatpush.msra.mxu0 %v196
  %677 = vmatpush.msra.mxu0 %v195
  %678 = vmatpush.msra.mxu0 %v194
  %679 = vmatpush.msra.mxu0 %v193
  %680 = vmatpush.msra.mxu0 %v192
  %681 = vmatpush.msra.mxu0 %v191
  %682 = vmatpush.msra.mxu0 %v190
  %683 = vmatpush.msra.mxu0 %v189
  %684 = vmatpush.msra.mxu0 %v188
  %685 = vmatpush.msra.mxu0 %v187
  %686 = vmatpush.msra.mxu0 %v186
  %687 = vmatpush.msra.mxu0 %v185
  %688 = vmatpush.msra.mxu0 %v184
  %689 = vmatpush.msra.mxu0 %v183
  %690 = vmatpush.msra.mxu0 %v182
  %691 = vmatmul.f32.gmra.mxu0 %v506
  %v692 = vpop.f32.mrf.mxu0
  %v693 = vadd.f32 %v673, %v692
  %694 = vdwg.mxu0
  %695 = vmatpush.msra.mxu0 %v213
  %696 = vmatpush.msra.mxu0 %v212
  %697 = vmatpush.msra.mxu0 %v211
  %698 = vmatpush.msra.mxu0 %v210
  %699 = vmatpush.msra.mxu0 %v209
  %700 = vmatpush.msra.mxu0 %v208
  %701 = vmatpush.msra.mxu0 %v207
  %702 = vmatpush.msra.mxu0 %v206
  %703 = vmatpush.msra.mxu0 %v205
  %704 = vmatpush.msra.mxu0 %v204
  %705 = vmatpush.msra.mxu0 %v203
  %706 = vmatpush.msra.mxu0 %v202
  %707 = vmatpush.msra.mxu0 %v201
  %708 = vmatpush.msra.mxu0 %v200
  %709 = vmatpush.msra.mxu0 %v199
  %710 = vmatpush.msra.mxu0 %v198
  %711 = vmatmul.f32.gmra.mxu0 %v507
  %v712 = vpop.f32.mrf.mxu0
  %v713 = vadd.f32 %v693, %v712
  %714 = vdwg.mxu0
  %715 = vmatpush.msra.mxu0 %v229
  %716 = vmatpush.msra.mxu0 %v228
  %717 = vmatpush.msra.mxu0 %v227
  %718 = vmatpush.msra.mxu0 %v226
  %719 = vmatpush.msra.mxu0 %v225
  %720 = vmatpush.msra.mxu0 %v224
  %721 = vmatpush.msra.mxu0 %v223
  %722 = vmatpush.msra.mxu0 %v222
  %723 = vmatpush.msra.mxu0 %v221
  %724 = vmatpush.msra.mxu0 %v220
  %725 = vmatpush.msra.mxu0 %v219
  %726 = vmatpush.msra.mxu0 %v218
  %727 = vmatpush.msra.mxu0 %v217
  %728 = vmatpush.msra.mxu0 %v216
  %729 = vmatpush.msra.mxu0 %v215
  %730 = vmatpush.msra.mxu0 %v214
  %731 = vmatmul.f32.gmra.mxu0 %v510
  %v732 = vpop.f32.mrf.mxu0
  %v733 = vadd.f32 %v713, %v732
  %734 = vdwg.mxu0
  %735 = vmatpush.msra.mxu0 %v245
  %736 = vmatpush.msra.mxu0 %v244
  %737 = vmatpush.msra.mxu0 %v243
  %738 = vmatpush.msra.mxu0 %v242
  %739 = vmatpush.msra.mxu0 %v241
  %740 = vmatpush.msra.mxu0 %v240
  %741 = vmatpush.msra.mxu0 %v239
  %742 = vmatpush.msra.mxu0 %v238
  %743 = vmatpush.msra.mxu0 %v237
  %744 = vmatpush.msra.mxu0 %v236
  %745 = vmatpush.msra.mxu0 %v235
  %746 = vmatpush.msra.mxu0 %v234
  %747 = vmatpush.msra.mxu0 %v233
  %748 = vmatpush.msra.mxu0 %v232
  %749 = vmatpush.msra.mxu0 %v231
  %750 = vmatpush.msra.mxu0 %v230
  %751 = vmatmul.f32.gmra.mxu0 %v511
  %v752 = vpop.f32.mrf.mxu0
  %v753 = vadd.f32 %v733, %v752
  %754 = vdwg.mxu0
  %755 = vmatpush.msra.mxu0 %v261
  %756 = vmatpush.msra.mxu0 %v260
  %757 = vmatpush.msra.mxu0 %v259
  %758 = vmatpush.msra.mxu0 %v258
  %759 = vmatpush.msra.mxu0 %v257
  %760 = vmatpush.msra.mxu0 %v256
  %761 = vmatpush.msra.mxu0 %v255
  %762 = vmatpush.msra.mxu0 %v254
  %763 = vmatpush.msra.mxu0 %v253
  %764 = vmatpush.msra.mxu0 %v252
  %765 = vmatpush.msra.mxu0 %v251
  %766 = vmatpush.msra.mxu0 %v250
  %767 = vmatpush.msra.mxu0 %v249
  %768 = vmatpush.msra.mxu0 %v248
  %769 = vmatpush.msra.mxu0 %v247
  %770 = vmatpush.msra.mxu0 %v246
  %771 = vmatmul.f32.gmra.mxu0 %v512
  %v772 = vpop.f32.mrf.mxu0
  %v773 = vadd.f32 %v753, %v772
  %774 = vdwg.mxu0
  %775 = vmatpush.msra.mxu0 %v277
  %776 = vmatpush.msra.mxu0 %v276
  %777 = vmatpush.msra.mxu0 %v275
  %778 = vmatpush.msra.mxu0 %v274
  %779 = vmatpush.msra.mxu0 %v273
  %780 = vmatpush.msra.mxu0 %v272
  %781 = vmatpush.msra.mxu0 %v271
  %782 = vmatpush.msra.mxu0 %v270
  %783 = vmatpush.msra.mxu0 %v269
  %784 = vmatpush.msra.mxu0 %v268
  %785 = vmatpush.msra.mxu0 %v267
  %786 = vmatpush.msra.mxu0 %v266
  %787 = vmatpush.msra.mxu0 %v265
  %788 = vmatpush.msra.mxu0 %v264
  %789 = vmatpush.msra.mxu0 %v263
  %790 = vmatpush.msra.mxu0 %v262
  %791 = vmatmul.f32.gmra.mxu0 %v513
  %v792 = vpop.f32.mrf.mxu0
  %v793 = vadd.f32 %v773, %v792
  %794 = vdwg.mxu0
  %795 = vmatpush.msra.mxu0 %v293
  %796 = vmatpush.msra.mxu0 %v292
  %797 = vmatpush.msra.mxu0 %v291
  %798 = vmatpush.msra.mxu0 %v290
  %799 = vmatpush.msra.mxu0 %v289
  %800 = vmatpush.msra.mxu0 %v288
  %801 = vmatpush.msra.mxu0 %v287
  %802 = vmatpush.msra.mxu0 %v286
  %803 = vmatpush.msra.mxu0 %v285
  %804 = vmatpush.msra.mxu0 %v284
  %805 = vmatpush.msra.mxu0 %v283
  %806 = vmatpush.msra.mxu0 %v282
  %807 = vmatpush.msra.mxu0 %v281
  %808 = vmatpush.msra.mxu0 %v280
  %809 = vmatpush.msra.mxu0 %v279
  %810 = vmatpush.msra.mxu0 %v278
  %811 = vmatmul.f32.gmra.mxu0 %v514
  %v812 = vpop.f32.mrf.mxu0
  %v813 = vadd.f32 %v793, %v812
  %814 = vdwg.mxu0
  %815 = vmatpush.msra.mxu0 %v309
  %816 = vmatpush.msra.mxu0 %v308
  %817 = vmatpush.msra.mxu0 %v307
  %818 = vmatpush.msra.mxu0 %v306
  %819 = vmatpush.msra.mxu0 %v305
  %820 = vmatpush.msra.mxu0 %v304
  %821 = vmatpush.msra.mxu0 %v303
  %822 = vmatpush.msra.mxu0 %v302
  %823 = vmatpush.msra.mxu0 %v301
  %824 = vmatpush.msra.mxu0 %v300
  %825 = vmatpush.msra.mxu0 %v299
  %826 = vmatpush.msra.mxu0 %v298
  %827 = vmatpush.msra.mxu0 %v297
  %828 = vmatpush.msra.mxu0 %v296
  %829 = vmatpush.msra.mxu0 %v295
  %830 = vmatpush.msra.mxu0 %v294
  %831 = vmatmul.f32.gmra.mxu0 %v515
  %v832 = vpop.f32.mrf.mxu0
  %v833 = vadd.f32 %v813, %v832
  %834 = vdwg.mxu0
  %835 = vmatpush.msra.mxu0 %v325
  %836 = vmatpush.msra.mxu0 %v324
  %837 = vmatpush.msra.mxu0 %v323
  %838 = vmatpush.msra.mxu0 %v322
  %839 = vmatpush.msra.mxu0 %v321
  %840 = vmatpush.msra.mxu0 %v320
  %841 = vmatpush.msra.mxu0 %v319
  %842 = vmatpush.msra.mxu0 %v318
  %843 = vmatpush.msra.mxu0 %v317
  %844 = vmatpush.msra.mxu0 %v316
  %845 = vmatpush.msra.mxu0 %v315
  %846 = vmatpush.msra.mxu0 %v314
  %847 = vmatpush.msra.mxu0 %v313
  %848 = vmatpush.msra.mxu0 %v312
  %849 = vmatpush.msra.mxu0 %v311
  %850 = vmatpush.msra.mxu0 %v310
  %851 = vmatmul.f32.gmra.mxu0 %v516
  %v852 = vpop.f32.mrf.mxu0
  %v853 = vadd.f32 %v833, %v852
  %854 = vdwg.mxu0
  %855 = vmatpush.msra.mxu0 %v341
  %856 = vmatpush.msra.mxu0 %v340
  %857 = vmatpush.msra.mxu0 %v339
  %858 = vmatpush.msra.mxu0 %v338
  %859 = vmatpush.msra.mxu0 %v337
  %860 = vmatpush.msra.mxu0 %v336
  %861 = vmatpush.msra.mxu0 %v335
  %862 = vmatpush.msra.mxu0 %v334
  %863 = vmatpush.msra.mxu0 %v333
  %864 = vmatpush.msra.mxu0 %v332
  %865 = vmatpush.msra.mxu0 %v331
  %866 = vmatpush.msra.mxu0 %v330
  %867 = vmatpush.msra.mxu0 %v329
  %868 = vmatpush.msra.mxu0 %v328
  %869 = vmatpush.msra.mxu0 %v327
  %870 = vmatpush.msra.mxu0 %v326
  %871 = vmatmul.f32.gmra.mxu0 %v517
  %v872 = vpop.f32.mrf.mxu0
  %v873 = vadd.f32 %v853, %v872
  %874 = vdwg.mxu0
  %875 = vmatpush.msra.mxu0 %v357
  %876 = vmatpush.msra.mxu0 %v356
  %877 = vmatpush.msra.mxu0 %v355
  %878 = vmatpush.msra.mxu0 %v354
  %879 = vmatpush.msra.mxu0 %v353
  %880 = vmatpush.msra.mxu0 %v352
  %881 = vmatpush.msra.mxu0 %v351
  %882 = vmatpush.msra.mxu0 %v350
  %883 = vmatpush.msra.mxu0 %v349
  %884 = vmatpush.msra.mxu0 %v348
  %885 = vmatpush.msra.mxu0 %v347
  %886 = vmatpush.msra.mxu0 %v346
  %887 = vmatpush.msra.mxu0 %v345
  %888 = vmatpush.msra.mxu0 %v344
  %889 = vmatpush.msra.mxu0 %v343
  %890 = vmatpush.msra.mxu0 %v342
  %891 = vmatmul.f32.gmra.mxu0 %v520
  %v892 = vpop.f32.mrf.mxu0
  %v893 = vadd.f32 %v873, %v892
  %894 = vdwg.mxu0
  %895 = vmatpush.msra.mxu0 %v373
  %896 = vmatpush.msra.mxu0 %v372
  %897 = vmatpush.msra.mxu0 %v371
  %898 = vmatpush.msra.mxu0 %v370
  %899 = vmatpush.msra.mxu0 %v369
  %900 = vmatpush.msra.mxu0 %v368
  %901 = vmatpush.msra.mxu0 %v367
  %902 = vmatpush.msra.mxu0 %v366
  %903 = vmatpush.msra.mxu0 %v365
  %904 = vmatpush.msra.mxu0 %v364
  %905 = vmatpush.msra.mxu0 %v363
  %906 = vmatpush.msra.mxu0 %v362
  %907 = vmatpush.msra.mxu0 %v361
  %908 = vmatpush.msra.mxu0 %v360
  %909 = vmatpush.msra.mxu0 %v359
  %910 = vmatpush.msra.mxu0 %v358
  %911 = vmatmul.f32.gmra.mxu0 %v521
  %v912 = vpop.f32.mrf.mxu0
  %v913 = vadd.f32 %v893, %v912
  %914 = vdwg.mxu0
  %915 = vmatpush.msra.mxu0 %v389
  %916 = vmatpush.msra.mxu0 %v388
  %917 = vmatpush.msra.mxu0 %v387
  %918 = vmatpush.msra.mxu0 %v386
  %919 = vmatpush.msra.mxu0 %v385
  %920 = vmatpush.msra.mxu0 %v384
  %921 = vmatpush.msra.mxu0 %v383
  %922 = vmatpush.msra.mxu0 %v382
  %923 = vmatpush.msra.mxu0 %v381
  %924 = vmatpush.msra.mxu0 %v380
  %925 = vmatpush.msra.mxu0 %v379
  %926 = vmatpush.msra.mxu0 %v378
  %927 = vmatpush.msra.mxu0 %v377
  %928 = vmatpush.msra.mxu0 %v376
  %929 = vmatpush.msra.mxu0 %v375
  %930 = vmatpush.msra.mxu0 %v374
  %931 = vmatmul.f32.gmra.mxu0 %v522
  %v932 = vpop.f32.mrf.mxu0
  %v933 = vadd.f32 %v913, %v932
  %934 = vdwg.mxu0
  %935 = vmatpush.msra.mxu0 %v405
  %936 = vmatpush.msra.mxu0 %v404
  %937 = vmatpush.msra.mxu0 %v403
  %938 = vmatpush.msra.mxu0 %v402
  %939 = vmatpush.msra.mxu0 %v401
  %940 = vmatpush.msra.mxu0 %v400
  %941 = vmatpush.msra.mxu0 %v399
  %942 = vmatpush.msra.mxu0 %v398
  %943 = vmatpush.msra.mxu0 %v397
  %944 = vmatpush.msra.mxu0 %v396
  %945 = vmatpush.msra.mxu0 %v395
  %946 = vmatpush.msra.mxu0 %v394
  %947 = vmatpush.msra.mxu0 %v393
  %948 = vmatpush.msra.mxu0 %v392
  %949 = vmatpush.msra.mxu0 %v391
  %950 = vmatpush.msra.mxu0 %v390
  %951 = vmatmul.f32.gmra.mxu0 %v523
  %v952 = vpop.f32.mrf.mxu0
  %v953 = vadd.f32 %v933, %v952
  %954 = vdwg.mxu0
  %955 = vmatpush.msra.mxu0 %v421
  %956 = vmatpush.msra.mxu0 %v420
  %957 = vmatpush.msra.mxu0 %v419
  %958 = vmatpush.msra.mxu0 %v418
  %959 = vmatpush.msra.mxu0 %v417
  %960 = vmatpush.msra.mxu0 %v416
  %961 = vmatpush.msra.mxu0 %v415
  %962 = vmatpush.msra.mxu0 %v414
  %963 = vmatpush.msra.mxu0 %v413
  %964 = vmatpush.msra.mxu0 %v412
  %965 = vmatpush.msra.mxu0 %v411
  %966 = vmatpush.msra.mxu0 %v410
  %967 = vmatpush.msra.mxu0 %v409
  %968 = vmatpush.msra.mxu0 %v408
  %969 = vmatpush.msra.mxu0 %v407
  %970 = vmatpush.msra.mxu0 %v406
  %971 = vmatmul.f32.gmra.mxu0 %v524
  %v972 = vpop.f32.mrf.mxu0
  %v973 = vadd.f32 %v953, %v972
  %974 = vdwg.mxu0
  %975 = vmatpush.msra.mxu0 %v437
  %976 = vmatpush.msra.mxu0 %v436
  %977 = vmatpush.msra.mxu0 %v435
  %978 = vmatpush.msra.mxu0 %v434
  %979 = vmatpush.msra.mxu0 %v433
  %980 = vmatpush.msra.mxu0 %v432
  %981 = vmatpush.msra.mxu0 %v431
  %982 = vmatpush.msra.mxu0 %v430
  %983 = vmatpush.msra.mxu0 %v429
  %984 = vmatpush.msra.mxu0 %v428
  %985 = vmatpush.msra.mxu0 %v427
  %986 = vmatpush.msra.mxu0 %v426
  %987 = vmatpush.msra.mxu0 %v425
  %988 = vmatpush.msra.mxu0 %v424
  %989 = vmatpush.msra.mxu0 %v423
  %990 = vmatpush.msra.mxu0 %v422
  %991 = vmatmul.f32.gmra.mxu0 %v525
  %v992 = vpop.f32.mrf.mxu0
  %v993 = vadd.f32 %v973, %v992
  %994 = vdwg.mxu0
  %995 = vmatpush.msra.mxu0 %v453
  %996 = vmatpush.msra.mxu0 %v452
  %997 = vmatpush.msra.mxu0 %v451
  %998 = vmatpush.msra.mxu0 %v450
  %999 = vmatpush.msra.mxu0 %v449
  %1000 = vmatpush.msra.mxu0 %v448
  %1001 = vmatpush.msra.mxu0 %v447
  %1002 = vmatpush.msra.mxu0 %v446
  %1003 = vmatpush.msra.mxu0 %v445
  %1004 = vmatpush.msra.mxu0 %v444
  %1005 = vmatpush.msra.mxu0 %v443
  %1006 = vmatpush.msra.mxu0 %v442
  %1007 = vmatpush.msra.mxu0 %v441
  %1008 = vmatpush.msra.mxu0 %v440
  %1009 = vmatpush.msra.mxu0 %v439
  %1010 = vmatpush.msra.mxu0 %v438
  %1011 = vmatmul.f32.gmra.mxu0 %v526
  %v1012 = vpop.f32.mrf.mxu0
  %v1013 = vadd.f32 %v993, %v1012
  %1014 = vdwg.mxu0
  %1015 = vmatpush.msra.mxu0 %v469
  %1016 = vmatpush.msra.mxu0 %v468
  %1017 = vmatpush.msra.mxu0 %v467
  %1018 = vmatpush.msra.mxu0 %v466
  %1019 = vmatpush.msra.mxu0 %v465
  %1020 = vmatpush.msra.mxu0 %v464
  %1021 = vmatpush.msra.mxu0 %v463
  %1022 = vmatpush.msra.mxu0 %v462
  %1023 = vmatpush.msra.mxu0 %v461
  %1024 = vmatpush.msra.mxu0 %v460
  %1025 = vmatpush.msra.mxu0 %v459
  %1026 = vmatpush.msra.mxu0 %v458
  %1027 = vmatpush.msra.mxu0 %v457
  %1028 = vmatpush.msra.mxu0 %v456
  %1029 = vmatpush.msra.mxu0 %v455
  %1030 = vmatpush.msra.mxu0 %v454
  %1031 = vmatmul.f32.gmra.mxu0 %v527
  %v1032 = vpop.f32.mrf.mxu0
  %v1033 = vadd.f32 %v1013, %v1032
  %1034 = vdwg.mxu0
  %1035 = vmatpush.msra.mxu0 %v485
  %1036 = vmatpush.msra.mxu0 %v484
  %1037 = vmatpush.msra.mxu0 %v483
  %1038 = vmatpush.msra.mxu0 %v482
  %1039 = vmatpush.msra.mxu0 %v481
  %1040 = vmatpush.msra.mxu0 %v480
  %1041 = vmatpush.msra.mxu0 %v479
  %1042 = vmatpush.msra.mxu0 %v478
  %1043 = vmatpush.msra.mxu0 %v477
  %1044 = vmatpush.msra.mxu0 %v476
  %1045 = vmatpush.msra.mxu0 %v475
  %1046 = vmatpush.msra.mxu0 %v474
  %1047 = vmatpush.msra.mxu0 %v473
  %1048 = vmatpush.msra.mxu0 %v472
  %1049 = vmatpush.msra.mxu0 %v471
  %1050 = vmatpush.msra.mxu0 %v470
  %1051 = vmatmul.f32.gmra.mxu0 %v529
  %v1052 = vpop.f32.mrf.mxu0
  %v1053 = vadd.f32 %v1033, %v1052
  %1054 = vdwg.mxu0
  %v1055 = vmax.f32 %v1053, 0.0
  %v1056 = vld [vmem:[%s3] sm:$0xff]
  %v1057 = vld [vmem:[%s3 + $0x8] sm:$0xff]
  %v1058 = vld [vmem:[%s3 + $0x10] sm:$0xff]
  %v1059 = vld [vmem:[%s3 + $0x18] sm:$0xff]
  %v1060 = vld [vmem:[%s3 + $0x20] sm:$0xff]
  %v1061 = vld [vmem:[%s3 + $0x28] sm:$0xff]
  %v1062 = vld [vmem:[%s3 + $0x30] sm:$0xff]
  %v1063 = vld [vmem:[%s3 + $0x38] sm:$0xff]
  %v1064 = vld [vmem:[%s3 + $0x40] sm:$0xff]
  %v1065 = vld [vmem:[%s3 + $0x48] sm:$0xff]
  %v1066 = vld [vmem:[%s3 + $0x50] sm:$0xff]
  %v1067 = vld [vmem:[%s3 + $0x58] sm:$0xff]
  %v1068 = vld [vmem:[%s3 + $0x60] sm:$0xff]
  %v1069 = vld [vmem:[%s3 + $0x68] sm:$0xff]
  %v1070 = vld [vmem:[%s3 + $0x70] sm:$0xff]
  %v1071 = vld [vmem:[%s3 + $0x78] sm:$0xff]
  %1072 = vmatpush.msra.mxu0 %v1071
  %1073 = vmatpush.msra.mxu0 %v1070
  %1074 = vmatpush.msra.mxu0 %v1069
  %1075 = vmatpush.msra.mxu0 %v1068
  %1076 = vmatpush.msra.mxu0 %v1067
  %1077 = vmatpush.msra.mxu0 %v1066
  %1078 = vmatpush.msra.mxu0 %v1065
  %1079 = vmatpush.msra.mxu0 %v1064
  %1080 = vmatpush.msra.mxu0 %v1063
  %1081 = vmatpush.msra.mxu0 %v1062
  %1082 = vmatpush.msra.mxu0 %v1061
  %1083 = vmatpush.msra.mxu0 %v1060
  %1084 = vmatpush.msra.mxu0 %v1059
  %1085 = vmatpush.msra.mxu0 %v1058
  %1086 = vmatpush.msra.mxu0 %v1057
  %1087 = vmatpush.msra.mxu0 %v1056
  %1088 = vmatmul.f32.gmra.mxu0 %v1055
  %v1089 = vpop.f32.mrf.mxu0
  %v1090 = vadd.f32 0.0, %v1089
  %1091 = vdwg.mxu0
  %v1092 = vld [vmem:[%s4] sm:$0x1]
  %v1094 = vperm.slane %v1092, 0
  %v1096 = vmul.f32 %v1090, %v1094
  %v1097 = vld [vmem:[%s5] sm:$0x1]
  %v1099 = vperm.slane %v1097, 0
  %v1101 = vadd.f32 %v1096, %v1099
  %v1102 = vmax.f32 %v1101, 0.0
  %v1103 = vld [vmem:[%s6] sm:$0xff]
  %v1104 = vld [vmem:[%s6 + $0x8] sm:$0xff]
  %v1105 = vld [vmem:[%s6 + $0x10] sm:$0xff]
  %v1106 = vld [vmem:[%s6 + $0x18] sm:$0xff]
  %v1107 = vld [vmem:[%s6 + $0x20] sm:$0xff]
  %v1108 = vld [vmem:[%s6 + $0x28] sm:$0xff]
  %v1109 = vld [vmem:[%s6 + $0x30] sm:$0xff]
  %v1110 = vld [vmem:[%s6 + $0x38] sm:$0xff]
  %v1111 = vld [vmem:[%s6 + $0x40] sm:$0xff]
  %v1112 = vld [vmem:[%s6 + $0x48] sm:$0xff]
  %v1113 = vld [vmem:[%s6 + $0x50] sm:$0xff]
  %v1114 = vld [vmem:[%s6 + $0x58] sm:$0xff]
  %v1115 = vld [vmem:[%s6 + $0x60] sm:$0xff]
  %v1116 = vld [vmem:[%s6 + $0x68] sm:$0xff]
  %v1117 = vld [vmem:[%s6 + $0x70] sm:$0xff]
  %v1118 = vld [vmem:[%s6 + $0x78] sm:$0xff]
  %1119 = vmatpush.msra.mxu0 %v1118
  %1120 = vmatpush.msra.mxu0 %v1117
  %1121 = vmatpush.msra.mxu0 %v1116
  %1122 = vmatpush.msra.mxu0 %v1115
  %1123 = vmatpush.msra.mxu0 %v1114
  %1124 = vmatpush.msra.mxu0 %v1113
  %1125 = vmatpush.msra.mxu0 %v1112
  %1126 = vmatpush.msra.mxu0 %v1111
  %1127 = vmatpush.msra.mxu0 %v1110
  %1128 = vmatpush.msra.mxu0 %v1109
  %1129 = vmatpush.msra.mxu0 %v1108
  %1130 = vmatpush.msra.mxu0 %v1107
  %1131 = vmatpush.msra.mxu0 %v1106
  %1132 = vmatpush.msra.mxu0 %v1105
  %1133 = vmatpush.msra.mxu0 %v1104
  %1134 = vmatpush.msra.mxu0 %v1103
  %1135 = vmatmul.f32.gmra.mxu0 %v1102
  %v1136 = vpop.f32.mrf.mxu0
  %v1137 = vadd.f32 0.0, %v1136
  %1138 = vdwg.mxu0
  %v1139 = vld [vmem:[%s7] sm:$0x1]
  %v1141 = vperm.slane %v1139, 0
  %v1143 = vmul.f32 %v1137, %v1141
  %v1144 = vld [vmem:[%s8] sm:$0x1]
  %v1146 = vperm.slane %v1144, 0
  %v1148 = vadd.f32 %v1143, %v1146
  %v1149 = vadd.f32 %v1148, %v1055
  %v1150 = vmax.f32 %v1149, 0.0
  %v1151 = vld [vmem:[%s9] sm:$0xff]
  %v1152 = vld [vmem:[%s9 + $0x8] sm:$0xff]
  %v1153 = vld [vmem:[%s9 + $0x10] sm:$0xff]
  %v1154 = vld [vmem:[%s9 + $0x18] sm:$0xff]
  %v1155 = vld [vmem:[%s9 + $0x20] sm:$0xff]
  %v1156 = vld [vmem:[%s9 + $0x28] sm:$0xff]
  %v1157 = vld [vmem:[%s9 + $0x30] sm:$0xff]
  %v1158 = vld [vmem:[%s9 + $0x38] sm:$0xff]
  %v1159 = vld [vmem:[%s9 + $0x40] sm:$0xff]
  %v1160 = vld [vmem:[%s9 + $0x48] sm:$0xff]
  %v1161 = vld [vmem:[%s9 + $0x50] sm:$0xff]
  %v1162 = vld [vmem:[%s9 + $0x58] sm:$0xff]
  %v1163 = vld [vmem:[%s9 + $0x60] sm:$0xff]
  %v1164 = vld [vmem:[%s9 + $0x68] sm:$0xff]
  %v1165 = vld [vmem:[%s9 + $0x70] sm:$0xff]
  %v1166 = vld [vmem:[%s9 + $0x78] sm:$0xff]
  %1167 = vmatpush.msra.mxu0 %v1166
  %1168 = vmatpush.msra.mxu0 %v1165
  %1169 = vmatpush.msra.mxu0 %v1164
  %1170 = vmatpush.msra.mxu0 %v1163
  %1171 = vmatpush.msra.mxu0 %v1162
  %1172 = vmatpush.msra.mxu0 %v1161
  %1173 = vmatpush.msra.mxu0 %v1160
  %1174 = vmatpush.msra.mxu0 %v1159
  %1175 = vmatpush.msra.mxu0 %v1158
  %1176 = vmatpush.msra.mxu0 %v1157
  %1177 = vmatpush.msra.mxu0 %v1156
  %1178 = vmatpush.msra.mxu0 %v1155
  %1179 = vmatpush.msra.mxu0 %v1154
  %1180 = vmatpush.msra.mxu0 %v1153
  %1181 = vmatpush.msra.mxu0 %v1152
  %1182 = vmatpush.msra.mxu0 %v1151
  %1183 = vmatmul.f32.gmra.mxu0 %v1150
  %v1184 = vpop.f32.mrf.mxu0
  %v1185 = vadd.f32 0.0, %v1184
  %1186 = vdwg.mxu0
  %v1187 = vld [vmem:[%s10] sm:$0x1]
  %v1189 = vperm.slane %v1187, 0
  %v1191 = vmul.f32 %v1185, %v1189
  %v1192 = vld [vmem:[%s11] sm:$0x1]
  %v1194 = vperm.slane %v1192, 0
  %v1196 = vadd.f32 %v1191, %v1194
  %v1197 = vmax.f32 %v1196, 0.0
  %v1198 = vld [vmem:[%s12] sm:$0xff]
  %v1199 = vld [vmem:[%s12 + $0x8] sm:$0xff]
  %v1200 = vld [vmem:[%s12 + $0x10] sm:$0xff]
  %v1201 = vld [vmem:[%s12 + $0x18] sm:$0xff]
  %v1202 = vld [vmem:[%s12 + $0x20] sm:$0xff]
  %v1203 = vld [vmem:[%s12 + $0x28] sm:$0xff]
  %v1204 = vld [vmem:[%s12 + $0x30] sm:$0xff]
  %v1205 = vld [vmem:[%s12 + $0x38] sm:$0xff]
  %v1206 = vld [vmem:[%s12 + $0x40] sm:$0xff]
  %v1207 = vld [vmem:[%s12 + $0x48] sm:$0xff]
  %v1208 = vld [vmem:[%s12 + $0x50] sm:$0xff]
  %v1209 = vld [vmem:[%s12 + $0x58] sm:$0xff]
  %v1210 = vld [vmem:[%s12 + $0x60] sm:$0xff]
  %v1211 = vld [vmem:[%s12 + $0x68] sm:$0xff]
  %v1212 = vld [vmem:[%s12 + $0x70] sm:$0xff]
  %v1213 = vld [vmem:[%s12 + $0x78] sm:$0xff]
  %1214 = vmatpush.msra.mxu0 %v1213
  %1215 = vmatpush.msra.mxu0 %v1212
  %1216 = vmatpush.msra.mxu0 %v1211
  %1217 = vmatpush.msra.mxu0 %v1210
  %1218 = vmatpush.msra.mxu0 %v1209
  %1219 = vmatpush.msra.mxu0 %v1208
  %1220 = vmatpush.msra.mxu0 %v1207
  %1221 = vmatpush.msra.mxu0 %v1206
  %1222 = vmatpush.msra.mxu0 %v1205
  %1223 = vmatpush.msra.mxu0 %v1204
  %1224 = vmatpush.msra.mxu0 %v1203
  %1225 = vmatpush.msra.mxu0 %v1202
  %1226 = vmatpush.msra.mxu0 %v1201
  %1227 = vmatpush.msra.mxu0 %v1200
  %1228 = vmatpush.msra.mxu0 %v1199
  %1229 = vmatpush.msra.mxu0 %v1198
  %1230 = vmatmul.f32.gmra.mxu0 %v1197
  %v1231 = vpop.f32.mrf.mxu0
  %v1232 = vadd.f32 0.0, %v1231
  %1233 = vdwg.mxu0
  %v1234 = vld [vmem:[%s13] sm:$0x1]
  %v1236 = vperm.slane %v1234, 0
  %v1238 = vmul.f32 %v1232, %v1236
  %v1239 = vld [vmem:[%s14] sm:$0x1]
  %v1241 = vperm.slane %v1239, 0
  %v1243 = vadd.f32 %v1238, %v1241
  %v1244 = vadd.f32 %v1243, %v1150
  %v1245 = vmax.f32 %v1244, 0.0
  %v1246 = vld [vmem:[%s15] sm:$0xff]
  %v1247 = vld [vmem:[%s15 + $0x8] sm:$0xff]
  %v1248 = vld [vmem:[%s15 + $0x10] sm:$0xff]
  %v1249 = vld [vmem:[%s15 + $0x18] sm:$0xff]
  %v1250 = vld [vmem:[%s15 + $0x20] sm:$0xff]
  %v1251 = vld [vmem:[%s15 + $0x28] sm:$0xff]
  %v1252 = vld [vmem:[%s15 + $0x30] sm:$0xff]
  %v1253 = vld [vmem:[%s15 + $0x38] sm:$0xff]
  %v1254 = vld [vmem:[%s15 + $0x40] sm:$0xff]
  %v1255 = vld [vmem:[%s15 + $0x48] sm:$0xff]
  %v1256 = vld [vmem:[%s15 + $0x50] sm:$0xff]
  %v1257 = vld [vmem:[%s15 + $0x58] sm:$0xff]
  %v1258 = vld [vmem:[%s15 + $0x60] sm:$0xff]
  %v1259 = vld [vmem:[%s15 + $0x68] sm:$0xff]
  %v1260 = vld [vmem:[%s15 + $0x70] sm:$0xff]
  %v1261 = vld [vmem:[%s15 + $0x78] sm:$0xff]
  %v1262 = vld [vmem:[%s16] sm:$0x1]
  %v1264 = vperm.slane %v1262, 0
  %1266 = vmatpush.msra.mxu0 %v1261
  %1267 = vmatpush.msra.mxu0 %v1260
  %1268 = vmatpush.msra.mxu0 %v1259
  %1269 = vmatpush.msra.mxu0 %v1258
  %1270 = vmatpush.msra.mxu0 %v1257
  %1271 = vmatpush.msra.mxu0 %v1256
  %1272 = vmatpush.msra.mxu0 %v1255
  %1273 = vmatpush.msra.mxu0 %v1254
  %1274 = vmatpush.msra.mxu0 %v1253
  %1275 = vmatpush.msra.mxu0 %v1252
  %1276 = vmatpush.msra.mxu0 %v1251
  %1277 = vmatpush.msra.mxu0 %v1250
  %1278 = vmatpush.msra.mxu0 %v1249
  %1279 = vmatpush.msra.mxu0 %v1248
  %1280 = vmatpush.msra.mxu0 %v1247
  %1281 = vmatpush.msra.mxu0 %v1246
  %1282 = vmatmul.f32.gmra.mxu0 %v1245
  %v1283 = vpop.f32.mrf.mxu0
  %v1284 = vadd.f32 %v1264, %v1283
  %1285 = vdwg.mxu0
  %v1286 = vmax.f32 %v1284, 0.0
  %v1287 = vld [vmem:[%s17] sm:$0xff]
  %v1288 = vld [vmem:[%s17 + $0x8] sm:$0xff]
  %v1289 = vld [vmem:[%s18] sm:$0x1]
  %v1291 = vperm.slane %v1289, 0
  %vm1293 = vcmask 130048
  %v1295 = vsel %vm1293, %v1286, 0
  %1297 = vmatpush.msra.mxu0 0.0
  %1298 = vmatpush.msra.mxu0 0.0
  %1299 = vmatpush.msra.mxu0 0.0
  %1300 = vmatpush.msra.mxu0 0.0
  %1301 = vmatpush.msra.mxu0 0.0
  %1302 = vmatpush.msra.mxu0 0.0
  %1303 = vmatpush.msra.mxu0 0.0
  %1304 = vmatpush.msra.mxu0 0.0
  %1305 = vmatpush.msra.mxu0 0.0
  %1306 = vmatpush.msra.mxu0 0.0
  %1307 = vmatpush.msra.mxu0 0.0
  %1308 = vmatpush.msra.mxu0 0.0
  %1309 = vmatpush.msra.mxu0 0.0
  %1310 = vmatpush.msra.mxu0 0.0
  %1311 = vmatpush.msra.mxu0 %v1288
  %1312 = vmatpush.msra.mxu0 %v1287
  %1313 = vmatmul.f32.gmra.mxu0 %v1295
  %v1314 = vpop.f32.mrf.mxu0
  %v1315 = vadd.f32 %v1291, %v1314
  %1316 = vdwg.mxu0
  %v1317 = vxor.u32 %v1315, 2147483648
  %v1318 = vmul.f32 %v1317, 1.442695
  %v1319 = vpow.pop %v1318
  %v1320 = vadd.f32 %v1319, 1.0
  %v1321 = vrcp.pop %v1320
  %v1322 = vmul.f32 %v1320, %v1321
  %v1323 = vsub.f32 1.0, %v1322
  %v1324 = vmul.f32 %v1321, %v1323
  %v1325 = vadd.f32 %v1321, %v1324
  %vm1326 = vweird.f32 %v1320
  %vm1327 = vweird.f32 %v1321
  %vm1328 = vmor %vm1326, %vm1327
  %v1329 = vsel %vm1328, %v1321, %v1325
  %v1330 = vand.u32 2147483647, %v1320
  %vm1331 = vcmp.eq.f32.partialorder %v1330, 8.507059e+37
  %v1332 = vand.u32 %v1320, 2147483648
  %v1333 = vor.u32 1.1754944e-38, %v1332
  %v1334 = vsel %vm1331, %v1333, %v1329
  %v1335 = vmul.f32 1.0, %v1334
  %v1336 = vmul.f32 %v1245, %v1335
  %v1337 = vld [vmem:[%s19] sm:$0xff]
  %v1338 = vld [vmem:[%s19 + $0x8] sm:$0xff]
  %v1339 = vld [vmem:[%s19 + $0x10] sm:$0xff]
  %v1340 = vld [vmem:[%s19 + $0x18] sm:$0xff]
  %v1341 = vld [vmem:[%s19 + $0x20] sm:$0xff]
  %v1342 = vld [vmem:[%s19 + $0x28] sm:$0xff]
  %v1343 = vld [vmem:[%s19 + $0x30] sm:$0xff]
  %v1344 = vld [vmem:[%s19 + $0x38] sm:$0xff]
  %v1345 = vld [vmem:[%s19 + $0x40] sm:$0xff]
  %v1346 = vld [vmem:[%s19 + $0x48] sm:$0xff]
  %v1347 = vld [vmem:[%s19 + $0x50] sm:$0xff]
  %v1348 = vld [vmem:[%s19 + $0x58] sm:$0xff]
  %v1349 = vld [vmem:[%s19 + $0x60] sm:$0xff]
  %v1350 = vld [vmem:[%s19 + $0x68] sm:$0xff]
  %v1351 = vld [vmem:[%s19 + $0x70] sm:$0xff]
  %v1352 = vld [vmem:[%s19 + $0x78] sm:$0xff]
  %1353 = vmatpush.msra.mxu0 %v1352
  %1354 = vmatpush.msra.mxu0 %v1351
  %1355 = vmatpush.msra.mxu0 %v1350
  %1356 = vmatpush.msra.mxu0 %v1349
  %1357 = vmatpush.msra.mxu0 %v1348
  %1358 = vmatpush.msra.mxu0 %v1347
  %1359 = vmatpush.msra.mxu0 %v1346
  %1360 = vmatpush.msra.mxu0 %v1345
  %1361 = vmatpush.msra.mxu0 %v1344
  %1362 = vmatpush.msra.mxu0 %v1343
  %1363 = vmatpush.msra.mxu0 %v1342
  %1364 = vmatpush.msra.mxu0 %v1341
  %1365 = vmatpush.msra.mxu0 %v1340
  %1366 = vmatpush.msra.mxu0 %v1339
  %1367 = vmatpush.msra.mxu0 %v1338
  %1368 = vmatpush.msra.mxu0 %v1337
  %1369 = vmatmul.f32.gmra.mxu0 %v1336
  %v1370 = vpop.f32.mrf.mxu0
  %v1371 = vadd.f32 0.0, %v1370
  %1372 = vdwg.mxu0
  %v1373 = vld [vmem:[%s20] sm:$0x1]
  %v1375 = vperm.slane %v1373, 0
  %v1377 = vmul.f32 %v1371, %v1375
  %v1378 = vld [vmem:[%s21] sm:$0x1]
  %v1380 = vperm.slane %v1378, 0
  %v1382 = vadd.f32 %v1377, %v1380
  %v1383 = vmax.f32 %v1382, 0.0
  %v1384 = vld [vmem:[%s22] sm:$0x1]
  %v1386 = vperm.slane %v1384, 0
  %v1388 = vmul.f32 %v1383, %v1386
  %vm1389 = vcmask 517120
  %v1390 = vsel %vm1389, %v1388, 0.0
  %1391 = vadd.xlane.f32.xlu0 %v1390
  %v1392 = vpop.xlane.xlu0 %1391
  %v1393 = vld [vmem:[#allocation2] sm:$0x1]
  %v1395 = vperm.slane %v1393, 0
  %v1397 = vadd.f32 %v1392, %v1395
  %v1398 = vxor.u32 %v1397, 2147483648
  %v1399 = vmul.f32 %v1398, 1.442695
  %v1400 = vpow.pop %v1399
  %v1401 = vadd.f32 %v1400, 1.0
  %v1402 = vrcp.pop %v1401
  %v1403 = vmul.f32 %v1401, %v1402
  %v1404 = vsub.f32 1.0, %v1403
  %v1405 = vmul.f32 %v1402, %v1404
  %v1406 = vadd.f32 %v1402, %v1405
  %vm1407 = vweird.f32 %v1401
  %vm1408 = vweird.f32 %v1402
  %vm1409 = vmor %vm1407, %vm1408
  %v1410 = vsel %vm1409, %v1402, %v1406
  %v1411 = vand.u32 2147483647, %v1401
  %vm1412 = vcmp.eq.f32.partialorder %v1411, 8.507059e+37
  %v1413 = vand.u32 %v1401, 2147483648
  %v1414 = vor.u32 1.1754944e-38, %v1413
  %v1415 = vsel %vm1412, %v1414, %v1410
  %v1416 = vmul.f32 1.0, %v1415
  %vm1417 = vcmask 1024
  %1418 = vst.msk [vmem:[%s24] sm:$0x3] %vm1417, %v1416
  // Predicated region
  $region98: #{improved_dnn_forward.3} parent=0 // pred_check
    _
  $region99: #{improved_dnn_forward.3} parent=0 // pred_check_branch
    %1420 = sbr.rel (0) target = $region101
  $region100: #{improved_dnn_forward.3} parent=0 // pred_region
    _
  $region101: #{improved_dnn_forward.3} parent=0 // pred_fallthru
    _
  // Predicated region
  $region102: #{improved_dnn_forward.3} parent=0 // pred_check
    _
  $region103: #{improved_dnn_forward.3} parent=0 // pred_check_branch
    %1422 = sbr.rel (0) target = $region105
  $region104: #{improved_dnn_forward.3} parent=0 // pred_region
    _
  $region105: #{improved_dnn_forward.3} parent=0 // pred_fallthru
    _

</llo_original>
